<compile_context>
chip_gen: v5e
topology: v5e:2x2
jax: 0.10.0
libtpu: 0.0.40
codegen_flags: <defaults>
</compile_context>

<pallas_src>
import functools
import math

import jax
import jax.numpy as jnp
from jax.experimental import pallas as pl
from jax.experimental.pallas import tpu as pltpu

# Scoped-VMEM cap: stays under v7x's 64 MiB physical VMEM, plenty on v5e/v6e.
_VMEM_LIMIT = 48 * 1024 * 1024


# ----------------------------- in-kernel helpers ---------------------------

def _gelu(x):
    # matches torch.nn.GELU() default (erf form)
    return 0.5 * x * (1.0 + jax.lax.erf(x * (1.0 / math.sqrt(2.0))))


def _mm(a, b):
    # bf16 operands on the MXU, f32 accumulation (astype is a no-op on bf16).
    return jnp.dot(a.astype(jnp.bfloat16), b.astype(jnp.bfloat16),
                   preferred_element_type=jnp.float32)


def _layernorm(x, g, b, eps=1e-5):
    mu = jnp.mean(x, axis=-1, keepdims=True)
    var = jnp.mean(jnp.square(x - mu), axis=-1, keepdims=True)
    return (x - mu) * jax.lax.rsqrt(var + eps) * g + b


def _attend(qkv_ref, ctx_ref, *, num_heads, bb, s_tok, extra_qkv=None):
    """Per-item multi-head attention over a flattened (BB*S, 3D) bf16 QKV slab.

    `extra_qkv` is an optional (2, 3D) bf16 slab of extra key/value rows that
    every item attends to (the attention-pool sep tokens, identical across the
    batch).  Per-head contexts are concatenated and stored as one full-width
    (S, D) row slab per item into the bf16 scratch `ctx_ref`.
    """
    d = ctx_ref.shape[-1]
    dh = d // num_heads
    scale = 1.0 / math.sqrt(dh)
    n_extra = 0 if extra_qkv is None else extra_qkv.shape[0]

    for b in range(bb):                               # static unroll, small BB
        r0 = b * s_tok
        heads = []
        for h in range(num_heads):
            q = qkv_ref[r0:r0 + s_tok, h * dh:(h + 1) * dh]
            k = qkv_ref[r0:r0 + s_tok, d + h * dh:d + (h + 1) * dh]
            v = qkv_ref[r0:r0 + s_tok, 2 * d + h * dh:2 * d + (h + 1) * dh]
            logits = jax.lax.dot_general(
                q, k, (((1,), (1,)), ((), ())),       # q @ k^T on the MXU
                preferred_element_type=jnp.float32) * scale
            m = jnp.max(logits, axis=-1, keepdims=True)

            # extra (shared) keys: a couple of rows -> cheap VPU dot products
            e_logits = []
            if n_extra:
                q_f = q.astype(jnp.float32)
                for e in range(n_extra):
                    ke = extra_qkv[e:e + 1, d + h * dh:d + (h + 1) * dh]
                    el = jnp.sum(q_f * ke.astype(jnp.float32),
                                 axis=-1, keepdims=True) * scale
                    e_logits.append(el)
                    m = jnp.maximum(m, el)

            p = jnp.exp(logits - m)
            denom = jnp.sum(p, axis=-1, keepdims=True)
            ctx = _mm(p, v)                            # (S, dh) f32
            for e in range(n_extra):
                pe = jnp.exp(e_logits[e] - m)          # (S, 1)
                denom = denom + pe
                ve = extra_qkv[e:e + 1, 2 * d + h * dh:2 * d + (h + 1) * dh]
                ctx = ctx + pe * ve.astype(jnp.float32)

            inv = pl.reciprocal(denom, approx=True)    # EUP, not VPU divide
            heads.append((ctx * inv).astype(jnp.bfloat16))
        # one full-lane-width store per item (no per-head masked stores)
        ctx_ref[r0:r0 + s_tok, :] = jnp.concatenate(heads, axis=-1)


# ------------------------ kernel A: downconv + att pool --------------------

def _attnpool_kernel(xs_ref, dcw_ref, dcb_ref, posm_ref, sep_ref,
                     wqkv_ref, bqkv_ref, wo_ref, bo_ref, dpos_ref,
                     o_ref, pm_ref, qkv_ref, ctx_ref,
                     *, num_heads, bb, s_tok):
    # downconv: Conv1d(C->D, kernel_size=1, stride=3) == one (BB*S, C)x(C, D)
    # matmul; add attention-pool positional embedding for the data tokens.
    y = _mm(xs_ref[...], dcw_ref[...]) + dcb_ref[...] + posm_ref[...]

    # fused QKV projection, batched over all BB items' tokens
    qkv_ref[...] = (_mm(y, wqkv_ref[...]) + bqkv_ref[...]).astype(jnp.bfloat16)
    # sep tokens (sep + pos[0], sep + pos[-1]) are identical for every item
    sep_qkv = (_mm(sep_ref[...], wqkv_ref[...])
               + bqkv_ref[...]).astype(jnp.bfloat16)

    # MHSA: only the data-token queries matter (x[:, 1:-1] of the reference
    # discards the sep-token outputs); softmax is order-invariant over keys.
    _attend(qkv_ref, ctx_ref, num_heads=num_heads, bb=bb, s_tok=s_tok,
            extra_qkv=sep_qkv)

    # out-proj (c_proj of AttentionPool2d is constructed but unused in forward)
    att = _mm(ctx_ref[...], wo_ref[...]) + bo_ref[...]      # (BB*S, D)

    o_ref[...] = att + dpos_ref[...]                        # fold decode_t pos
    for b in range(bb):                                     # per-item mean(dim=1)
        pm_ref[b] = jnp.mean(att[b * s_tok:(b + 1) * s_tok, :],
                             axis=0, keepdims=True)


def attnpool_downconv(xs, dc_w, dc_b, ap, dec_pos, *, num_heads, bb, s_tok):
    BS, C = xs.shape
    D = dc_w.shape[1]
    B = BS // s_tok
    pos = ap["pos"]                                         # (S+2, D)
    pos_mid = jnp.tile(pos[1:s_tok + 1, :], (bb, 1))        # (BB*S, D)
    sep_rows = jnp.concatenate(
        [ap["sep"] + pos[0:1, :], ap["sep"] + pos[s_tok + 1:s_tok + 2, :]],
        axis=0)                                             # (2, D)
    dpos = jnp.tile(dec_pos, (bb, 1))                       # (BB*S, D)

    const = lambda i: (0, 0)
    kernel = functools.partial(_attnpool_kernel, num_heads=num_heads,
                               bb=bb, s_tok=s_tok)
    return pl.pallas_call(
        kernel,
        out_shape=(jax.ShapeDtypeStruct((BS, D), jnp.float32),
                   jax.ShapeDtypeStruct((B, 1, D), jnp.float32)),
        grid=(B // bb,),
        in_specs=[
            pl.BlockSpec((bb * s_tok, C), lambda i: (i, 0)),
            pl.BlockSpec((C, D), const),
            pl.BlockSpec((1, D), const),
            pl.BlockSpec((bb * s_tok, D), const),
            pl.BlockSpec((2, D), const),
            pl.BlockSpec((D, 3 * D), const),
            pl.BlockSpec((1, 3 * D), const),
            pl.BlockSpec((D, D), const),
            pl.BlockSpec((1, D), const),
            pl.BlockSpec((bb * s_tok, D), const),
        ],
        out_specs=(pl.BlockSpec((bb * s_tok, D), lambda i: (i, 0)),
                   pl.BlockSpec((bb, 1, D), lambda i: (i, 0, 0))),
        scratch_shapes=[pltpu.VMEM((bb * s_tok, 3 * D), jnp.bfloat16),
                        pltpu.VMEM((bb * s_tok, D), jnp.bfloat16)],
        compiler_params=pltpu.CompilerParams(
            dimension_semantics=("parallel",),
            vmem_limit_bytes=_VMEM_LIMIT),
    )(xs, dc_w, dc_b, pos_mid, sep_rows, ap["wqkv"], ap["bqkv"],
      ap["wo"], ap["bo"], dpos)


# --------------- kernel B: fused decoder (all layers, one call) -------------

def _decoder_kernel(x_ref, ln1g_ref, ln1b_ref, wqkv_ref, bqkv_ref, wo_ref,
                    bo_ref, ln2g_ref, ln2b_ref, w1_ref, b1_ref, w2_ref, b2_ref,
                    lnfg_ref, lnfb_ref,
                    pm_ref, acc_ref, qkv_ref, ctx_ref,
                    *, num_heads, bb, s_tok):
    layer = pl.program_id(1)

    @pl.when(layer == 0)
    def _init():
        acc_ref[...] = x_ref[...]          # load residual stream into VMEM once

    x = acc_ref[...]                                          # (BB*S, D) f32
    # pre-LN MHSA
    h = _layernorm(x, ln1g_ref[0], ln1b_ref[0])
    qkv_ref[...] = (_mm(h, wqkv_ref[0]) + bqkv_ref[0]).astype(jnp.bfloat16)
    _attend(qkv_ref, ctx_ref, num_heads=num_heads, bb=bb, s_tok=s_tok)
    h = _mm(ctx_ref[...], wo_ref[0]) + bo_ref[0]
    x = x + h                                                  # residual add
    # pre-LN MLP
    h = _layernorm(x, ln2g_ref[0], ln2b_ref[0])
    h = _gelu(_mm(h, w1_ref[0]) + b1_ref[0])
    h = _mm(h, w2_ref[0]) + b2_ref[0]
    x_out = x + h                                              # residual add
    acc_ref[...] = x_out

    @pl.when(layer == pl.num_programs(1) - 1)
    def _final():
        # final LN + token-mean fused in; per-token activations never hit HBM
        hf = _layernorm(x_out, lnfg_ref[...], lnfb_ref[...])
        for b in range(bb):
            pm_ref[b] = jnp.mean(hf[b * s_tok:(b + 1) * s_tok, :],
                                 axis=0, keepdims=True)


def decoder_stack(x, dec, *, num_heads, bb, s_tok):
    BS, D = x.shape
    B = BS // s_tok
    depth = dec["wqkv"].shape[0]
    F = dec["w1"].shape[2]

    lyr2 = lambda i, l: (l, 0, 0)
    const = lambda i, l: (0, 0)
    kernel = functools.partial(_decoder_kernel, num_heads=num_heads,
                               bb=bb, s_tok=s_tok)
    return pl.pallas_call(
        kernel,
        out_shape=jax.ShapeDtypeStruct((B, 1, D), jnp.float32),
        grid=(B // bb, depth),
        in_specs=[
            pl.BlockSpec((bb * s_tok, D), lambda i, l: (i, 0)),
            pl.BlockSpec((1, 1, D), lyr2),        # ln1_g
            pl.BlockSpec((1, 1, D), lyr2),        # ln1_b
            pl.BlockSpec((1, D, 3 * D), lyr2),    # wqkv (bf16, layer-streamed)
            pl.BlockSpec((1, 1, 3 * D), lyr2),    # bqkv
            pl.BlockSpec((1, D, D), lyr2),        # wo
            pl.BlockSpec((1, 1, D), lyr2),        # bo
            pl.BlockSpec((1, 1, D), lyr2),        # ln2_g
            pl.BlockSpec((1, 1, D), lyr2),        # ln2_b
            pl.BlockSpec((1, D, F), lyr2),        # w1
            pl.BlockSpec((1, 1, F), lyr2),        # b1
            pl.BlockSpec((1, F, D), lyr2),        # w2
            pl.BlockSpec((1, 1, D), lyr2),        # b2
            pl.BlockSpec((1, D), const),          # lnf_g
            pl.BlockSpec((1, D), const),          # lnf_b
        ],
        out_specs=pl.BlockSpec((bb, 1, D), lambda i, l: (i, 0, 0)),
        scratch_shapes=[pltpu.VMEM((bb * s_tok, D), jnp.float32),
                        pltpu.VMEM((bb * s_tok, 3 * D), jnp.bfloat16),
                        pltpu.VMEM((bb * s_tok, D), jnp.bfloat16)],
        compiler_params=pltpu.CompilerParams(
            dimension_semantics=("parallel", "arbitrary"),
            vmem_limit_bytes=_VMEM_LIMIT),
    )(x, dec["ln1_g"], dec["ln1_b"], dec["wqkv"], dec["bqkv"], dec["wo"],
      dec["bo"], dec["ln2_g"], dec["ln2_b"], dec["w1"], dec["b1"],
      dec["w2"], dec["b2"], dec["lnf_g"], dec["lnf_b"])


# -------------- kernel C: decode_t out-proj + proj_t MLP + mix --------------

def _tail_kernel(dm_ref, pm_ref, wout_ref, bout_ref,
                 w1_ref, b1_ref, w2_ref, b2_ref, o_ref):
    # token-mean commutes with the per-token output Linear, so the whole
    # batch is a single (B, D)x(D, T) matmul chain here.
    t = _mm(dm_ref[...], wout_ref[...]) + bout_ref[...]     # decode_t out-proj
    t = _gelu(_mm(t, w1_ref[...]) + b1_ref[...])            # proj_t Linear+GELU
    t = _mm(t, w2_ref[...]) + b2_ref[...]                   # proj_t Linear
    o_ref[...] = pm_ref[...] + t                            # mix with ecg mean


def decoder_tail(dec_mean, proj_mean, dec, p):
    B, D = dec_mean.shape
    return pl.pallas_call(
        _tail_kernel,
        out_shape=jax.ShapeDtypeStruct((B, D), jnp.float32),
        compiler_params=pltpu.CompilerParams(vmem_limit_bytes=_VMEM_LIMIT),
    )(dec_mean, proj_mean, dec["wout"], dec["bout"],
      p["pt_w1"], p["pt_b1"], p["pt_w2"], p["pt_b2"])


# ------------------------------ model forward -------------------------------

def _pick_bb(batch, s_tok, max_bb=8):
    """Batch items per grid step: prefer sublane-aligned BB*S and >=2 steps."""
    cands = [bb for bb in range(1, min(batch, max_bb) + 1) if batch % bb == 0]
    aligned = [bb for bb in cands if (bb * s_tok) % 8 == 0]
    if aligned:
        two_step = [bb for bb in aligned if batch // bb >= 2]
        return max(two_step) if two_step else max(aligned)
    return batch   # block == full array is always a legal BlockSpec


def ecgclip_forward(feats, params, *, num_heads=4):
    """ECGCLIP.forward (== forward_feature + Identity head), resnet branch.

    feats: (B, C, L) feature map produced by the ECG ResNet-1D encoder (NCW).
    """
    # TODO(synk): ResNet18/34/50/101 (self.ecg_encoder) is not defined in the
    # provided source; the kernel chain starts from its output feature map.
    B, C, L = feats.shape
    # stride-3 token gather + NCW->tokens, flattened so each grid step feeds
    # a (BB*S, C) slab straight into the downconv matmul.
    xs_tok = feats[:, :, ::3]
    S = xs_tok.shape[2]
    xs = jnp.transpose(xs_tok, (0, 2, 1)).reshape(B * S, C)
    bb = _pick_bb(B, S)

    dec = params["decode_t"]
    proj_emb, proj_mean = attnpool_downconv(
        xs, params["dc_w"], params["dc_b"], params["att_pool"], dec["pos"],
        num_heads=num_heads, bb=bb, s_tok=S)

    # TODO(synk): the reference `Transformer` class definition is not provided;
    # assumed: pre-LN encoder (depth x [MHSA, MLP]), learned pos-emb added to
    # the input, final LN + Linear(width -> out_dim), matching its constructor.
    dec_mean = decoder_stack(proj_emb, dec, num_heads=num_heads, bb=bb, s_tok=S)

    out = decoder_tail(dec_mean.reshape(B, -1), proj_mean.reshape(B, -1),
                       dec, params)
    return out                                              # head = nn.Identity()


# ------------------------------ param init ---------------------------------

def init_params(key, *, c_in, d, s, t_out, mlp_dim, proj_hidden, depth):
    f32, bf16 = jnp.float32, jnp.bfloat16

    def nrm(k, shape, scale=0.02, dtype=f32):
        return (scale * jax.random.normal(k, shape)).astype(dtype)

    keys = iter(jax.random.split(key, 32))
    p = {
        "dc_w": nrm(next(keys), (c_in, d), dtype=bf16),   # Conv1d (D,C,1) transposed
        "dc_b": nrm(next(keys), (1, d)),
        "att_pool": {
            "pos": nrm(next(keys), (s + 2, d), scale=1.0 / d),
            "sep": nrm(next(keys), (1, d)),
            "wqkv": nrm(next(keys), (d, 3 * d), dtype=bf16),  # in_proj_weight.T
            "bqkv": nrm(next(keys), (1, 3 * d)),
            "wo": nrm(next(keys), (d, d), dtype=bf16),        # out_proj.weight.T
            "bo": nrm(next(keys), (1, d)),
        },
        "decode_t": {
            "pos": nrm(next(keys), (s, d)),
            # per-layer weights stacked on a leading layer axis (streamed in kernel B)
            "ln1_g": jnp.ones((depth, 1, d), f32),
            "ln1_b": jnp.zeros((depth, 1, d), f32),
            "wqkv": nrm(next(keys), (depth, d, 3 * d), dtype=bf16),
            "bqkv": nrm(next(keys), (depth, 1, 3 * d)),
            "wo": nrm(next(keys), (depth, d, d), dtype=bf16),
            "bo": nrm(next(keys), (depth, 1, d)),
            "ln2_g": jnp.ones((depth, 1, d), f32),
            "ln2_b": jnp.zeros((depth, 1, d), f32),
            "w1": nrm(next(keys), (depth, d, mlp_dim), dtype=bf16),
            "b1": nrm(next(keys), (depth, 1, mlp_dim)),
            "w2": nrm(next(keys), (depth, mlp_dim, d), dtype=bf16),
            "b2": nrm(next(keys), (depth, 1, d)),
            "lnf_g": jnp.ones((1, d), f32),
            "lnf_b": jnp.zeros((1, d), f32),
            "wout": nrm(next(keys), (d, t_out), dtype=bf16),
            "bout": nrm(next(keys), (1, t_out)),
        },
        "pt_w1": nrm(next(keys), (t_out, proj_hidden), dtype=bf16),
        "pt_b1": nrm(next(keys), (1, proj_hidden)),
        "pt_w2": nrm(next(keys), (proj_hidden, d), dtype=bf16),
        "pt_b2": nrm(next(keys), (1, d)),
    }
    return p


# --------------------------------- main -------------------------------------

if __name__ == "__main__":
    # Small stand-in shapes for the real config
    # (real: C_in=512, proj_out=256, spacial_dim=105, decode_t out_dim=768).
    B, C_IN, L = 2, 64, 24        # L=24 -> stride-3 conv gives S=8 tokens
    D = 32                        # proj_out stand-in (heads=4 -> dh=8)
    T_OUT, MLP, HID, DEPTH = 48, 64, 64, 2

    key = jax.random.PRNGKey(0)
    k_feat, k_par = jax.random.split(key)
    feats = jax.random.normal(k_feat, (B, C_IN, L), dtype=jnp.float32)
    S = len(range(0, L, 3))       # tokens after the stride-3 downconv
    params = init_params(k_par, c_in=C_IN, d=D, s=S, t_out=T_OUT,
                         mlp_dim=MLP, proj_hidden=HID, depth=DEPTH)

    fwd = jax.jit(ecgclip_forward)
    out = jax.block_until_ready(fwd(feats, params))
    assert out.shape == (B, D) and out.dtype == jnp.float32
    print("KERNEL_OK")
</pallas_src>

<mosaic_0001>
module attributes {stable_mosaic.version = 11 : i64} {
  func.func @_tail_kernel(%arg0: memref<2x32xf32, #tpu.memory_space<vmem>>, %arg1: memref<2x32xf32, #tpu.memory_space<vmem>>, %arg2: memref<32x48xbf16, #tpu.memory_space<vmem>>, %arg3: memref<1x48xf32, #tpu.memory_space<vmem>>, %arg4: memref<48x64xbf16, #tpu.memory_space<vmem>>, %arg5: memref<1x64xf32, #tpu.memory_space<vmem>>, %arg6: memref<64x32xbf16, #tpu.memory_space<vmem>>, %arg7: memref<1x32xf32, #tpu.memory_space<vmem>>, %arg8: memref<2x32xf32, #tpu.memory_space<vmem>>) attributes {dimension_semantics = [], scalar_prefetch = 0 : i64, scratch_operands = 0 : i64, tpu.core_type = #tpu.core_type<tc>} {
    %c0 = arith.constant 0 : index
    %c0_0 = arith.constant 0 : index
    %0 = vector.load %arg0[%c0, %c0_0] : memref<2x32xf32, #tpu.memory_space<vmem>>, vector<2x32xf32>
    %c0_1 = arith.constant 0 : index
    %c0_2 = arith.constant 0 : index
    %1 = vector.load %arg2[%c0_1, %c0_2] : memref<32x48xbf16, #tpu.memory_space<vmem>>, vector<32x48xbf16>
    %2 = arith.truncf %0 : vector<2x32xf32> to vector<2x32xbf16>
    %cst = arith.constant dense<0.000000e+00> : vector<2x48xf32>
    %3 = tpu.matmul %2, %1, %cst {dimension_numbers = #tpu.dot_dimension_numbers<[1], [0], [0], [1], [0, 0, 1, 1], [], []>} : vector<2x32xbf16>, vector<32x48xbf16>, vector<2x48xf32> -> vector<2x48xf32>
    %c0_3 = arith.constant 0 : index
    %c0_4 = arith.constant 0 : index
    %4 = vector.load %arg3[%c0_3, %c0_4] : memref<1x48xf32, #tpu.memory_space<vmem>>, vector<1x48xf32>
    %5 = vector.broadcast %4 : vector<1x48xf32> to vector<2x48xf32>
    %6 = arith.addf %3, %5 : vector<2x48xf32>
    %c0_5 = arith.constant 0 : index
    %c0_6 = arith.constant 0 : index
    %7 = vector.load %arg4[%c0_5, %c0_6] : memref<48x64xbf16, #tpu.memory_space<vmem>>, vector<48x64xbf16>
    %8 = arith.truncf %6 : vector<2x48xf32> to vector<2x48xbf16>
    %cst_7 = arith.constant dense<0.000000e+00> : vector<2x64xf32>
    %9 = tpu.matmul %8, %7, %cst_7 {dimension_numbers = #tpu.dot_dimension_numbers<[1], [0], [0], [1], [0, 0, 1, 1], [], []>} : vector<2x48xbf16>, vector<48x64xbf16>, vector<2x64xf32> -> vector<2x64xf32>
    %c0_8 = arith.constant 0 : index
    %c0_9 = arith.constant 0 : index
    %10 = vector.load %arg5[%c0_8, %c0_9] : memref<1x64xf32, #tpu.memory_space<vmem>>, vector<1x64xf32>
    %11 = vector.broadcast %10 : vector<1x64xf32> to vector<2x64xf32>
    %12 = arith.addf %9, %11 : vector<2x64xf32>
    %cst_10 = arith.constant 5.000000e-01 : f32
    %13 = vector.broadcast %cst_10 : f32 to vector<2x64xf32>
    %14 = arith.mulf %13, %12 : vector<2x64xf32>
    %cst_11 = arith.constant 0.707106769 : f32
    %15 = vector.broadcast %cst_11 : f32 to vector<2x64xf32>
    %16 = arith.mulf %12, %15 : vector<2x64xf32>
    %17 = math.erf %16 : vector<2x64xf32>
    %cst_12 = arith.constant 1.000000e+00 : f32
    %18 = vector.broadcast %cst_12 : f32 to vector<2x64xf32>
    %19 = arith.addf %18, %17 : vector<2x64xf32>
    %20 = arith.mulf %14, %19 : vector<2x64xf32>
    %c0_13 = arith.constant 0 : index
    %c0_14 = arith.constant 0 : index
    %21 = vector.load %arg6[%c0_13, %c0_14] : memref<64x32xbf16, #tpu.memory_space<vmem>>, vector<64x32xbf16>
    %22 = arith.truncf %20 : vector<2x64xf32> to vector<2x64xbf16>
    %cst_15 = arith.constant dense<0.000000e+00> : vector<2x32xf32>
    %23 = tpu.matmul %22, %21, %cst_15 {dimension_numbers = #tpu.dot_dimension_numbers<[1], [0], [0], [1], [0, 0, 1, 1], [], []>} : vector<2x64xbf16>, vector<64x32xbf16>, vector<2x32xf32> -> vector<2x32xf32>
    %c0_16 = arith.constant 0 : index
    %c0_17 = arith.constant 0 : index
    %24 = vector.load %arg7[%c0_16, %c0_17] : memref<1x32xf32, #tpu.memory_space<vmem>>, vector<1x32xf32>
    %25 = vector.broadcast %24 : vector<1x32xf32> to vector<2x32xf32>
    %26 = arith.addf %23, %25 : vector<2x32xf32>
    %c0_18 = arith.constant 0 : index
    %c0_19 = arith.constant 0 : index
    %27 = vector.load %arg1[%c0_18, %c0_19] : memref<2x32xf32, #tpu.memory_space<vmem>>, vector<2x32xf32>
    %28 = arith.addf %27, %26 : vector<2x32xf32>
    %c0_20 = arith.constant 0 : index
    %c0_21 = arith.constant 0 : index
    %29 = vector.load %arg8[%c0_20, %c0_21] : memref<2x32xf32, #tpu.memory_space<vmem>>, vector<2x32xf32>
    tpu.vector_store %arg8[%c0_20, %c0_21], %28 {strides = array<i32>} : memref<2x32xf32, #tpu.memory_space<vmem>>, vector<2x32xf32>,
    return
  }
}

module attributes {stable_mosaic.version = 11 : i64} {
  func.func @_attnpool_kernel(%arg0: i32, %arg1: memref<8x64xf32, #tpu.memory_space<vmem>>, %arg2: memref<64x32xbf16, #tpu.memory_space<vmem>>, %arg3: memref<1x32xf32, #tpu.memory_space<vmem>>, %arg4: memref<8x32xf32, #tpu.memory_space<vmem>>, %arg5: memref<2x32xf32, #tpu.memory_space<vmem>>, %arg6: memref<32x96xbf16, #tpu.memory_space<vmem>>, %arg7: memref<1x96xf32, #tpu.memory_space<vmem>>, %arg8: memref<32x32xbf16, #tpu.memory_space<vmem>>, %arg9: memref<1x32xf32, #tpu.memory_space<vmem>>, %arg10: memref<8x32xf32, #tpu.memory_space<vmem>>, %arg11: memref<8x32xf32, #tpu.memory_space<vmem>>, %arg12: memref<1x1x32xf32, #tpu.memory_space<vmem>>, %arg13: memref<8x96xbf16, #tpu.memory_space<vmem>>, %arg14: memref<8x32xbf16, #tpu.memory_space<vmem>>) attributes {dimension_semantics = [#tpu.dimension_semantics<parallel>], iteration_bounds = array<i64: 2>, scalar_prefetch = 0 : i64, scratch_operands = 2 : i64, tpu.core_type = #tpu.core_type<tc>, window_params = [{transform_indices = @transform_0, window_bounds = array<i64: 8, 64>}, {pipeline_mode = #tpu.pipeline_mode<synchronous>, transform_indices = @transform_1, window_bounds = array<i64: 64, 32>}, {pipeline_mode = #tpu.pipeline_mode<synchronous>, transform_indices = @transform_2, window_bounds = array<i64: 1, 32>}, {pipeline_mode = #tpu.pipeline_mode<synchronous>, transform_indices = @transform_3, window_bounds = array<i64: 8, 32>}, {pipeline_mode = #tpu.pipeline_mode<synchronous>, transform_indices = @transform_4, window_bounds = array<i64: 2, 32>}, {pipeline_mode = #tpu.pipeline_mode<synchronous>, transform_indices = @transform_5, window_bounds = array<i64: 32, 96>}, {pipeline_mode = #tpu.pipeline_mode<synchronous>, transform_indices = @transform_6, window_bounds = array<i64: 1, 96>}, {pipeline_mode = #tpu.pipeline_mode<synchronous>, transform_indices = @transform_7, window_bounds = array<i64: 32, 32>}, {pipeline_mode = #tpu.pipeline_mode<synchronous>, transform_indices = @transform_8, window_bounds = array<i64: 1, 32>}, {pipeline_mode = #tpu.pipeline_mode<synchronous>, transform_indices = @transform_9, window_bounds = array<i64: 8, 32>}, {transform_indices = @transform_10, window_bounds = array<i64: 8, 32>}, {transform_indices = @transform_11, window_bounds = array<i64: 1, 1, 32>}]} {
    %c0 = arith.constant 0 : index
    %c0_0 = arith.constant 0 : index
    %0 = vector.load %arg1[%c0, %c0_0] : memref<8x64xf32, #tpu.memory_space<vmem>>, vector<8x64xf32>
    %c0_1 = arith.constant 0 : index
    %c0_2 = arith.constant 0 : index
    %1 = vector.load %arg2[%c0_1, %c0_2] : memref<64x32xbf16, #tpu.memory_space<vmem>>, vector<64x32xbf16>
    %2 = arith.truncf %0 : vector<8x64xf32> to vector<8x64xbf16>
    %cst = arith.constant dense<0.000000e+00> : vector<8x32xf32>
    %3 = tpu.matmul %2, %1, %cst {dimension_numbers = #tpu.dot_dimension_numbers<[1], [0], [0], [1], [0, 0, 1, 1], [], []>} : vector<8x64xbf16>, vector<64x32xbf16>, vector<8x32xf32> -> vector<8x32xf32>
    %c0_3 = arith.constant 0 : index
    %c0_4 = arith.constant 0 : index
    %4 = vector.load %arg3[%c0_3, %c0_4] : memref<1x32xf32, #tpu.memory_space<vmem>>, vector<1x32xf32>
    %5 = vector.broadcast %4 : vector<1x32xf32> to vector<8x32xf32>
    %6 = arith.addf %3, %5 : vector<8x32xf32>
    %c0_5 = arith.constant 0 : index
    %c0_6 = arith.constant 0 : index
    %7 = vector.load %arg4[%c0_5, %c0_6] : memref<8x32xf32, #tpu.memory_space<vmem>>, vector<8x32xf32>
    %8 = arith.addf %6, %7 : vector<8x32xf32>
    %c0_7 = arith.constant 0 : index
    %c0_8 = arith.constant 0 : index
    %9 = vector.load %arg6[%c0_7, %c0_8] : memref<32x96xbf16, #tpu.memory_space<vmem>>, vector<32x96xbf16>
    %10 = arith.truncf %8 : vector<8x32xf32> to vector<8x32xbf16>
    %cst_9 = arith.constant dense<0.000000e+00> : vector<8x96xf32>
    %11 = tpu.matmul %10, %9, %cst_9 {dimension_numbers = #tpu.dot_dimension_numbers<[1], [0], [0], [1], [0, 0, 1, 1], [], []>} : vector<8x32xbf16>, vector<32x96xbf16>, vector<8x96xf32> -> vector<8x96xf32>
    %c0_10 = arith.constant 0 : index
    %c0_11 = arith.constant 0 : index
    %12 = vector.load %arg7[%c0_10, %c0_11] : memref<1x96xf32, #tpu.memory_space<vmem>>, vector<1x96xf32>
    %13 = vector.broadcast %12 : vector<1x96xf32> to vector<8x96xf32>
    %14 = arith.addf %11, %13 : vector<8x96xf32>
    %15 = arith.truncf %14 : vector<8x96xf32> to vector<8x96xbf16>
    %c0_12 = arith.constant 0 : index
    %c0_13 = arith.constant 0 : index
    %16 = vector.load %arg13[%c0_12, %c0_13] : memref<8x96xbf16, #tpu.memory_space<vmem>>, vector<8x96xbf16>
    tpu.vector_store %arg13[%c0_12, %c0_13], %15 {strides = array<i32>} : memref<8x96xbf16, #tpu.memory_space<vmem>>, vector<8x96xbf16>,
    %c0_14 = arith.constant 0 : index
    %c0_15 = arith.constant 0 : index
    %17 = vector.load %arg5[%c0_14, %c0_15] : memref<2x32xf32, #tpu.memory_space<vmem>>, vector<2x32xf32>
    %c0_16 = arith.constant 0 : index
    %c0_17 = arith.constant 0 : index
    %18 = vector.load %arg6[%c0_16, %c0_17] : memref<32x96xbf16, #tpu.memory_space<vmem>>, vector<32x96xbf16>
    %19 = arith.truncf %17 : vector<2x32xf32> to vector<2x32xbf16>
    %cst_18 = arith.constant dense<0.000000e+00> : vector<2x96xf32>
    %20 = tpu.matmul %19, %18, %cst_18 {dimension_numbers = #tpu.dot_dimension_numbers<[1], [0], [0], [1], [0, 0, 1, 1], [], []>} : vector<2x32xbf16>, vector<32x96xbf16>, vector<2x96xf32> -> vector<2x96xf32>
    %c0_19 = arith.constant 0 : index
    %c0_20 = arith.constant 0 : index
    %21 = vector.load %arg7[%c0_19, %c0_20] : memref<1x96xf32, #tpu.memory_space<vmem>>, vector<1x96xf32>
    %22 = vector.broadcast %21 : vector<1x96xf32> to vector<2x96xf32>
    %23 = arith.addf %20, %22 : vector<2x96xf32>
    %24 = arith.truncf %23 : vector<2x96xf32> to vector<2x96xbf16>
    %c0_21 = arith.constant 0 : index
    %c0_22 = arith.constant 0 : index
    %25 = vector.load %arg13[%c0_21, %c0_22] : memref<8x96xbf16, #tpu.memory_space<vmem>>, vector<8x8xbf16>
    %c0_23 = arith.constant 0 : index
    %c32 = arith.constant 32 : index
    %26 = vector.load %arg13[%c0_23, %c32] : memref<8x96xbf16, #tpu.memory_space<vmem>>, vector<8x8xbf16>
    %c0_24 = arith.constant 0 : index
    %c64 = arith.constant 64 : index
    %27 = vector.load %arg13[%c0_24, %c64] : memref<8x96xbf16, #tpu.memory_space<vmem>>, vector<8x8xbf16>
    %cst_25 = arith.constant dense<0.000000e+00> : vector<8x8xf32>
    %28 = tpu.matmul %25, %26, %cst_25 {dimension_numbers = #tpu.dot_dimension_numbers<[1], [1], [0], [0], [0, 0, 1, 0], [], []>} : vector<8x8xbf16>, vector<8x8xbf16>, vector<8x8xf32> -> vector<8x8xf32>
    %cst_26 = arith.constant 0.353553385 : f32
    %29 = vector.broadcast %cst_26 : f32 to vector<8x8xf32>
    %30 = arith.mulf %28, %29 : vector<8x8xf32>
    %cst_27 = arith.constant dense<0xFF800000> : vector<8xf32>
    %31 = vector.multi_reduction <maximumf>, %30, %cst_27 [1] : vector<8x8xf32> to vector<8xf32>
    %32 = vector.shape_cast %31 : vector<8xf32> to vector<8x1xf32>
    %33 = arith.extf %25 : vector<8x8xbf16> to vector<8x8xf32>
    %34 = vector.extract_strided_slice %24 {offsets = [0, 32], sizes = [1, 8], strides = [1, 1]} : vector<2x96xbf16> to vector<1x8xbf16>
    %35 = arith.extf %34 : vector<1x8xbf16> to vector<1x8xf32>
    %36 = vector.broadcast %35 : vector<1x8xf32> to vector<8x8xf32>
    %37 = arith.mulf %33, %36 : vector<8x8xf32>
    %cst_28 = arith.constant dense<0.000000e+00> : vector<8xf32>
    %38 = vector.multi_reduction <add>, %37, %cst_28 [1] : vector<8x8xf32> to vector<8xf32>
    %39 = vector.shape_cast %38 : vector<8xf32> to vector<8x1xf32>
    %cst_29 = arith.constant 0.353553385 : f32
    %40 = vector.broadcast %cst_29 : f32 to vector<8x1xf32>
    %41 = arith.mulf %39, %40 : vector<8x1xf32>
    %42 = arith.maximumf %32, %41 : vector<8x1xf32>
    %43 = vector.extract_strided_slice %24 {offsets = [1, 32], sizes = [1, 8], strides = [1, 1]} : vector<2x96xbf16> to vector<1x8xbf16>
    %44 = arith.extf %43 : vector<1x8xbf16> to vector<1x8xf32>
    %45 = vector.broadcast %44 : vector<1x8xf32> to vector<8x8xf32>
    %46 = arith.mulf %33, %45 : vector<8x8xf32>
    %cst_30 = arith.constant dense<0.000000e+00> : vector<8xf32>
    %47 = vector.multi_reduction <add>, %46, %cst_30 [1] : vector<8x8xf32> to vector<8xf32>
    %48 = vector.shape_cast %47 : vector<8xf32> to vector<8x1xf32>
    %cst_31 = arith.constant 0.353553385 : f32
    %49 = vector.broadcast %cst_31 : f32 to vector<8x1xf32>
    %50 = arith.mulf %48, %49 : vector<8x1xf32>
    %51 = arith.maximumf %42, %50 : vector<8x1xf32>
    %52 = vector.broadcast %51 : vector<8x1xf32> to vector<8x8xf32>
    %53 = arith.subf %30, %52 : vector<8x8xf32>
    %54 = math.exp %53 : vector<8x8xf32>
    %cst_32 = arith.constant dense<0.000000e+00> : vector<8xf32>
    %55 = vector.multi_reduction <add>, %54, %cst_32 [1] : vector<8x8xf32> to vector<8xf32>
    %56 = vector.shape_cast %55 : vector<8xf32> to vector<8x1xf32>
    %57 = arith.truncf %54 : vector<8x8xf32> to vector<8x8xbf16>
    %cst_33 = arith.constant dense<0.000000e+00> : vector<8x8xf32>
    %58 = tpu.matmul %57, %27, %cst_33 {dimension_numbers = #tpu.dot_dimension_numbers<[1], [0], [0], [1], [0, 0, 1, 1], [], []>} : vector<8x8xbf16>, vector<8x8xbf16>, vector<8x8xf32> -> vector<8x8xf32>
    %59 = arith.subf %41, %51 : vector<8x1xf32>
    %60 = math.exp %59 : vector<8x1xf32>
    %61 = arith.addf %56, %60 : vector<8x1xf32>
    %62 = vector.extract_strided_slice %24 {offsets = [0, 64], sizes = [1, 8], strides = [1, 1]} : vector<2x96xbf16> to vector<1x8xbf16>
    %63 = arith.extf %62 : vector<1x8xbf16> to vector<1x8xf32>
    %64 = vector.broadcast %60 : vector<8x1xf32> to vector<8x8xf32>
    %65 = vector.broadcast %63 : vector<1x8xf32> to vector<8x8xf32>
    %66 = arith.mulf %64, %65 : vector<8x8xf32>
    %67 = arith.addf %58, %66 : vector<8x8xf32>
    %68 = arith.subf %50, %51 : vector<8x1xf32>
    %69 = math.exp %68 : vector<8x1xf32>
    %70 = arith.addf %61, %69 : vector<8x1xf32>
    %71 = vector.extract_strided_slice %24 {offsets = [1, 64], sizes = [1, 8], strides = [1, 1]} : vector<2x96xbf16> to vector<1x8xbf16>
    %72 = arith.extf %71 : vector<1x8xbf16> to vector<1x8xf32>
    %73 = vector.broadcast %69 : vector<8x1xf32> to vector<8x8xf32>
    %74 = vector.broadcast %72 : vector<1x8xf32> to vector<8x8xf32>
    %75 = arith.mulf %73, %74 : vector<8x8xf32>
    %76 = arith.addf %67, %75 : vector<8x8xf32>
    %77 = tpu.reciprocal %70 {approx = true} : vector<8x1xf32> -> vector<8x1xf32>
    %78 = vector.broadcast %77 : vector<8x1xf32> to vector<8x8xf32>
    %79 = arith.mulf %76, %78 : vector<8x8xf32>
    %80 = arith.truncf %79 : vector<8x8xf32> to vector<8x8xbf16>
    %c0_34 = arith.constant 0 : index
    %c8 = arith.constant 8 : index
    %81 = vector.load %arg13[%c0_34, %c8] : memref<8x96xbf16, #tpu.memory_space<vmem>>, vector<8x8xbf16>
    %c0_35 = arith.constant 0 : index
    %c40 = arith.constant 40 : index
    %82 = vector.load %arg13[%c0_35, %c40] : memref<8x96xbf16, #tpu.memory_space<vmem>>, vector<8x8xbf16>
    %c0_36 = arith.constant 0 : index
    %c72 = arith.constant 72 : index
    %83 = vector.load %arg13[%c0_36, %c72] : memref<8x96xbf16, #tpu.memory_space<vmem>>, vector<8x8xbf16>
    %cst_37 = arith.constant dense<0.000000e+00> : vector<8x8xf32>
    %84 = tpu.matmul %81, %82, %cst_37 {dimension_numbers = #tpu.dot_dimension_numbers<[1], [1], [0], [0], [0, 0, 1, 0], [], []>} : vector<8x8xbf16>, vector<8x8xbf16>, vector<8x8xf32> -> vector<8x8xf32>
    %cst_38 = arith.constant 0.353553385 : f32
    %85 = vector.broadcast %cst_38 : f32 to vector<8x8xf32>
    %86 = arith.mulf %84, %85 : vector<8x8xf32>
    %cst_39 = arith.constant dense<0xFF800000> : vector<8xf32>
    %87 = vector.multi_reduction <maximumf>, %86, %cst_39 [1] : vector<8x8xf32> to vector<8xf32>
    %88 = vector.shape_cast %87 : vector<8xf32> to vector<8x1xf32>
    %89 = arith.extf %81 : vector<8x8xbf16> to vector<8x8xf32>
    %90 = vector.extract_strided_slice %24 {offsets = [0, 40], sizes = [1, 8], strides = [1, 1]} : vector<2x96xbf16> to vector<1x8xbf16>
    %91 = arith.extf %90 : vector<1x8xbf16> to vector<1x8xf32>
    %92 = vector.broadcast %91 : vector<1x8xf32> to vector<8x8xf32>
    %93 = arith.mulf %89, %92 : vector<8x8xf32>
    %cst_40 = arith.constant dense<0.000000e+00> : vector<8xf32>
    %94 = vector.multi_reduction <add>, %93, %cst_40 [1] : vector<8x8xf32> to vector<8xf32>
    %95 = vector.shape_cast %94 : vector<8xf32> to vector<8x1xf32>
    %cst_41 = arith.constant 0.353553385 : f32
    %96 = vector.broadcast %cst_41 : f32 to vector<8x1xf32>
    %97 = arith.mulf %95, %96 : vector<8x1xf32>
    %98 = arith.maximumf %88, %97 : vector<8x1xf32>
    %99 = vector.extract_strided_slice %24 {offsets = [1, 40], sizes = [1, 8], strides = [1, 1]} : vector<2x96xbf16> to vector<1x8xbf16>
    %100 = arith.extf %99 : vector<1x8xbf16> to vector<1x8xf32>
    %101 = vector.broadcast %100 : vector<1x8xf32> to vector<8x8xf32>
    %102 = arith.mulf %89, %101 : vector<8x8xf32>
    %cst_42 = arith.constant dense<0.000000e+00> : vector<8xf32>
    %103 = vector.multi_reduction <add>, %102, %cst_42 [1] : vector<8x8xf32> to vector<8xf32>
    %104 = vector.shape_cast %103 : vector<8xf32> to vector<8x1xf32>
    %cst_43 = arith.constant 0.353553385 : f32
    %105 = vector.broadcast %cst_43 : f32 to vector<8x1xf32>
    %106 = arith.mulf %104, %105 : vector<8x1xf32>
    %107 = arith.maximumf %98, %106 : vector<8x1xf32>
    %108 = vector.broadcast %107 : vector<8x1xf32> to vector<8x8xf32>
    %109 = arith.subf %86, %108 : vector<8x8xf32>
    %110 = math.exp %109 : vector<8x8xf32>
    %cst_44 = arith.constant dense<0.000000e+00> : vector<8xf32>
    %111 = vector.multi_reduction <add>, %110, %cst_44 [1] : vector<8x8xf32> to vector<8xf32>
    %112 = vector.shape_cast %111 : vector<8xf32> to vector<8x1xf32>
    %113 = arith.truncf %110 : vector<8x8xf32> to vector<8x8xbf16>
    %cst_45 = arith.constant dense<0.000000e+00> : vector<8x8xf32>
    %114 = tpu.matmul %113, %83, %cst_45 {dimension_numbers = #tpu.dot_dimension_numbers<[1], [0], [0], [1], [0, 0, 1, 1], [], []>} : vector<8x8xbf16>, vector<8x8xbf16>, vector<8x8xf32> -> vector<8x8xf32>
    %115 = arith.subf %97, %107 : vector<8x1xf32>
    %116 = math.exp %115 : vector<8x1xf32>
    %117 = arith.addf %112, %116 : vector<8x1xf32>
    %118 = vector.extract_strided_slice %24 {offsets = [0, 72], sizes = [1, 8], strides = [1, 1]} : vector<2x96xbf16> to vector<1x8xbf16>
    %119 = arith.extf %118 : vector<1x8xbf16> to vector<1x8xf32>
    %120 = vector.broadcast %116 : vector<8x1xf32> to vector<8x8xf32>
    %121 = vector.broadcast %119 : vector<1x8xf32> to vector<8x8xf32>
    %122 = arith.mulf %120, %121 : vector<8x8xf32>
    %123 = arith.addf %114, %122 : vector<8x8xf32>
    %124 = arith.subf %106, %107 : vector<8x1xf32>
    %125 = math.exp %124 : vector<8x1xf32>
    %126 = arith.addf %117, %125 : vector<8x1xf32>
    %127 = vector.extract_strided_slice %24 {offsets = [1, 72], sizes = [1, 8], strides = [1, 1]} : vector<2x96xbf16> to vector<1x8xbf16>
    %128 = arith.extf %127 : vector<1x8xbf16> to vector<1x8xf32>
    %129 = vector.broadcast %125 : vector<8x1xf32> to vector<8x8xf32>
    %130 = vector.broadcast %128 : vector<1x8xf32> to vector<8x8xf32>
    %131 = arith.mulf %129, %130 : vector<8x8xf32>
    %132 = arith.addf %123, %131 : vector<8x8xf32>
    %133 = tpu.reciprocal %126 {approx = true} : vector<8x1xf32> -> vector<8x1xf32>
    %134 = vector.broadcast %133 : vector<8x1xf32> to vector<8x8xf32>
    %135 = arith.mulf %132, %134 : vector<8x8xf32>
    %136 = arith.truncf %135 : vector<8x8xf32> to vector<8x8xbf16>
    %c0_46 = arith.constant 0 : index
    %c16 = arith.constant 16 : index
    %137 = vector.load %arg13[%c0_46, %c16] : memref<8x96xbf16, #tpu.memory_space<vmem>>, vector<8x8xbf16>
    %c0_47 = arith.constant 0 : index
    %c48 = arith.constant 48 : index
    %138 = vector.load %arg13[%c0_47, %c48] : memref<8x96xbf16, #tpu.memory_space<vmem>>, vector<8x8xbf16>
    %c0_48 = arith.constant 0 : index
    %c80 = arith.constant 80 : index
    %139 = vector.load %arg13[%c0_48, %c80] : memref<8x96xbf16, #tpu.memory_space<vmem>>, vector<8x8xbf16>
    %cst_49 = arith.constant dense<0.000000e+00> : vector<8x8xf32>
    %140 = tpu.matmul %137, %138, %cst_49 {dimension_numbers = #tpu.dot_dimension_numbers<[1], [1], [0], [0], [0, 0, 1, 0], [], []>} : vector<8x8xbf16>, vector<8x8xbf16>, vector<8x8xf32> -> vector<8x8xf32>
    %cst_50 = arith.constant 0.353553385 : f32
    %141 = vector.broadcast %cst_50 : f32 to vector<8x8xf32>
    %142 = arith.mulf %140, %141 : vector<8x8xf32>
    %cst_51 = arith.constant dense<0xFF800000> : vector<8xf32>
    %143 = vector.multi_reduction <maximumf>, %142, %cst_51 [1] : vector<8x8xf32> to vector<8xf32>
    %144 = vector.shape_cast %143 : vector<8xf32> to vector<8x1xf32>
    %145 = arith.extf %137 : vector<8x8xbf16> to vector<8x8xf32>
    %146 = vector.extract_strided_slice %24 {offsets = [0, 48], sizes = [1, 8], strides = [1, 1]} : vector<2x96xbf16> to vector<1x8xbf16>
    %147 = arith.extf %146 : vector<1x8xbf16> to vector<1x8xf32>
    %148 = vector.broadcast %147 : vector<1x8xf32> to vector<8x8xf32>
    %149 = arith.mulf %145, %148 : vector<8x8xf32>
    %cst_52 = arith.constant dense<0.000000e+00> : vector<8xf32>
    %150 = vector.multi_reduction <add>, %149, %cst_52 [1] : vector<8x8xf32> to vector<8xf32>
    %151 = vector.shape_cast %150 : vector<8xf32> to vector<8x1xf32>
    %cst_53 = arith.constant 0.353553385 : f32
    %152 = vector.broadcast %cst_53 : f32 to vector<8x1xf32>
    %153 = arith.mulf %151, %152 : vector<8x1xf32>
    %154 = arith.maximumf %144, %153 : vector<8x1xf32>
    %155 = vector.extract_strided_slice %24 {offsets = [1, 48], sizes = [1, 8], strides = [1, 1]} : vector<2x96xbf16> to vector<1x8xbf16>
    %156 = arith.extf %155 : vector<1x8xbf16> to vector<1x8xf32>
    %157 = vector.broadcast %156 : vector<1x8xf32> to vector<8x8xf32>
    %158 = arith.mulf %145, %157 : vector<8x8xf32>
    %cst_54 = arith.constant dense<0.000000e+00> : vector<8xf32>
    %159 = vector.multi_reduction <add>, %158, %cst_54 [1] : vector<8x8xf32> to vector<8xf32>
    %160 = vector.shape_cast %159 : vector<8xf32> to vector<8x1xf32>
    %cst_55 = arith.constant 0.353553385 : f32
    %161 = vector.broadcast %cst_55 : f32 to vector<8x1xf32>
    %162 = arith.mulf %160, %161 : vector<8x1xf32>
    %163 = arith.maximumf %154, %162 : vector<8x1xf32>
    %164 = vector.broadcast %163 : vector<8x1xf32> to vector<8x8xf32>
    %165 = arith.subf %142, %164 : vector<8x8xf32>
    %166 = math.exp %165 : vector<8x8xf32>
    %cst_56 = arith.constant dense<0.000000e+00> : vector<8xf32>
    %167 = vector.multi_reduction <add>, %166, %cst_56 [1] : vector<8x8xf32> to vector<8xf32>
    %168 = vector.shape_cast %167 : vector<8xf32> to vector<8x1xf32>
    %169 = arith.truncf %166 : vector<8x8xf32> to vector<8x8xbf16>
    %cst_57 = arith.constant dense<0.000000e+00> : vector<8x8xf32>
    %170 = tpu.matmul %169, %139, %cst_57 {dimension_numbers = #tpu.dot_dimension_numbers<[1], [0], [0], [1], [0, 0, 1, 1], [], []>} : vector<8x8xbf16>, vector<8x8xbf16>, vector<8x8xf32> -> vector<8x8xf32>
    %171 = arith.subf %153, %163 : vector<8x1xf32>
    %172 = math.exp %171 : vector<8x1xf32>
    %173 = arith.addf %168, %172 : vector<8x1xf32>
    %174 = vector.extract_strided_slice %24 {offsets = [0, 80], sizes = [1, 8], strides = [1, 1]} : vector<2x96xbf16> to vector<1x8xbf16>
    %175 = arith.extf %174 : vector<1x8xbf16> to vector<1x8xf32>
    %176 = vector.broadcast %172 : vector<8x1xf32> to vector<8x8xf32>
    %177 = vector.broadcast %175 : vector<1x8xf32> to vector<8x8xf32>
    %178 = arith.mulf %176, %177 : vector<8x8xf32>
    %179 = arith.addf %170, %178 : vector<8x8xf32>
    %180 = arith.subf %162, %163 : vector<8x1xf32>
    %181 = math.exp %180 : vector<8x1xf32>
    %182 = arith.addf %173, %181 : vector<8x1xf32>
    %183 = vector.extract_strided_slice %24 {offsets = [1, 80], sizes = [1, 8], strides = [1, 1]} : vector<2x96xbf16> to vector<1x8xbf16>
    %184 = arith.extf %183 : vector<1x8xbf16> to vector<1x8xf32>
    %185 = vector.broadcast %181 : vector<8x1xf32> to vector<8x8xf32>
    %186 = vector.broadcast %184 : vector<1x8xf32> to vector<8x8xf32>
    %187 = arith.mulf %185, %186 : vector<8x8xf32>
    %188 = arith.addf %179, %187 : vector<8x8xf32>
    %189 = tpu.reciprocal %182 {approx = true} : vector<8x1xf32> -> vector<8x1xf32>
    %190 = vector.broadcast %189 : vector<8x1xf32> to vector<8x8xf32>
    %191 = arith.mulf %188, %190 : vector<8x8xf32>
    %192 = arith.truncf %191 : vector<8x8xf32> to vector<8x8xbf16>
    %c0_58 = arith.constant 0 : index
    %c24 = arith.constant 24 : index
    %193 = vector.load %arg13[%c0_58, %c24] : memref<8x96xbf16, #tpu.memory_space<vmem>>, vector<8x8xbf16>
    %c0_59 = arith.constant 0 : index
    %c56 = arith.constant 56 : index
    %194 = vector.load %arg13[%c0_59, %c56] : memref<8x96xbf16, #tpu.memory_space<vmem>>, vector<8x8xbf16>
    %c0_60 = arith.constant 0 : index
    %c88 = arith.constant 88 : index
    %195 = vector.load %arg13[%c0_60, %c88] : memref<8x96xbf16, #tpu.memory_space<vmem>>, vector<8x8xbf16>
    %cst_61 = arith.constant dense<0.000000e+00> : vector<8x8xf32>
    %196 = tpu.matmul %193, %194, %cst_61 {dimension_numbers = #tpu.dot_dimension_numbers<[1], [1], [0], [0], [0, 0, 1, 0], [], []>} : vector<8x8xbf16>, vector<8x8xbf16>, vector<8x8xf32> -> vector<8x8xf32>
    %cst_62 = arith.constant 0.353553385 : f32
    %197 = vector.broadcast %cst_62 : f32 to vector<8x8xf32>
    %198 = arith.mulf %196, %197 : vector<8x8xf32>
    %cst_63 = arith.constant dense<0xFF800000> : vector<8xf32>
    %199 = vector.multi_reduction <maximumf>, %198, %cst_63 [1] : vector<8x8xf32> to vector<8xf32>
    %200 = vector.shape_cast %199 : vector<8xf32> to vector<8x1xf32>
    %201 = arith.extf %193 : vector<8x8xbf16> to vector<8x8xf32>
    %202 = vector.extract_strided_slice %24 {offsets = [0, 56], sizes = [1, 8], strides = [1, 1]} : vector<2x96xbf16> to vector<1x8xbf16>
    %203 = arith.extf %202 : vector<1x8xbf16> to vector<1x8xf32>
    %204 = vector.broadcast %203 : vector<1x8xf32> to vector<8x8xf32>
    %205 = arith.mulf %201, %204 : vector<8x8xf32>
    %cst_64 = arith.constant dense<0.000000e+00> : vector<8xf32>
    %206 = vector.multi_reduction <add>, %205, %cst_64 [1] : vector<8x8xf32> to vector<8xf32>
    %207 = vector.shape_cast %206 : vector<8xf32> to vector<8x1xf32>
    %cst_65 = arith.constant 0.353553385 : f32
    %208 = vector.broadcast %cst_65 : f32 to vector<8x1xf32>
    %209 = arith.mulf %207, %208 : vector<8x1xf32>
    %210 = arith.maximumf %200, %209 : vector<8x1xf32>
    %211 = vector.extract_strided_slice %24 {offsets = [1, 56], sizes = [1, 8], strides = [1, 1]} : vector<2x96xbf16> to vector<1x8xbf16>
    %212 = arith.extf %211 : vector<1x8xbf16> to vector<1x8xf32>
    %213 = vector.broadcast %212 : vector<1x8xf32> to vector<8x8xf32>
    %214 = arith.mulf %201, %213 : vector<8x8xf32>
    %cst_66 = arith.constant dense<0.000000e+00> : vector<8xf32>
    %215 = vector.multi_reduction <add>, %214, %cst_66 [1] : vector<8x8xf32> to vector<8xf32>
    %216 = vector.shape_cast %215 : vector<8xf32> to vector<8x1xf32>
    %cst_67 = arith.constant 0.353553385 : f32
    %217 = vector.broadcast %cst_67 : f32 to vector<8x1xf32>
    %218 = arith.mulf %216, %217 : vector<8x1xf32>
    %219 = arith.maximumf %210, %218 : vector<8x1xf32>
    %220 = vector.broadcast %219 : vector<8x1xf32> to vector<8x8xf32>
    %221 = arith.subf %198, %220 : vector<8x8xf32>
    %222 = math.exp %221 : vector<8x8xf32>
    %cst_68 = arith.constant dense<0.000000e+00> : vector<8xf32>
    %223 = vector.multi_reduction <add>, %222, %cst_68 [1] : vector<8x8xf32> to vector<8xf32>
    %224 = vector.shape_cast %223 : vector<8xf32> to vector<8x1xf32>
    %225 = arith.truncf %222 : vector<8x8xf32> to vector<8x8xbf16>
    %cst_69 = arith.constant dense<0.000000e+00> : vector<8x8xf32>
    %226 = tpu.matmul %225, %195, %cst_69 {dimension_numbers = #tpu.dot_dimension_numbers<[1], [0], [0], [1], [0, 0, 1, 1], [], []>} : vector<8x8xbf16>, vector<8x8xbf16>, vector<8x8xf32> -> vector<8x8xf32>
    %227 = arith.subf %209, %219 : vector<8x1xf32>
    %228 = math.exp %227 : vector<8x1xf32>
    %229 = arith.addf %224, %228 : vector<8x1xf32>
    %230 = vector.extract_strided_slice %24 {offsets = [0, 88], sizes = [1, 8], strides = [1, 1]} : vector<2x96xbf16> to vector<1x8xbf16>
    %231 = arith.extf %230 : vector<1x8xbf16> to vector<1x8xf32>
    %232 = vector.broadcast %228 : vector<8x1xf32> to vector<8x8xf32>
    %233 = vector.broadcast %231 : vector<1x8xf32> to vector<8x8xf32>
    %234 = arith.mulf %232, %233 : vector<8x8xf32>
    %235 = arith.addf %226, %234 : vector<8x8xf32>
    %236 = arith.subf %218, %219 : vector<8x1xf32>
    %237 = math.exp %236 : vector<8x1xf32>
    %238 = arith.addf %229, %237 : vector<8x1xf32>
    %239 = vector.extract_strided_slice %24 {offsets = [1, 88], sizes = [1, 8], strides = [1, 1]} : vector<2x96xbf16> to vector<1x8xbf16>
    %240 = arith.extf %239 : vector<1x8xbf16> to vector<1x8xf32>
    %241 = vector.broadcast %237 : vector<8x1xf32> to vector<8x8xf32>
    %242 = vector.broadcast %240 : vector<1x8xf32> to vector<8x8xf32>
    %243 = arith.mulf %241, %242 : vector<8x8xf32>
    %244 = arith.addf %235, %243 : vector<8x8xf32>
    %245 = tpu.reciprocal %238 {approx = true} : vector<8x1xf32> -> vector<8x1xf32>
    %246 = vector.broadcast %245 : vector<8x1xf32> to vector<8x8xf32>
    %247 = arith.mulf %244, %246 : vector<8x8xf32>
    %248 = arith.truncf %247 : vector<8x8xf32> to vector<8x8xbf16>
    %249 = tpu.concatenate %80, %136, %192, %248 in 1 : vector<8x8xbf16>, vector<8x8xbf16>, vector<8x8xbf16>, vector<8x8xbf16> -> vector<8x32xbf16>
    %c0_70 = arith.constant 0 : index
    %c0_71 = arith.constant 0 : index
    %250 = vector.load %arg14[%c0_70, %c0_71] : memref<8x32xbf16, #tpu.memory_space<vmem>>, vector<8x32xbf16>
    tpu.vector_store %arg14[%c0_70, %c0_71], %249 {strides = array<i32>} : memref<8x32xbf16, #tpu.memory_space<vmem>>, vector<8x32xbf16>,
    %c0_72 = arith.constant 0 : index
    %c0_73 = arith.constant 0 : index
    %251 = vector.load %arg14[%c0_72, %c0_73] : memref<8x32xbf16, #tpu.memory_space<vmem>>, vector<8x32xbf16>
    %c0_74 = arith.constant 0 : index
    %c0_75 = arith.constant 0 : index
    %252 = vector.load %arg8[%c0_74, %c0_75] : memref<32x32xbf16, #tpu.memory_space<vmem>>, vector<32x32xbf16>
    %cst_76 = arith.constant dense<0.000000e+00> : vector<8x32xf32>
    %253 = tpu.matmul %251, %252, %cst_76 {dimension_numbers = #tpu.dot_dimension_numbers<[1], [0], [0], [1], [0, 0, 1, 1], [], []>} : vector<8x32xbf16>, vector<32x32xbf16>, vector<8x32xf32> -> vector<8x32xf32>
    %c0_77 = arith.constant 0 : index
    %c0_78 = arith.constant 0 : index
    %254 = vector.load %arg9[%c0_77, %c0_78] : memref<1x32xf32, #tpu.memory_space<vmem>>, vector<1x32xf32>
    %255 = vector.broadcast %254 : vector<1x32xf32> to vector<8x32xf32>
    %256 = arith.addf %253, %255 : vector<8x32xf32>
    %c0_79 = arith.constant 0 : index
    %c0_80 = arith.constant 0 : index
    %257 = vector.load %arg10[%c0_79, %c0_80] : memref<8x32xf32, #tpu.memory_space<vmem>>, vector<8x32xf32>
    %258 = arith.addf %256, %257 : vector<8x32xf32>
    %c0_81 = arith.constant 0 : index
    %c0_82 = arith.constant 0 : index
    %259 = vector.load %arg11[%c0_81, %c0_82] : memref<8x32xf32, #tpu.memory_space<vmem>>, vector<8x32xf32>
    tpu.vector_store %arg11[%c0_81, %c0_82], %258 {strides = array<i32>} : memref<8x32xf32, #tpu.memory_space<vmem>>, vector<8x32xf32>,
    %cst_83 = arith.constant dense<0.000000e+00> : vector<32xf32>
    %260 = vector.multi_reduction <add>, %256, %cst_83 [0] : vector<8x32xf32> to vector<32xf32>
    %261 = vector.shape_cast %260 : vector<32xf32> to vector<1x32xf32>
    %cst_84 = arith.constant 8.000000e+00 : f32
    %262 = vector.broadcast %cst_84 : f32 to vector<1x32xf32>
    %263 = arith.divf %261, %262 : vector<1x32xf32>
    %c0_85 = arith.constant 0 : index
    %c0_86 = arith.constant 0 : index
    %c0_87 = arith.constant 0 : index
    %264 = vector.load %arg12[%c0_85, %c0_86, %c0_87] : memref<1x1x32xf32, #tpu.memory_space<vmem>>, vector<1x1x32xf32>
    %265 = vector.shape_cast %264 : vector<1x1x32xf32> to vector<1x32xf32>
    %266 = vector.shape_cast %263 : vector<1x32xf32> to vector<1x1x32xf32>
    tpu.vector_store %arg12[%c0_85, %c0_86, %c0_87], %266 {strides = array<i32>} : memref<1x1x32xf32, #tpu.memory_space<vmem>>, vector<1x1x32xf32>,
    return
  }
  func.func @transform_0(%arg0: i32) -> (i32, i32) {
    %c0_i32 = arith.constant 0 : i32
    %c0_i32_0 = arith.constant 0 : i32
    return %arg0, %c0_i32 : i32, i32
  }
  func.func @transform_1(%arg0: i32) -> (i32, i32) {
    %c0_i32 = arith.constant 0 : i32
    %c0_i32_0 = arith.constant 0 : i32
    %c0_i32_1 = arith.constant 0 : i32
    return %c0_i32, %c0_i32_0 : i32, i32
  }
  func.func @transform_2(%arg0: i32) -> (i32, i32) {
    %c0_i32 = arith.constant 0 : i32
    %c0_i32_0 = arith.constant 0 : i32
    %c0_i32_1 = arith.constant 0 : i32
    return %c0_i32, %c0_i32_0 : i32, i32
  }
  func.func @transform_3(%arg0: i32) -> (i32, i32) {
    %c0_i32 = arith.constant 0 : i32
    %c0_i32_0 = arith.constant 0 : i32
    %c0_i32_1 = arith.constant 0 : i32
    return %c0_i32, %c0_i32_0 : i32, i32
  }
  func.func @transform_4(%arg0: i32) -> (i32, i32) {
    %c0_i32 = arith.constant 0 : i32
    %c0_i32_0 = arith.constant 0 : i32
    %c0_i32_1 = arith.constant 0 : i32
    return %c0_i32, %c0_i32_0 : i32, i32
  }
  func.func @transform_5(%arg0: i32) -> (i32, i32) {
    %c0_i32 = arith.constant 0 : i32
    %c0_i32_0 = arith.constant 0 : i32
    %c0_i32_1 = arith.constant 0 : i32
    return %c0_i32, %c0_i32_0 : i32, i32
  }
  func.func @transform_6(%arg0: i32) -> (i32, i32) {
    %c0_i32 = arith.constant 0 : i32
    %c0_i32_0 = arith.constant 0 : i32
    %c0_i32_1 = arith.constant 0 : i32
    return %c0_i32, %c0_i32_0 : i32, i32
  }
  func.func @transform_7(%arg0: i32) -> (i32, i32) {
    %c0_i32 = arith.constant 0 : i32
    %c0_i32_0 = arith.constant 0 : i32
    %c0_i32_1 = arith.constant 0 : i32
    return %c0_i32, %c0_i32_0 : i32, i32
  }
  func.func @transform_8(%arg0: i32) -> (i32, i32) {
    %c0_i32 = arith.constant 0 : i32
    %c0_i32_0 = arith.constant 0 : i32
    %c0_i32_1 = arith.constant 0 : i32
    return %c0_i32, %c0_i32_0 : i32, i32
  }
  func.func @transform_9(%arg0: i32) -> (i32, i32) {
    %c0_i32 = arith.constant 0 : i32
    %c0_i32_0 = arith.constant 0 : i32
    %c0_i32_1 = arith.constant 0 : i32
    return %c0_i32, %c0_i32_0 : i32, i32
  }
  func.func @transform_10(%arg0: i32) -> (i32, i32) {
    %c0_i32 = arith.constant 0 : i32
    %c0_i32_0 = arith.constant 0 : i32
    return %arg0, %c0_i32 : i32, i32
  }
  func.func @transform_11(%arg0: i32) -> (i32, i32, i32) {
    %c0_i32 = arith.constant 0 : i32
    %c0_i32_0 = arith.constant 0 : i32
    %c0_i32_1 = arith.constant 0 : i32
    return %arg0, %c0_i32, %c0_i32_0 : i32, i32, i32
  }
}

module attributes {stable_mosaic.version = 11 : i64} {
  func.func @_decoder_kernel(%arg0: i32, %arg1: i32, %arg2: memref<8x32xf32, #tpu.memory_space<vmem>>, %arg3: memref<1x1x32xf32, #tpu.memory_space<vmem>>, %arg4: memref<1x1x32xf32, #tpu.memory_space<vmem>>, %arg5: memref<1x32x96xbf16, #tpu.memory_space<vmem>>, %arg6: memref<1x1x96xf32, #tpu.memory_space<vmem>>, %arg7: memref<1x32x32xbf16, #tpu.memory_space<vmem>>, %arg8: memref<1x1x32xf32, #tpu.memory_space<vmem>>, %arg9: memref<1x1x32xf32, #tpu.memory_space<vmem>>, %arg10: memref<1x1x32xf32, #tpu.memory_space<vmem>>, %arg11: memref<1x32x64xbf16, #tpu.memory_space<vmem>>, %arg12: memref<1x1x64xf32, #tpu.memory_space<vmem>>, %arg13: memref<1x64x32xbf16, #tpu.memory_space<vmem>>, %arg14: memref<1x1x32xf32, #tpu.memory_space<vmem>>, %arg15: memref<1x32xf32, #tpu.memory_space<vmem>>, %arg16: memref<1x32xf32, #tpu.memory_space<vmem>>, %arg17: memref<1x1x32xf32, #tpu.memory_space<vmem>>, %arg18: memref<8x32xf32, #tpu.memory_space<vmem>>, %arg19: memref<8x96xbf16, #tpu.memory_space<vmem>>, %arg20: memref<8x32xbf16, #tpu.memory_space<vmem>>) attributes {dimension_semantics = [#tpu.dimension_semantics<parallel>, #tpu.dimension_semantics<arbitrary>], iteration_bounds = array<i64: 2, 2>, scalar_prefetch = 0 : i64, scratch_operands = 3 : i64, tpu.core_type = #tpu.core_type<tc>, window_params = [{transform_indices = @transform_0, window_bounds = array<i64: 8, 32>}, {transform_indices = @transform_1, window_bounds = array<i64: 1, 1, 32>}, {transform_indices = @transform_2, window_bounds = array<i64: 1, 1, 32>}, {transform_indices = @transform_3, window_bounds = array<i64: 1, 32, 96>}, {transform_indices = @transform_4, window_bounds = array<i64: 1, 1, 96>}, {transform_indices = @transform_5, window_bounds = array<i64: 1, 32, 32>}, {transform_indices = @transform_6, window_bounds = array<i64: 1, 1, 32>}, {transform_indices = @transform_7, window_bounds = array<i64: 1, 1, 32>}, {transform_indices = @transform_8, window_bounds = array<i64: 1, 1, 32>}, {transform_indices = @transform_9, window_bounds = array<i64: 1, 32, 64>}, {transform_indices = @transform_10, window_bounds = array<i64: 1, 1, 64>}, {transform_indices = @transform_11, window_bounds = array<i64: 1, 64, 32>}, {transform_indices = @transform_12, window_bounds = array<i64: 1, 1, 32>}, {pipeline_mode = #tpu.pipeline_mode<synchronous>, transform_indices = @transform_13, window_bounds = array<i64: 1, 32>}, {pipeline_mode = #tpu.pipeline_mode<synchronous>, transform_indices = @transform_14, window_bounds = array<i64: 1, 32>}, {transform_indices = @transform_15, window_bounds = array<i64: 1, 1, 32>}]} {
    %c0_i32 = arith.constant 0 : i32
    %0 = arith.cmpi eq, %arg1, %c0_i32 : i32
    %1 = arith.extui %0 : i1 to i32
    %c0_i32_0 = arith.constant 0 : i32
    %2 = arith.cmpi ne, %1, %c0_i32_0 : i32
    scf.if %2 {
      %c0_96 = arith.constant 0 : index
      %c0_97 = arith.constant 0 : index
      %182 = vector.load %arg2[%c0_96, %c0_97] : memref<8x32xf32, #tpu.memory_space<vmem>>, vector<8x32xf32>
      %c0_98 = arith.constant 0 : index
      %c0_99 = arith.constant 0 : index
      %183 = vector.load %arg18[%c0_98, %c0_99] : memref<8x32xf32, #tpu.memory_space<vmem>>, vector<8x32xf32>
      tpu.vector_store %arg18[%c0_98, %c0_99], %182 {strides = array<i32>} : memref<8x32xf32, #tpu.memory_space<vmem>>, vector<8x32xf32>,
    } else {
    }
    %c0 = arith.constant 0 : index
    %c0_1 = arith.constant 0 : index
    %3 = vector.load %arg18[%c0, %c0_1] : memref<8x32xf32, #tpu.memory_space<vmem>>, vector<8x32xf32>
    %c0_2 = arith.constant 0 : index
    %c0_3 = arith.constant 0 : index
    %c0_4 = arith.constant 0 : index
    %4 = vector.load %arg3[%c0_2, %c0_3, %c0_4] : memref<1x1x32xf32, #tpu.memory_space<vmem>>, vector<1x1x32xf32>
    %5 = vector.shape_cast %4 : vector<1x1x32xf32> to vector<1x32xf32>
    %c0_5 = arith.constant 0 : index
    %c0_6 = arith.constant 0 : index
    %c0_7 = arith.constant 0 : index
    %6 = vector.load %arg4[%c0_5, %c0_6, %c0_7] : memref<1x1x32xf32, #tpu.memory_space<vmem>>, vector<1x1x32xf32>
    %7 = vector.shape_cast %6 : vector<1x1x32xf32> to vector<1x32xf32>
    %cst = arith.constant dense<0.000000e+00> : vector<8xf32>
    %8 = vector.multi_reduction <add>, %3, %cst [1] : vector<8x32xf32> to vector<8xf32>
    %9 = vector.shape_cast %8 : vector<8xf32> to vector<8x1xf32>
    %cst_8 = arith.constant 3.200000e+01 : f32
    %10 = vector.broadcast %cst_8 : f32 to vector<8x1xf32>
    %11 = arith.divf %9, %10 : vector<8x1xf32>
    %12 = vector.broadcast %11 : vector<8x1xf32> to vector<8x32xf32>
    %13 = arith.subf %3, %12 : vector<8x32xf32>
    %14 = arith.mulf %13, %13 : vector<8x32xf32>
    %cst_9 = arith.constant dense<0.000000e+00> : vector<8xf32>
    %15 = vector.multi_reduction <add>, %14, %cst_9 [1] : vector<8x32xf32> to vector<8xf32>
    %16 = vector.shape_cast %15 : vector<8xf32> to vector<8x1xf32>
    %cst_10 = arith.constant 3.200000e+01 : f32
    %17 = vector.broadcast %cst_10 : f32 to vector<8x1xf32>
    %18 = arith.divf %16, %17 : vector<8x1xf32>
    %19 = vector.broadcast %11 : vector<8x1xf32> to vector<8x32xf32>
    %20 = arith.subf %3, %19 : vector<8x32xf32>
    %cst_11 = arith.constant 9.99999974E-6 : f32
    %21 = vector.broadcast %cst_11 : f32 to vector<8x1xf32>
    %22 = arith.addf %18, %21 : vector<8x1xf32>
    %23 = math.rsqrt %22 : vector<8x1xf32>
    %24 = vector.broadcast %23 : vector<8x1xf32> to vector<8x32xf32>
    %25 = arith.mulf %20, %24 : vector<8x32xf32>
    %26 = vector.broadcast %5 : vector<1x32xf32> to vector<8x32xf32>
    %27 = arith.mulf %25, %26 : vector<8x32xf32>
    %28 = vector.broadcast %7 : vector<1x32xf32> to vector<8x32xf32>
    %29 = arith.addf %27, %28 : vector<8x32xf32>
    %c0_12 = arith.constant 0 : index
    %c0_13 = arith.constant 0 : index
    %c0_14 = arith.constant 0 : index
    %30 = vector.load %arg5[%c0_12, %c0_13, %c0_14] : memref<1x32x96xbf16, #tpu.memory_space<vmem>>, vector<1x32x96xbf16>
    %31 = vector.shape_cast %30 : vector<1x32x96xbf16> to vector<32x96xbf16>
    %32 = arith.truncf %29 : vector<8x32xf32> to vector<8x32xbf16>
    %cst_15 = arith.constant dense<0.000000e+00> : vector<8x96xf32>
    %33 = tpu.matmul %32, %31, %cst_15 {dimension_numbers = #tpu.dot_dimension_numbers<[1], [0], [0], [1], [0, 0, 1, 1], [], []>} : vector<8x32xbf16>, vector<32x96xbf16>, vector<8x96xf32> -> vector<8x96xf32>
    %c0_16 = arith.constant 0 : index
    %c0_17 = arith.constant 0 : index
    %c0_18 = arith.constant 0 : index
    %34 = vector.load %arg6[%c0_16, %c0_17, %c0_18] : memref<1x1x96xf32, #tpu.memory_space<vmem>>, vector<1x1x96xf32>
    %35 = vector.shape_cast %34 : vector<1x1x96xf32> to vector<1x96xf32>
    %36 = vector.broadcast %35 : vector<1x96xf32> to vector<8x96xf32>
    %37 = arith.addf %33, %36 : vector<8x96xf32>
    %38 = arith.truncf %37 : vector<8x96xf32> to vector<8x96xbf16>
    %c0_19 = arith.constant 0 : index
    %c0_20 = arith.constant 0 : index
    %39 = vector.load %arg19[%c0_19, %c0_20] : memref<8x96xbf16, #tpu.memory_space<vmem>>, vector<8x96xbf16>
    tpu.vector_store %arg19[%c0_19, %c0_20], %38 {strides = array<i32>} : memref<8x96xbf16, #tpu.memory_space<vmem>>, vector<8x96xbf16>,
    %c0_21 = arith.constant 0 : index
    %c0_22 = arith.constant 0 : index
    %40 = vector.load %arg19[%c0_21, %c0_22] : memref<8x96xbf16, #tpu.memory_space<vmem>>, vector<8x8xbf16>
    %c0_23 = arith.constant 0 : index
    %c32 = arith.constant 32 : index
    %41 = vector.load %arg19[%c0_23, %c32] : memref<8x96xbf16, #tpu.memory_space<vmem>>, vector<8x8xbf16>
    %c0_24 = arith.constant 0 : index
    %c64 = arith.constant 64 : index
    %42 = vector.load %arg19[%c0_24, %c64] : memref<8x96xbf16, #tpu.memory_space<vmem>>, vector<8x8xbf16>
    %cst_25 = arith.constant dense<0.000000e+00> : vector<8x8xf32>
    %43 = tpu.matmul %40, %41, %cst_25 {dimension_numbers = #tpu.dot_dimension_numbers<[1], [1], [0], [0], [0, 0, 1, 0], [], []>} : vector<8x8xbf16>, vector<8x8xbf16>, vector<8x8xf32> -> vector<8x8xf32>
    %cst_26 = arith.constant 0.353553385 : f32
    %44 = vector.broadcast %cst_26 : f32 to vector<8x8xf32>
    %45 = arith.mulf %43, %44 : vector<8x8xf32>
    %cst_27 = arith.constant dense<0xFF800000> : vector<8xf32>
    %46 = vector.multi_reduction <maximumf>, %45, %cst_27 [1] : vector<8x8xf32> to vector<8xf32>
    %47 = vector.shape_cast %46 : vector<8xf32> to vector<8x1xf32>
    %48 = vector.broadcast %47 : vector<8x1xf32> to vector<8x8xf32>
    %49 = arith.subf %45, %48 : vector<8x8xf32>
    %50 = math.exp %49 : vector<8x8xf32>
    %cst_28 = arith.constant dense<0.000000e+00> : vector<8xf32>
    %51 = vector.multi_reduction <add>, %50, %cst_28 [1] : vector<8x8xf32> to vector<8xf32>
    %52 = vector.shape_cast %51 : vector<8xf32> to vector<8x1xf32>
    %53 = arith.truncf %50 : vector<8x8xf32> to vector<8x8xbf16>
    %cst_29 = arith.constant dense<0.000000e+00> : vector<8x8xf32>
    %54 = tpu.matmul %53, %42, %cst_29 {dimension_numbers = #tpu.dot_dimension_numbers<[1], [0], [0], [1], [0, 0, 1, 1], [], []>} : vector<8x8xbf16>, vector<8x8xbf16>, vector<8x8xf32> -> vector<8x8xf32>
    %55 = tpu.reciprocal %52 {approx = true} : vector<8x1xf32> -> vector<8x1xf32>
    %56 = vector.broadcast %55 : vector<8x1xf32> to vector<8x8xf32>
    %57 = arith.mulf %54, %56 : vector<8x8xf32>
    %58 = arith.truncf %57 : vector<8x8xf32> to vector<8x8xbf16>
    %c0_30 = arith.constant 0 : index
    %c8 = arith.constant 8 : index
    %59 = vector.load %arg19[%c0_30, %c8] : memref<8x96xbf16, #tpu.memory_space<vmem>>, vector<8x8xbf16>
    %c0_31 = arith.constant 0 : index
    %c40 = arith.constant 40 : index
    %60 = vector.load %arg19[%c0_31, %c40] : memref<8x96xbf16, #tpu.memory_space<vmem>>, vector<8x8xbf16>
    %c0_32 = arith.constant 0 : index
    %c72 = arith.constant 72 : index
    %61 = vector.load %arg19[%c0_32, %c72] : memref<8x96xbf16, #tpu.memory_space<vmem>>, vector<8x8xbf16>
    %cst_33 = arith.constant dense<0.000000e+00> : vector<8x8xf32>
    %62 = tpu.matmul %59, %60, %cst_33 {dimension_numbers = #tpu.dot_dimension_numbers<[1], [1], [0], [0], [0, 0, 1, 0], [], []>} : vector<8x8xbf16>, vector<8x8xbf16>, vector<8x8xf32> -> vector<8x8xf32>
    %cst_34 = arith.constant 0.353553385 : f32
    %63 = vector.broadcast %cst_34 : f32 to vector<8x8xf32>
    %64 = arith.mulf %62, %63 : vector<8x8xf32>
    %cst_35 = arith.constant dense<0xFF800000> : vector<8xf32>
    %65 = vector.multi_reduction <maximumf>, %64, %cst_35 [1] : vector<8x8xf32> to vector<8xf32>
    %66 = vector.shape_cast %65 : vector<8xf32> to vector<8x1xf32>
    %67 = vector.broadcast %66 : vector<8x1xf32> to vector<8x8xf32>
    %68 = arith.subf %64, %67 : vector<8x8xf32>
    %69 = math.exp %68 : vector<8x8xf32>
    %cst_36 = arith.constant dense<0.000000e+00> : vector<8xf32>
    %70 = vector.multi_reduction <add>, %69, %cst_36 [1] : vector<8x8xf32> to vector<8xf32>
    %71 = vector.shape_cast %70 : vector<8xf32> to vector<8x1xf32>
    %72 = arith.truncf %69 : vector<8x8xf32> to vector<8x8xbf16>
    %cst_37 = arith.constant dense<0.000000e+00> : vector<8x8xf32>
    %73 = tpu.matmul %72, %61, %cst_37 {dimension_numbers = #tpu.dot_dimension_numbers<[1], [0], [0], [1], [0, 0, 1, 1], [], []>} : vector<8x8xbf16>, vector<8x8xbf16>, vector<8x8xf32> -> vector<8x8xf32>
    %74 = tpu.reciprocal %71 {approx = true} : vector<8x1xf32> -> vector<8x1xf32>
    %75 = vector.broadcast %74 : vector<8x1xf32> to vector<8x8xf32>
    %76 = arith.mulf %73, %75 : vector<8x8xf32>
    %77 = arith.truncf %76 : vector<8x8xf32> to vector<8x8xbf16>
    %c0_38 = arith.constant 0 : index
    %c16 = arith.constant 16 : index
    %78 = vector.load %arg19[%c0_38, %c16] : memref<8x96xbf16, #tpu.memory_space<vmem>>, vector<8x8xbf16>
    %c0_39 = arith.constant 0 : index
    %c48 = arith.constant 48 : index
    %79 = vector.load %arg19[%c0_39, %c48] : memref<8x96xbf16, #tpu.memory_space<vmem>>, vector<8x8xbf16>
    %c0_40 = arith.constant 0 : index
    %c80 = arith.constant 80 : index
    %80 = vector.load %arg19[%c0_40, %c80] : memref<8x96xbf16, #tpu.memory_space<vmem>>, vector<8x8xbf16>
    %cst_41 = arith.constant dense<0.000000e+00> : vector<8x8xf32>
    %81 = tpu.matmul %78, %79, %cst_41 {dimension_numbers = #tpu.dot_dimension_numbers<[1], [1], [0], [0], [0, 0, 1, 0], [], []>} : vector<8x8xbf16>, vector<8x8xbf16>, vector<8x8xf32> -> vector<8x8xf32>
    %cst_42 = arith.constant 0.353553385 : f32
    %82 = vector.broadcast %cst_42 : f32 to vector<8x8xf32>
    %83 = arith.mulf %81, %82 : vector<8x8xf32>
    %cst_43 = arith.constant dense<0xFF800000> : vector<8xf32>
    %84 = vector.multi_reduction <maximumf>, %83, %cst_43 [1] : vector<8x8xf32> to vector<8xf32>
    %85 = vector.shape_cast %84 : vector<8xf32> to vector<8x1xf32>
    %86 = vector.broadcast %85 : vector<8x1xf32> to vector<8x8xf32>
    %87 = arith.subf %83, %86 : vector<8x8xf32>
    %88 = math.exp %87 : vector<8x8xf32>
    %cst_44 = arith.constant dense<0.000000e+00> : vector<8xf32>
    %89 = vector.multi_reduction <add>, %88, %cst_44 [1] : vector<8x8xf32> to vector<8xf32>
    %90 = vector.shape_cast %89 : vector<8xf32> to vector<8x1xf32>
    %91 = arith.truncf %88 : vector<8x8xf32> to vector<8x8xbf16>
    %cst_45 = arith.constant dense<0.000000e+00> : vector<8x8xf32>
    %92 = tpu.matmul %91, %80, %cst_45 {dimension_numbers = #tpu.dot_dimension_numbers<[1], [0], [0], [1], [0, 0, 1, 1], [], []>} : vector<8x8xbf16>, vector<8x8xbf16>, vector<8x8xf32> -> vector<8x8xf32>
    %93 = tpu.reciprocal %90 {approx = true} : vector<8x1xf32> -> vector<8x1xf32>
    %94 = vector.broadcast %93 : vector<8x1xf32> to vector<8x8xf32>
    %95 = arith.mulf %92, %94 : vector<8x8xf32>
    %96 = arith.truncf %95 : vector<8x8xf32> to vector<8x8xbf16>
    %c0_46 = arith.constant 0 : index
    %c24 = arith.constant 24 : index
    %97 = vector.load %arg19[%c0_46, %c24] : memref<8x96xbf16, #tpu.memory_space<vmem>>, vector<8x8xbf16>
    %c0_47 = arith.constant 0 : index
    %c56 = arith.constant 56 : index
    %98 = vector.load %arg19[%c0_47, %c56] : memref<8x96xbf16, #tpu.memory_space<vmem>>, vector<8x8xbf16>
    %c0_48 = arith.constant 0 : index
    %c88 = arith.constant 88 : index
    %99 = vector.load %arg19[%c0_48, %c88] : memref<8x96xbf16, #tpu.memory_space<vmem>>, vector<8x8xbf16>
    %cst_49 = arith.constant dense<0.000000e+00> : vector<8x8xf32>
    %100 = tpu.matmul %97, %98, %cst_49 {dimension_numbers = #tpu.dot_dimension_numbers<[1], [1], [0], [0], [0, 0, 1, 0], [], []>} : vector<8x8xbf16>, vector<8x8xbf16>, vector<8x8xf32> -> vector<8x8xf32>
    %cst_50 = arith.constant 0.353553385 : f32
    %101 = vector.broadcast %cst_50 : f32 to vector<8x8xf32>
    %102 = arith.mulf %100, %101 : vector<8x8xf32>
    %cst_51 = arith.constant dense<0xFF800000> : vector<8xf32>
    %103 = vector.multi_reduction <maximumf>, %102, %cst_51 [1] : vector<8x8xf32> to vector<8xf32>
    %104 = vector.shape_cast %103 : vector<8xf32> to vector<8x1xf32>
    %105 = vector.broadcast %104 : vector<8x1xf32> to vector<8x8xf32>
    %106 = arith.subf %102, %105 : vector<8x8xf32>
    %107 = math.exp %106 : vector<8x8xf32>
    %cst_52 = arith.constant dense<0.000000e+00> : vector<8xf32>
    %108 = vector.multi_reduction <add>, %107, %cst_52 [1] : vector<8x8xf32> to vector<8xf32>
    %109 = vector.shape_cast %108 : vector<8xf32> to vector<8x1xf32>
    %110 = arith.truncf %107 : vector<8x8xf32> to vector<8x8xbf16>
    %cst_53 = arith.constant dense<0.000000e+00> : vector<8x8xf32>
    %111 = tpu.matmul %110, %99, %cst_53 {dimension_numbers = #tpu.dot_dimension_numbers<[1], [0], [0], [1], [0, 0, 1, 1], [], []>} : vector<8x8xbf16>, vector<8x8xbf16>, vector<8x8xf32> -> vector<8x8xf32>
    %112 = tpu.reciprocal %109 {approx = true} : vector<8x1xf32> -> vector<8x1xf32>
    %113 = vector.broadcast %112 : vector<8x1xf32> to vector<8x8xf32>
    %114 = arith.mulf %111, %113 : vector<8x8xf32>
    %115 = arith.truncf %114 : vector<8x8xf32> to vector<8x8xbf16>
    %116 = tpu.concatenate %58, %77, %96, %115 in 1 : vector<8x8xbf16>, vector<8x8xbf16>, vector<8x8xbf16>, vector<8x8xbf16> -> vector<8x32xbf16>
    %c0_54 = arith.constant 0 : index
    %c0_55 = arith.constant 0 : index
    %117 = vector.load %arg20[%c0_54, %c0_55] : memref<8x32xbf16, #tpu.memory_space<vmem>>, vector<8x32xbf16>
    tpu.vector_store %arg20[%c0_54, %c0_55], %116 {strides = array<i32>} : memref<8x32xbf16, #tpu.memory_space<vmem>>, vector<8x32xbf16>,
    %c0_56 = arith.constant 0 : index
    %c0_57 = arith.constant 0 : index
    %118 = vector.load %arg20[%c0_56, %c0_57] : memref<8x32xbf16, #tpu.memory_space<vmem>>, vector<8x32xbf16>
    %c0_58 = arith.constant 0 : index
    %c0_59 = arith.constant 0 : index
    %c0_60 = arith.constant 0 : index
    %119 = vector.load %arg7[%c0_58, %c0_59, %c0_60] : memref<1x32x32xbf16, #tpu.memory_space<vmem>>, vector<1x32x32xbf16>
    %120 = vector.shape_cast %119 : vector<1x32x32xbf16> to vector<32x32xbf16>
    %cst_61 = arith.constant dense<0.000000e+00> : vector<8x32xf32>
    %121 = tpu.matmul %118, %120, %cst_61 {dimension_numbers = #tpu.dot_dimension_numbers<[1], [0], [0], [1], [0, 0, 1, 1], [], []>} : vector<8x32xbf16>, vector<32x32xbf16>, vector<8x32xf32> -> vector<8x32xf32>
    %c0_62 = arith.constant 0 : index
    %c0_63 = arith.constant 0 : index
    %c0_64 = arith.constant 0 : index
    %122 = vector.load %arg8[%c0_62, %c0_63, %c0_64] : memref<1x1x32xf32, #tpu.memory_space<vmem>>, vector<1x1x32xf32>
    %123 = vector.shape_cast %122 : vector<1x1x32xf32> to vector<1x32xf32>
    %124 = vector.broadcast %123 : vector<1x32xf32> to vector<8x32xf32>
    %125 = arith.addf %121, %124 : vector<8x32xf32>
    %126 = arith.addf %3, %125 : vector<8x32xf32>
    %c0_65 = arith.constant 0 : index
    %c0_66 = arith.constant 0 : index
    %c0_67 = arith.constant 0 : index
    %127 = vector.load %arg9[%c0_65, %c0_66, %c0_67] : memref<1x1x32xf32, #tpu.memory_space<vmem>>, vector<1x1x32xf32>
    %128 = vector.shape_cast %127 : vector<1x1x32xf32> to vector<1x32xf32>
    %c0_68 = arith.constant 0 : index
    %c0_69 = arith.constant 0 : index
    %c0_70 = arith.constant 0 : index
    %129 = vector.load %arg10[%c0_68, %c0_69, %c0_70] : memref<1x1x32xf32, #tpu.memory_space<vmem>>, vector<1x1x32xf32>
    %130 = vector.shape_cast %129 : vector<1x1x32xf32> to vector<1x32xf32>
    %cst_71 = arith.constant dense<0.000000e+00> : vector<8xf32>
    %131 = vector.multi_reduction <add>, %126, %cst_71 [1] : vector<8x32xf32> to vector<8xf32>
    %132 = vector.shape_cast %131 : vector<8xf32> to vector<8x1xf32>
    %cst_72 = arith.constant 3.200000e+01 : f32
    %133 = vector.broadcast %cst_72 : f32 to vector<8x1xf32>
    %134 = arith.divf %132, %133 : vector<8x1xf32>
    %135 = vector.broadcast %134 : vector<8x1xf32> to vector<8x32xf32>
    %136 = arith.subf %126, %135 : vector<8x32xf32>
    %137 = arith.mulf %136, %136 : vector<8x32xf32>
    %cst_73 = arith.constant dense<0.000000e+00> : vector<8xf32>
    %138 = vector.multi_reduction <add>, %137, %cst_73 [1] : vector<8x32xf32> to vector<8xf32>
    %139 = vector.shape_cast %138 : vector<8xf32> to vector<8x1xf32>
    %cst_74 = arith.constant 3.200000e+01 : f32
    %140 = vector.broadcast %cst_74 : f32 to vector<8x1xf32>
    %141 = arith.divf %139, %140 : vector<8x1xf32>
    %142 = vector.broadcast %134 : vector<8x1xf32> to vector<8x32xf32>
    %143 = arith.subf %126, %142 : vector<8x32xf32>
    %cst_75 = arith.constant 9.99999974E-6 : f32
    %144 = vector.broadcast %cst_75 : f32 to vector<8x1xf32>
    %145 = arith.addf %141, %144 : vector<8x1xf32>
    %146 = math.rsqrt %145 : vector<8x1xf32>
    %147 = vector.broadcast %146 : vector<8x1xf32> to vector<8x32xf32>
    %148 = arith.mulf %143, %147 : vector<8x32xf32>
    %149 = vector.broadcast %128 : vector<1x32xf32> to vector<8x32xf32>
    %150 = arith.mulf %148, %149 : vector<8x32xf32>
    %151 = vector.broadcast %130 : vector<1x32xf32> to vector<8x32xf32>
    %152 = arith.addf %150, %151 : vector<8x32xf32>
    %c0_76 = arith.constant 0 : index
    %c0_77 = arith.constant 0 : index
    %c0_78 = arith.constant 0 : index
    %153 = vector.load %arg11[%c0_76, %c0_77, %c0_78] : memref<1x32x64xbf16, #tpu.memory_space<vmem>>, vector<1x32x64xbf16>
    %154 = vector.shape_cast %153 : vector<1x32x64xbf16> to vector<32x64xbf16>
    %155 = arith.truncf %152 : vector<8x32xf32> to vector<8x32xbf16>
    %cst_79 = arith.constant dense<0.000000e+00> : vector<8x64xf32>
    %156 = tpu.matmul %155, %154, %cst_79 {dimension_numbers = #tpu.dot_dimension_numbers<[1], [0], [0], [1], [0, 0, 1, 1], [], []>} : vector<8x32xbf16>, vector<32x64xbf16>, vector<8x64xf32> -> vector<8x64xf32>
    %c0_80 = arith.constant 0 : index
    %c0_81 = arith.constant 0 : index
    %c0_82 = arith.constant 0 : index
    %157 = vector.load %arg12[%c0_80, %c0_81, %c0_82] : memref<1x1x64xf32, #tpu.memory_space<vmem>>, vector<1x1x64xf32>
    %158 = vector.shape_cast %157 : vector<1x1x64xf32> to vector<1x64xf32>
    %159 = vector.broadcast %158 : vector<1x64xf32> to vector<8x64xf32>
    %160 = arith.addf %156, %159 : vector<8x64xf32>
    %cst_83 = arith.constant 5.000000e-01 : f32
    %161 = vector.broadcast %cst_83 : f32 to vector<8x64xf32>
    %162 = arith.mulf %161, %160 : vector<8x64xf32>
    %cst_84 = arith.constant 0.707106769 : f32
    %163 = vector.broadcast %cst_84 : f32 to vector<8x64xf32>
    %164 = arith.mulf %160, %163 : vector<8x64xf32>
    %165 = math.erf %164 : vector<8x64xf32>
    %cst_85 = arith.constant 1.000000e+00 : f32
    %166 = vector.broadcast %cst_85 : f32 to vector<8x64xf32>
    %167 = arith.addf %166, %165 : vector<8x64xf32>
    %168 = arith.mulf %162, %167 : vector<8x64xf32>
    %c0_86 = arith.constant 0 : index
    %c0_87 = arith.constant 0 : index
    %c0_88 = arith.constant 0 : index
    %169 = vector.load %arg13[%c0_86, %c0_87, %c0_88] : memref<1x64x32xbf16, #tpu.memory_space<vmem>>, vector<1x64x32xbf16>
    %170 = vector.shape_cast %169 : vector<1x64x32xbf16> to vector<64x32xbf16>
    %171 = arith.truncf %168 : vector<8x64xf32> to vector<8x64xbf16>
    %cst_89 = arith.constant dense<0.000000e+00> : vector<8x32xf32>
    %172 = tpu.matmul %171, %170, %cst_89 {dimension_numbers = #tpu.dot_dimension_numbers<[1], [0], [0], [1], [0, 0, 1, 1], [], []>} : vector<8x64xbf16>, vector<64x32xbf16>, vector<8x32xf32> -> vector<8x32xf32>
    %c0_90 = arith.constant 0 : index
    %c0_91 = arith.constant 0 : index
    %c0_92 = arith.constant 0 : index
    %173 = vector.load %arg14[%c0_90, %c0_91, %c0_92] : memref<1x1x32xf32, #tpu.memory_space<vmem>>, vector<1x1x32xf32>
    %174 = vector.shape_cast %173 : vector<1x1x32xf32> to vector<1x32xf32>
    %175 = vector.broadcast %174 : vector<1x32xf32> to vector<8x32xf32>
    %176 = arith.addf %172, %175 : vector<8x32xf32>
    %177 = arith.addf %126, %176 : vector<8x32xf32>
    %c0_93 = arith.constant 0 : index
    %c0_94 = arith.constant 0 : index
    %178 = vector.load %arg18[%c0_93, %c0_94] : memref<8x32xf32, #tpu.memory_space<vmem>>, vector<8x32xf32>
    tpu.vector_store %arg18[%c0_93, %c0_94], %177 {strides = array<i32>} : memref<8x32xf32, #tpu.memory_space<vmem>>, vector<8x32xf32>,
    %c1_i32 = arith.constant 1 : i32
    %179 = arith.cmpi eq, %arg1, %c1_i32 : i32
    %180 = arith.extui %179 : i1 to i32
    %c0_i32_95 = arith.constant 0 : i32
    %181 = arith.cmpi ne, %180, %c0_i32_95 : i32
    scf.if %181 {
      %c0_96 = arith.constant 0 : index
      %c0_97 = arith.constant 0 : index
      %182 = vector.load %arg15[%c0_96, %c0_97] : memref<1x32xf32, #tpu.memory_space<vmem>>, vector<1x32xf32>
      %c0_98 = arith.constant 0 : index
      %c0_99 = arith.constant 0 : index
      %183 = vector.load %arg16[%c0_98, %c0_99] : memref<1x32xf32, #tpu.memory_space<vmem>>, vector<1x32xf32>
      %cst_100 = arith.constant dense<0.000000e+00> : vector<8xf32>
      %184 = vector.multi_reduction <add>, %177, %cst_100 [1] : vector<8x32xf32> to vector<8xf32>
      %185 = vector.shape_cast %184 : vector<8xf32> to vector<8x1xf32>
      %cst_101 = arith.constant 3.200000e+01 : f32
      %186 = vector.broadcast %cst_101 : f32 to vector<8x1xf32>
      %187 = arith.divf %185, %186 : vector<8x1xf32>
      %188 = vector.broadcast %187 : vector<8x1xf32> to vector<8x32xf32>
      %189 = arith.subf %177, %188 : vector<8x32xf32>
      %190 = arith.mulf %189, %189 : vector<8x32xf32>
      %cst_102 = arith.constant dense<0.000000e+00> : vector<8xf32>
      %191 = vector.multi_reduction <add>, %190, %cst_102 [1] : vector<8x32xf32> to vector<8xf32>
      %192 = vector.shape_cast %191 : vector<8xf32> to vector<8x1xf32>
      %cst_103 = arith.constant 3.200000e+01 : f32
      %193 = vector.broadcast %cst_103 : f32 to vector<8x1xf32>
      %194 = arith.divf %192, %193 : vector<8x1xf32>
      %195 = vector.broadcast %187 : vector<8x1xf32> to vector<8x32xf32>
      %196 = arith.subf %177, %195 : vector<8x32xf32>
      %cst_104 = arith.constant 9.99999974E-6 : f32
      %197 = vector.broadcast %cst_104 : f32 to vector<8x1xf32>
      %198 = arith.addf %194, %197 : vector<8x1xf32>
      %199 = math.rsqrt %198 : vector<8x1xf32>
      %200 = vector.broadcast %199 : vector<8x1xf32> to vector<8x32xf32>
      %201 = arith.mulf %196, %200 : vector<8x32xf32>
      %202 = vector.broadcast %182 : vector<1x32xf32> to vector<8x32xf32>
      %203 = arith.mulf %201, %202 : vector<8x32xf32>
      %204 = vector.broadcast %183 : vector<1x32xf32> to vector<8x32xf32>
      %205 = arith.addf %203, %204 : vector<8x32xf32>
      %cst_105 = arith.constant dense<0.000000e+00> : vector<32xf32>
      %206 = vector.multi_reduction <add>, %205, %cst_105 [0] : vector<8x32xf32> to vector<32xf32>
      %207 = vector.shape_cast %206 : vector<32xf32> to vector<1x32xf32>
      %cst_106 = arith.constant 8.000000e+00 : f32
      %208 = vector.broadcast %cst_106 : f32 to vector<1x32xf32>
      %209 = arith.divf %207, %208 : vector<1x32xf32>
      %c0_107 = arith.constant 0 : index
      %c0_108 = arith.constant 0 : index
      %c0_109 = arith.constant 0 : index
      %210 = vector.load %arg17[%c0_107, %c0_108, %c0_109] : memref<1x1x32xf32, #tpu.memory_space<vmem>>, vector<1x1x32xf32>
      %211 = vector.shape_cast %210 : vector<1x1x32xf32> to vector<1x32xf32>
      %212 = vector.shape_cast %209 : vector<1x32xf32> to vector<1x1x32xf32>
      tpu.vector_store %arg17[%c0_107, %c0_108, %c0_109], %212 {strides = array<i32>} : memref<1x1x32xf32, #tpu.memory_space<vmem>>, vector<1x1x32xf32>,
    } else {
    }
    return
  }
  func.func @transform_0(%arg0: i32, %arg1: i32) -> (i32, i32) {
    %c0_i32 = arith.constant 0 : i32
    %c0_i32_0 = arith.constant 0 : i32
    return %arg0, %c0_i32 : i32, i32
  }
  func.func @transform_1(%arg0: i32, %arg1: i32) -> (i32, i32, i32) {
    %c0_i32 = arith.constant 0 : i32
    %c0_i32_0 = arith.constant 0 : i32
    %c0_i32_1 = arith.constant 0 : i32
    return %arg1, %c0_i32, %c0_i32_0 : i32, i32, i32
  }
  func.func @transform_2(%arg0: i32, %arg1: i32) -> (i32, i32, i32) {
    %c0_i32 = arith.constant 0 : i32
    %c0_i32_0 = arith.constant 0 : i32
    %c0_i32_1 = arith.constant 0 : i32
    return %arg1, %c0_i32, %c0_i32_0 : i32, i32, i32
  }
  func.func @transform_3(%arg0: i32, %arg1: i32) -> (i32, i32, i32) {
    %c0_i32 = arith.constant 0 : i32
    %c0_i32_0 = arith.constant 0 : i32
    %c0_i32_1 = arith.constant 0 : i32
    return %arg1, %c0_i32, %c0_i32_0 : i32, i32, i32
  }
  func.func @transform_4(%arg0: i32, %arg1: i32) -> (i32, i32, i32) {
    %c0_i32 = arith.constant 0 : i32
    %c0_i32_0 = arith.constant 0 : i32
    %c0_i32_1 = arith.constant 0 : i32
    return %arg1, %c0_i32, %c0_i32_0 : i32, i32, i32
  }
  func.func @transform_5(%arg0: i32, %arg1: i32) -> (i32, i32, i32) {
    %c0_i32 = arith.constant 0 : i32
    %c0_i32_0 = arith.constant 0 : i32
    %c0_i32_1 = arith.constant 0 : i32
    return %arg1, %c0_i32, %c0_i32_0 : i32, i32, i32
  }
  func.func @transform_6(%arg0: i32, %arg1: i32) -> (i32, i32, i32) {
    %c0_i32 = arith.constant 0 : i32
    %c0_i32_0 = arith.constant 0 : i32
    %c0_i32_1 = arith.constant 0 : i32
    return %arg1, %c0_i32, %c0_i32_0 : i32, i32, i32
  }
  func.func @transform_7(%arg0: i32, %arg1: i32) -> (i32, i32, i32) {
    %c0_i32 = arith.constant 0 : i32
    %c0_i32_0 = arith.constant 0 : i32
    %c0_i32_1 = arith.constant 0 : i32
    return %arg1, %c0_i32, %c0_i32_0 : i32, i32, i32
  }
  func.func @transform_8(%arg0: i32, %arg1: i32) -> (i32, i32, i32) {
    %c0_i32 = arith.constant 0 : i32
    %c0_i32_0 = arith.constant 0 : i32
    %c0_i32_1 = arith.constant 0 : i32
    return %arg1, %c0_i32, %c0_i32_0 : i32, i32, i32
  }
  func.func @transform_9(%arg0: i32, %arg1: i32) -> (i32, i32, i32) {
    %c0_i32 = arith.constant 0 : i32
    %c0_i32_0 = arith.constant 0 : i32
    %c0_i32_1 = arith.constant 0 : i32
    return %arg1, %c0_i32, %c0_i32_0 : i32, i32, i32
  }
  func.func @transform_10(%arg0: i32, %arg1: i32) -> (i32, i32, i32) {
    %c0_i32 = arith.constant 0 : i32
    %c0_i32_0 = arith.constant 0 : i32
    %c0_i32_1 = arith.constant 0 : i32
    return %arg1, %c0_i32, %c0_i32_0 : i32, i32, i32
  }
  func.func @transform_11(%arg0: i32, %arg1: i32) -> (i32, i32, i32) {
    %c0_i32 = arith.constant 0 : i32
    %c0_i32_0 = arith.constant 0 : i32
    %c0_i32_1 = arith.constant 0 : i32
    return %arg1, %c0_i32, %c0_i32_0 : i32, i32, i32
  }
  func.func @transform_12(%arg0: i32, %arg1: i32) -> (i32, i32, i32) {
    %c0_i32 = arith.constant 0 : i32
    %c0_i32_0 = arith.constant 0 : i32
    %c0_i32_1 = arith.constant 0 : i32
    return %arg1, %c0_i32, %c0_i32_0 : i32, i32, i32
  }
  func.func @transform_13(%arg0: i32, %arg1: i32) -> (i32, i32) {
    %c0_i32 = arith.constant 0 : i32
    %c0_i32_0 = arith.constant 0 : i32
    %c0_i32_1 = arith.constant 0 : i32
    return %c0_i32, %c0_i32_0 : i32, i32
  }
  func.func @transform_14(%arg0: i32, %arg1: i32) -> (i32, i32) {
    %c0_i32 = arith.constant 0 : i32
    %c0_i32_0 = arith.constant 0 : i32
    %c0_i32_1 = arith.constant 0 : i32
    return %c0_i32, %c0_i32_0 : i32, i32
  }
  func.func @transform_15(%arg0: i32, %arg1: i32) -> (i32, i32, i32) {
    %c0_i32 = arith.constant 0 : i32
    %c0_i32_0 = arith.constant 0 : i32
    %c0_i32_1 = arith.constant 0 : i32
    return %arg0, %c0_i32, %c0_i32_0 : i32, i32, i32
  }
}

</mosaic_0001>

<llo_original>
// kernel: ecgclip_forward.5
$region0: #{ecgclip_forward.5}
  #allocation0 [shape = 'u32[]', space=smem, size = 0x4, offset = 0x4, fixed_abs, tag = 'smem constant byte address 0x4 - core index']
  #allocation1 [shape = 'u32[72,128]{1,0:T(1,128)}', space=vmem, size = 0x9000, scoped, tag = 'internal scratch']
  %s0 = inlined_call_operand.vmem [shape: f32[2,32], index: 0, kind: input, shape index: {}]
  %s1 = inlined_call_operand.vmem [shape: f32[2,32], index: 1, kind: input, shape index: {}]
  %s2 = inlined_call_operand.vmem [shape: bf16[32,48], index: 2, kind: input, shape index: {}]
  %s3 = inlined_call_operand.vmem [shape: f32[1,48], index: 3, kind: input, shape index: {}]
  %s4 = inlined_call_operand.vmem [shape: bf16[48,64], index: 4, kind: input, shape index: {}]
  %s5 = inlined_call_operand.vmem [shape: f32[1,64], index: 5, kind: input, shape index: {}]
  %s6 = inlined_call_operand.vmem [shape: bf16[64,32], index: 6, kind: input, shape index: {}]
  %s7 = inlined_call_operand.vmem [shape: f32[1,32], index: 7, kind: input, shape index: {}]
  %s8 = inlined_call_operand.hbm [shape: f32[2,32], index: 8, kind: output, shape index: {}]
  %s9 = sld [smem:[#allocation0]]
  $region42: #{ecgclip_forward.5} parent=0
    _
  %s11 = ssub.s32 1, %s9
  %s12 = scalar_select 0, %s11, %s9
  $region1: #{ecgclip_forward.5} parent=0
    #allocation2 [shape = 'u8[1024]{0}', space=vmem, size = 0x400, scoped, tag = 'output window, operand 0, single buffered']
    #allocation3 [shape = 's32[1]{0}', space=sflag, size = 0x4, scoped, tag = 'scoped memory for ecgclip_forward.5']
    %13 = vsyncpa [#allocation3], 0
    // Predicated region
    $region2: #{ecgclip_forward.5} parent=1 // pred_check
      _
    $region3: #{ecgclip_forward.5} parent=1 // pred_check_branch
      %15 = sbr.rel (0) target = $region5
    $region4: #{ecgclip_forward.5} parent=1 // pred_region
      _
    $region5: #{ecgclip_forward.5} parent=1 // pred_fallthru
      _
    // Predicated region
    $region6: #{ecgclip_forward.5} parent=1 // pred_check
      _
    $region7: #{ecgclip_forward.5} parent=1 // pred_check_branch
      %17 = sbr.rel (0) target = $region9
    $region8: #{ecgclip_forward.5} parent=1 // pred_region
      _
    $region9: #{ecgclip_forward.5} parent=1 // pred_fallthru
      _
    // Predicated region
    $region10: #{ecgclip_forward.5} parent=1 // pred_check
      _
    $region11: #{ecgclip_forward.5} parent=1 // pred_check_branch
      %19 = sbr.rel (0) target = $region13
    $region12: #{ecgclip_forward.5} parent=1 // pred_region
      _
    $region13: #{ecgclip_forward.5} parent=1 // pred_fallthru
      _
    // Predicated region
    $region14: #{ecgclip_forward.5} parent=1 // pred_check
      _
    $region15: #{ecgclip_forward.5} parent=1 // pred_check_branch
      %21 = sbr.rel (0) target = $region17
    $region16: #{ecgclip_forward.5} parent=1 // pred_region
      _
    $region17: #{ecgclip_forward.5} parent=1 // pred_fallthru
      _
    // Predicated region
    $region18: #{ecgclip_forward.5} parent=1 // pred_check
      _
    $region19: #{ecgclip_forward.5} parent=1 // pred_check_branch
      %23 = sbr.rel (0) target = $region21
    $region20: #{ecgclip_forward.5} parent=1 // pred_region
      _
    $region21: #{ecgclip_forward.5} parent=1 // pred_fallthru
      _
    // Predicated region
    $region22: #{ecgclip_forward.5} parent=1 // pred_check
      _
    $region23: #{ecgclip_forward.5} parent=1 // pred_check_branch
      %25 = sbr.rel (0) target = $region25
    $region24: #{ecgclip_forward.5} parent=1 // pred_region
      _
    $region25: #{ecgclip_forward.5} parent=1 // pred_fallthru
      _
    // Predicated region
    $region26: #{ecgclip_forward.5} parent=1 // pred_check
      _
    $region27: #{ecgclip_forward.5} parent=1 // pred_check_branch
      %27 = sbr.rel (0) target = $region29
    $region28: #{ecgclip_forward.5} parent=1 // pred_region
      _
    $region29: #{ecgclip_forward.5} parent=1 // pred_fallthru
      _
    // Predicated region
    $region30: #{ecgclip_forward.5} parent=1 // pred_check
      _
    $region31: #{ecgclip_forward.5} parent=1 // pred_check_branch
      %29 = sbr.rel (0) target = $region33
    $region32: #{ecgclip_forward.5} parent=1 // pred_region
      _
    $region33: #{ecgclip_forward.5} parent=1 // pred_fallthru
      _
    %v31 = vld [vmem:[%s0] sm:$0x3]
    %v32 = vld [vmem:[%s2] sm:$0xf]
    %v33 = vld [vmem:[%s2 + $0x4] sm:$0xf]
    %v34 = vld [vmem:[%s2 + $0x8] sm:$0xf]
    %v35 = vld [vmem:[%s2 + $0xc] sm:$0xf]
    %v36 = vpack.c.bf16 %v31, %v31
    %v37 = vld [vmem:[%s3] sm:$0x1]
    %v39 = vperm.slane %v37, 0
    %v45 = vunpack.c.l.b16 %v32
    %v46 = vunpack.c.l.b16 %v33
    %v47 = vunpack.c.l.b16 %v34
    %v48 = vunpack.c.l.b16 %v35
    %v49 = vpack.c.b16 %v46, %v45
    %v50 = vpack.c.b16 %v48, %v47
    %vm53 = vcmask 261120
    %v55 = vsel %vm53, %v36, 0
    %57 = vmatpush.bf16.msra.mxu0 0
    %58 = vmatpush.bf16.msra.mxu0 0
    %59 = vmatpush.bf16.msra.mxu0 0
    %60 = vmatpush.bf16.msra.mxu0 0
    %61 = vmatpush.bf16.msra.mxu0 0
    %62 = vmatpush.bf16.msra.mxu0 0
    %63 = vmatpush.bf16.msra.mxu0 %v50
    %64 = vmatpush.bf16.msra.mxu0 %v49
    %65 = vmatmul.bf16.gmra.mxu0 %v55
    %v66 = vpop.f32.mrf.mxu0
    %v67 = vadd.f32 %v39, %v66
    %v68 = vpop.f32.mrf.mxu0
    %69 = vdwg.mxu0
    %v70 = vld [vmem:[%s4] sm:$0xf]
    %v71 = vld [vmem:[%s4 + $0x4] sm:$0xf]
    %v72 = vld [vmem:[%s4 + $0x8] sm:$0xf]
    %v73 = vld [vmem:[%s4 + $0xc] sm:$0xf]
    %v74 = vld [vmem:[%s4 + $0x10] sm:$0xf]
    %v75 = vld [vmem:[%s4 + $0x14] sm:$0xf]
    %v76 = vpack.c.bf16 %v67, %v67
    %v77 = vld [vmem:[%s5] sm:$0x1]
    %v79 = vperm.slane %v77, 0
    %v87 = vunpack.c.l.b16 %v70
    %v88 = vunpack.c.l.b16 %v71
    %v89 = vunpack.c.l.b16 %v72
    %v90 = vunpack.c.l.b16 %v73
    %v91 = vunpack.c.l.b16 %v74
    %v92 = vunpack.c.l.b16 %v75
    %v93 = vpack.c.b16 %v88, %v87
    %v94 = vpack.c.b16 %v90, %v89
    %v95 = vpack.c.b16 %v92, %v91
    %vm99 = vcmask 392192
    %v101 = vsel %vm99, %v76, 0
    %103 = vmatpush.bf16.msra.mxu0 0
    %104 = vmatpush.bf16.msra.mxu0 0
    %105 = vmatpush.bf16.msra.mxu0 0
    %106 = vmatpush.bf16.msra.mxu0 0
    %107 = vmatpush.bf16.msra.mxu0 0
    %108 = vmatpush.bf16.msra.mxu0 %v95
    %109 = vmatpush.bf16.msra.mxu0 %v94
    %110 = vmatpush.bf16.msra.mxu0 %v93
    %111 = vmatmul.bf16.gmra.mxu0 %v101
    %v112 = vpop.f32.mrf.mxu0
    %v113 = vadd.f32 %v79, %v112
    %v114 = vpop.f32.mrf.mxu0
    %115 = vdwg.mxu0
    %v116 = vmul.f32 %v113, 0.5
    %v117 = vmul.f32 %v113, 0.70710677
    %v118 = vmul.f32 %v117, %v117
    %v119 = vmin.f32 16.0, %v118
    %v120 = vmul.f32 %v119, 2.1237322e-06
    %v121 = vadd.f32 %v120, 0.00028619796
    %v122 = vmul.f32 %v119, %v121
    %v123 = vadd.f32 %v122, 0.0036580483
    %v124 = vmul.f32 %v119, %v123
    %v125 = vadd.f32 %v124, 0.05243302
    %v126 = vmul.f32 %v119, %v125
    %v127 = vadd.f32 %v126, 0.18741608
    %v128 = vmul.f32 %v119, %v127
    %v129 = vadd.f32 %v128, 1.1283791
    %v130 = vmul.f32 %v117, %v129
    %v131 = vmul.f32 %v119, 3.8918573e-05
    %v132 = vadd.f32 %v131, 0.001143296
    %v133 = vmul.f32 %v119, %v132
    %v134 = vadd.f32 %v133, 0.014752088
    %v135 = vmul.f32 %v119, %v134
    %v136 = vadd.f32 %v135, 0.112945676
    %v137 = vmul.f32 %v119, %v136
    %v138 = vadd.f32 %v137, 0.4994258
    %v139 = vmul.f32 %v119, %v138
    %v140 = vadd.f32 %v139, 1.0
    %v141 = vrcp.pop %v140
    %v142 = vmul.f32 %v140, %v141
    %v143 = vsub.f32 1.0, %v142
    %v144 = vmul.f32 %v141, %v143
    %v145 = vadd.f32 %v141, %v144
    %vm146 = vweird.f32 %v140
    %vm147 = vweird.f32 %v141
    %vm148 = vmor %vm146, %vm147
    %v149 = vsel %vm148, %v141, %v145
    %v150 = vand.u32 2147483647, %v140
    %vm151 = vcmp.eq.f32.partialorder %v150, 8.507059e+37
    %v152 = vand.u32 %v140, 2147483648
    %v153 = vor.u32 1.1754944e-38, %v152
    %v154 = vsel %vm151, %v153, %v149
    %v155 = vmul.f32 %v130, %v154
    %v156 = vmin.f32 %v155, 1.0
    %v157 = vmax.f32 %v156, -1.0
    %v158 = vadd.f32 %v157, 1.0
    %v159 = vmul.f32 %v116, %v158
    %v160 = vld [vmem:[%s6] sm:$0xf]
    %v161 = vld [vmem:[%s6 + $0x4] sm:$0xf]
    %v162 = vld [vmem:[%s6 + $0x8] sm:$0xf]
    %v163 = vld [vmem:[%s6 + $0xc] sm:$0xf]
    %v164 = vld [vmem:[%s6 + $0x10] sm:$0xf]
    %v165 = vld [vmem:[%s6 + $0x14] sm:$0xf]
    %v166 = vld [vmem:[%s6 + $0x18] sm:$0xf]
    %v167 = vld [vmem:[%s6 + $0x1c] sm:$0xf]
    %v168 = vpack.c.bf16 %v159, %v159
    %v169 = vld [vmem:[%s7] sm:$0x1]
    %v171 = vperm.slane %v169, 0
    %v181 = vunpack.c.l.b16 %v160
    %v182 = vunpack.c.l.b16 %v161
    %v183 = vunpack.c.l.b16 %v162
    %v184 = vunpack.c.l.b16 %v163
    %v185 = vunpack.c.l.b16 %v164
    %v186 = vunpack.c.l.b16 %v165
    %v187 = vunpack.c.l.b16 %v166
    %v188 = vunpack.c.l.b16 %v167
    %v189 = vpack.c.b16 %v182, %v181
    %v190 = vpack.c.b16 %v184, %v183
    %v191 = vpack.c.b16 %v186, %v185
    %v192 = vpack.c.b16 %v188, %v187
    %vm197 = vcmask 523264
    %v199 = vsel %vm197, %v168, 0
    %201 = vmatpush.bf16.msra.mxu0 0
    %202 = vmatpush.bf16.msra.mxu0 0
    %203 = vmatpush.bf16.msra.mxu0 0
    %204 = vmatpush.bf16.msra.mxu0 0
    %205 = vmatpush.bf16.msra.mxu0 %v192
    %206 = vmatpush.bf16.msra.mxu0 %v191
    %207 = vmatpush.bf16.msra.mxu0 %v190
    %208 = vmatpush.bf16.msra.mxu0 %v189
    %209 = vmatmul.bf16.gmra.mxu0 %v199
    %v210 = vpop.f32.mrf.mxu0
    %v211 = vadd.f32 %v171, %v210
    %v212 = vpop.f32.mrf.mxu0
    %213 = vdwg.mxu0
    %v214 = vld [vmem:[%s1] sm:$0x3]
    %v215 = vadd.f32 %v214, %v211
    %vm216 = vcmask 254976
    %217 = vst.msk [vmem:[#allocation2] sm:$0x3] %vm216, %v215
    // Predicated region
    $region34: #{ecgclip_forward.5} parent=1 // pred_check
      _
    $region35: #{ecgclip_forward.5} parent=1 // pred_check_branch
      %219 = sbr.rel (0) target = $region37
    $region36: #{ecgclip_forward.5} parent=1 // pred_region
      %221 = vsyncadd [#allocation3], 0
      %s223 = sshll.u32 [#allocation2], 4
      %s224 = int_to_ptr.vmem [resolvable:$true] %s223
      %s225 = sshll.u32 %s8, 4
      %s226 = int_to_ptr.hbm [resolvable:$true] %s225
      %228 = dma.vmem_to_hbm [thread:$0]  %s224, 32, %s226, [#allocation3]
    $region37: #{ecgclip_forward.5} parent=1 // pred_fallthru
      _
    // Predicated region
    $region38: #{ecgclip_forward.5} parent=1 // pred_check
      _
    $region39: #{ecgclip_forward.5} parent=1 // pred_check_branch
      %230 = sbr.rel (0) target = $region41
    $region40: #{ecgclip_forward.5} parent=1 // pred_region
      %232 = dma.done [#allocation3], 32
    $region41: #{ecgclip_forward.5} parent=1 // pred_fallthru
      _
    %233 = vsyncpa [#allocation3], 1

// kernel: ecgclip_forward.4
$region0: #{ecgclip_forward.4}
  #allocation0 [shape = 'u32[]', space=smem, size = 0x4, offset = 0x4, fixed_abs, tag = 'smem constant byte address 0x4 - core index']
  #allocation1 [shape = 'u32[72,128]{1,0:T(1,128)}', space=vmem, size = 0x9000, scoped, tag = 'internal scratch']
  #allocation2 [shape = 'f32[8,32]{1,0:T(8,128)}', space=vmem, size = 0x1000, scoped, tag = 'scratch operand']
  #allocation3 [shape = 'bf16[8,96]{1,0:T(8,128)(2,1)}', space=vmem, size = 0x800, scoped, tag = 'scratch operand']
  #allocation4 [shape = 'bf16[8,32]{1,0:T(8,128)(2,1)}', space=vmem, size = 0x800, scoped, tag = 'scratch operand']
  %s0 = inlined_call_operand.vmem [shape: f32[16,32], index: 0, kind: input, shape index: {}]
  %s1 = inlined_call_operand.vmem [shape: f32[2,1,32], index: 1, kind: input, shape index: {}]
  %s2 = inlined_call_operand.vmem [shape: f32[2,1,32], index: 2, kind: input, shape index: {}]
  %s3 = inlined_call_operand.vmem [shape: bf16[2,32,96], index: 3, kind: input, shape index: {}]
  %s4 = inlined_call_operand.vmem [shape: f32[2,1,96], index: 4, kind: input, shape index: {}]
  %s5 = inlined_call_operand.vmem [shape: bf16[2,32,32], index: 5, kind: input, shape index: {}]
  %s6 = inlined_call_operand.vmem [shape: f32[2,1,32], index: 6, kind: input, shape index: {}]
  %s7 = inlined_call_operand.vmem [shape: f32[2,1,32], index: 7, kind: input, shape index: {}]
  %s8 = inlined_call_operand.vmem [shape: f32[2,1,32], index: 8, kind: input, shape index: {}]
  %s9 = inlined_call_operand.vmem [shape: bf16[2,32,64], index: 9, kind: input, shape index: {}]
  %s10 = inlined_call_operand.vmem [shape: f32[2,1,64], index: 10, kind: input, shape index: {}]
  %s11 = inlined_call_operand.vmem [shape: bf16[2,64,32], index: 11, kind: input, shape index: {}]
  %s12 = inlined_call_operand.vmem [shape: f32[2,1,32], index: 12, kind: input, shape index: {}]
  %s13 = inlined_call_operand.hbm [shape: f32[1,32], index: 13, kind: input, shape index: {}]
  %s14 = inlined_call_operand.hbm [shape: f32[1,32], index: 14, kind: input, shape index: {}]
  %s15 = inlined_call_operand.vmem [shape: f32[2,1,32], index: 15, kind: output, shape index: {}]
  %s16 = sld [smem:[#allocation0]]
  $region109: #{ecgclip_forward.4} parent=0
    _
  %s18 = ssub.s32 1, %s16
  %s19 = scalar_select 0, %s18, %s16
  $region1: #{ecgclip_forward.4} parent=0
    #allocation5 [shape = 'u8[512]{0}', space=vmem, size = 0x400, scoped, tag = 'input window, operand 13, single buffered']
    #allocation6 [shape = 's32[2]{0}', space=sflag, size = 0x8, scoped, tag = 'scoped memory for ecgclip_forward.4']
    #allocation7 [shape = 'u8[512]{0}', space=vmem, size = 0x400, scoped, tag = 'input window, operand 14, single buffered']
    #allocation8 [shape = 's32[1]{0}', space=sflag, size = 0x4, scoped, tag = 'scoped memory for ecgclip_forward.4']
    %20 = vsyncpa [#allocation6], 0
    %21 = vsyncpa [#allocation8], 0
    loop: start=0, step=1, limit=6
    $region2: #{ecgclip_forward.4} parent=1 // loop_pre_header
      _
    $region3: #{ecgclip_forward.4} parent=1 // loop_header
      %s23 = sphi 0, %s27
      %p24 = scmp.ge.s32.totalorder %s23, 6
      %s30 = sphi 0, %s42
      %s31 = sphi 0, %s38
      %s32 = sphi 0, %s30
      %s33 = sphi 0, %s31
      %s34 = sphi 0, %s32
      %s35 = sphi 0, %s33
      %s45 = sphi 0, %s47
      %s48 = sphi 0, %s45
      %s49 = sphi 0, %s48
      %s65 = sphi 0, %s49
      %s71 = sphi 0, %s73
      %s74 = sphi 0, %s71
      %s75 = sphi 0, %s74
      %s91 = sphi 0, %s75
      %s97 = sphi 0, %s99
      %s100 = sphi 0, %s97
      %s101 = sphi 0, %s100
      %s117 = sphi 0, %s101
      %s123 = sphi 0, %s125
      %s126 = sphi 0, %s123
      %s127 = sphi 0, %s126
      %s143 = sphi 0, %s127
      %s149 = sphi 0, %s151
      %s152 = sphi 0, %s149
      %s153 = sphi 0, %s152
      %s169 = sphi 0, %s153
      %s175 = sphi 0, %s177
      %s178 = sphi 0, %s175
      %s179 = sphi 0, %s178
      %s195 = sphi 0, %s179
      %s201 = sphi 0, %s203
      %s204 = sphi 0, %s201
      %s205 = sphi 0, %s204
      %s221 = sphi 0, %s205
      %s227 = sphi 0, %s229
      %s230 = sphi 0, %s227
      %s231 = sphi 0, %s230
      %s247 = sphi 0, %s231
      %s253 = sphi 0, %s255
      %s256 = sphi 0, %s253
      %s257 = sphi 0, %s256
      %s273 = sphi 0, %s257
      %s279 = sphi 0, %s281
      %s282 = sphi 0, %s279
      %s283 = sphi 0, %s282
      %s299 = sphi 0, %s283
      %s305 = sphi 0, %s307
      %s308 = sphi 0, %s305
      %s309 = sphi 0, %s308
      %s325 = sphi 0, %s309
      %s331 = sphi 0, %s333
      %s334 = sphi 0, %s331
      %s335 = sphi 0, %s334
      %s351 = sphi 0, %s335
      %s357 = sphi 0, %s359
      %s360 = sphi 0, %s357
      %s361 = sphi 0, %s360
      %s377 = sphi 0, %s361
      %s381 = sphi 0, %s381
      %s383 = sphi 0, %s381
      %s384 = sphi 0, %s383
      %s398 = sphi 0, %s384
      %s402 = sphi 0, %s402
      %s404 = sphi 0, %s402
      %s405 = sphi 0, %s404
      %s419 = sphi 0, %s405
      %s425 = sphi 0, %s427
      %s428 = sphi 0, %s425
      %s429 = sphi 0, %s428
      %s445 = sphi 0, %s429
    $region4: #{ecgclip_forward.4} parent=1 // loop_header_branch
      %26 = sbr.rel (%p24) target = $region8
    $region5: #{ecgclip_forward.4} parent=1 // loop_body
      %s28 = ssub.s32 %s23, 1
      %s29 = ssub.s32 %s23, 2
      %s36 = sadd.s32 1, %s31
      %p37 = scmp.ge.s32.totalorder %s36, 2
      %s38 = scalar_select %p37, 0, %s36
      %s39 = sadd.s32 1, %s30
      %s40 = scalar_select %p37, %s39, %s30
      %p41 = scmp.ge.s32.totalorder %s40, 2
      %s42 = scalar_select %p41, 0, %s40
      %s43 = ssub.s32 %s30, %s42
      %p44 = scmp.eq.s32.totalorder %s43, 0
      %s46 = sadd.s32 %s45, 1
      %s47 = scalar_select %p44, %s45, %s46
      %p50 = pneg %p44
      %p51 = scmp.eq.s32.totalorder %s23, 3
      %p52 = por %p50, %p51
      %p53 = scmp.ne.s32.totalorder %s45, %s48
      %p54 = scmp.eq.s32.totalorder %s23, 0
      %p55 = por %p53, %p54
      %p56 = scmp.ne.s32.totalorder %s45, %s48
      %p57 = scmp.eq.s32.totalorder %s28, 3
      %p58 = por %p56, %p57
      %p59 = scmp.ne.s32.totalorder %s48, %s49
      %p60 = scmp.eq.s32.totalorder %s28, 0
      %p61 = por %p59, %p60
      %p62 = scmp.ne.s32.totalorder %s48, %s49
      %p63 = scmp.eq.s32.totalorder %s29, 3
      %p64 = por %p62, %p63
      %p66 = scmp.ne.s32.totalorder %s49, %s65
      %p67 = scmp.eq.s32.totalorder %s29, 0
      %p68 = por %p66, %p67
      %s69 = ssub.s32 %s31, %s38
      %p70 = scmp.eq.s32.totalorder %s69, 0
      %s72 = sadd.s32 %s71, 1
      %s73 = scalar_select %p70, %s71, %s72
      %p76 = pneg %p70
      %p77 = scmp.eq.s32.totalorder %s23, 3
      %p78 = por %p76, %p77
      %p79 = scmp.ne.s32.totalorder %s71, %s74
      %p80 = scmp.eq.s32.totalorder %s23, 0
      %p81 = por %p79, %p80
      %p82 = scmp.ne.s32.totalorder %s71, %s74
      %p83 = scmp.eq.s32.totalorder %s28, 3
      %p84 = por %p82, %p83
      %p85 = scmp.ne.s32.totalorder %s74, %s75
      %p86 = scmp.eq.s32.totalorder %s28, 0
      %p87 = por %p85, %p86
      %p88 = scmp.ne.s32.totalorder %s74, %s75
      %p89 = scmp.eq.s32.totalorder %s29, 3
      %p90 = por %p88, %p89
      %p92 = scmp.ne.s32.totalorder %s75, %s91
      %p93 = scmp.eq.s32.totalorder %s29, 0
      %p94 = por %p92, %p93
      %s95 = ssub.s32 %s31, %s38
      %p96 = scmp.eq.s32.totalorder %s95, 0
      %s98 = sadd.s32 %s97, 1
      %s99 = scalar_select %p96, %s97, %s98
      %p102 = pneg %p96
      %p103 = scmp.eq.s32.totalorder %s23, 3
      %p104 = por %p102, %p103
      %p105 = scmp.ne.s32.totalorder %s97, %s100
      %p106 = scmp.eq.s32.totalorder %s23, 0
      %p107 = por %p105, %p106
      %p108 = scmp.ne.s32.totalorder %s97, %s100
      %p109 = scmp.eq.s32.totalorder %s28, 3
      %p110 = por %p108, %p109
      %p111 = scmp.ne.s32.totalorder %s100, %s101
      %p112 = scmp.eq.s32.totalorder %s28, 0
      %p113 = por %p111, %p112
      %p114 = scmp.ne.s32.totalorder %s100, %s101
      %p115 = scmp.eq.s32.totalorder %s29, 3
      %p116 = por %p114, %p115
      %p118 = scmp.ne.s32.totalorder %s101, %s117
      %p119 = scmp.eq.s32.totalorder %s29, 0
      %p120 = por %p118, %p119
      %s121 = ssub.s32 %s31, %s38
      %p122 = scmp.eq.s32.totalorder %s121, 0
      %s124 = sadd.s32 %s123, 1
      %s125 = scalar_select %p122, %s123, %s124
      %p128 = pneg %p122
      %p129 = scmp.eq.s32.totalorder %s23, 3
      %p130 = por %p128, %p129
      %p131 = scmp.ne.s32.totalorder %s123, %s126
      %p132 = scmp.eq.s32.totalorder %s23, 0
      %p133 = por %p131, %p132
      %p134 = scmp.ne.s32.totalorder %s123, %s126
      %p135 = scmp.eq.s32.totalorder %s28, 3
      %p136 = por %p134, %p135
      %p137 = scmp.ne.s32.totalorder %s126, %s127
      %p138 = scmp.eq.s32.totalorder %s28, 0
      %p139 = por %p137, %p138
      %p140 = scmp.ne.s32.totalorder %s126, %s127
      %p141 = scmp.eq.s32.totalorder %s29, 3
      %p142 = por %p140, %p141
      %p144 = scmp.ne.s32.totalorder %s127, %s143
      %p145 = scmp.eq.s32.totalorder %s29, 0
      %p146 = por %p144, %p145
      %s147 = ssub.s32 %s31, %s38
      %p148 = scmp.eq.s32.totalorder %s147, 0
      %s150 = sadd.s32 %s149, 1
      %s151 = scalar_select %p148, %s149, %s150
      %p154 = pneg %p148
      %p155 = scmp.eq.s32.totalorder %s23, 3
      %p156 = por %p154, %p155
      %p157 = scmp.ne.s32.totalorder %s149, %s152
      %p158 = scmp.eq.s32.totalorder %s23, 0
      %p159 = por %p157, %p158
      %p160 = scmp.ne.s32.totalorder %s149, %s152
      %p161 = scmp.eq.s32.totalorder %s28, 3
      %p162 = por %p160, %p161
      %p163 = scmp.ne.s32.totalorder %s152, %s153
      %p164 = scmp.eq.s32.totalorder %s28, 0
      %p165 = por %p163, %p164
      %p166 = scmp.ne.s32.totalorder %s152, %s153
      %p167 = scmp.eq.s32.totalorder %s29, 3
      %p168 = por %p166, %p167
      %p170 = scmp.ne.s32.totalorder %s153, %s169
      %p171 = scmp.eq.s32.totalorder %s29, 0
      %p172 = por %p170, %p171
      %s173 = ssub.s32 %s31, %s38
      %p174 = scmp.eq.s32.totalorder %s173, 0
      %s176 = sadd.s32 %s175, 1
      %s177 = scalar_select %p174, %s175, %s176
      %p180 = pneg %p174
      %p181 = scmp.eq.s32.totalorder %s23, 3
      %p182 = por %p180, %p181
      %p183 = scmp.ne.s32.totalorder %s175, %s178
      %p184 = scmp.eq.s32.totalorder %s23, 0
      %p185 = por %p183, %p184
      %p186 = scmp.ne.s32.totalorder %s175, %s178
      %p187 = scmp.eq.s32.totalorder %s28, 3
      %p188 = por %p186, %p187
      %p189 = scmp.ne.s32.totalorder %s178, %s179
      %p190 = scmp.eq.s32.totalorder %s28, 0
      %p191 = por %p189, %p190
      %p192 = scmp.ne.s32.totalorder %s178, %s179
      %p193 = scmp.eq.s32.totalorder %s29, 3
      %p194 = por %p192, %p193
      %p196 = scmp.ne.s32.totalorder %s179, %s195
      %p197 = scmp.eq.s32.totalorder %s29, 0
      %p198 = por %p196, %p197
      %s199 = ssub.s32 %s31, %s38
      %p200 = scmp.eq.s32.totalorder %s199, 0
      %s202 = sadd.s32 %s201, 1
      %s203 = scalar_select %p200, %s201, %s202
      %p206 = pneg %p200
      %p207 = scmp.eq.s32.totalorder %s23, 3
      %p208 = por %p206, %p207
      %p209 = scmp.ne.s32.totalorder %s201, %s204
      %p210 = scmp.eq.s32.totalorder %s23, 0
      %p211 = por %p209, %p210
      %p212 = scmp.ne.s32.totalorder %s201, %s204
      %p213 = scmp.eq.s32.totalorder %s28, 3
      %p214 = por %p212, %p213
      %p215 = scmp.ne.s32.totalorder %s204, %s205
      %p216 = scmp.eq.s32.totalorder %s28, 0
      %p217 = por %p215, %p216
      %p218 = scmp.ne.s32.totalorder %s204, %s205
      %p219 = scmp.eq.s32.totalorder %s29, 3
      %p220 = por %p218, %p219
      %p222 = scmp.ne.s32.totalorder %s205, %s221
      %p223 = scmp.eq.s32.totalorder %s29, 0
      %p224 = por %p222, %p223
      %s225 = ssub.s32 %s31, %s38
      %p226 = scmp.eq.s32.totalorder %s225, 0
      %s228 = sadd.s32 %s227, 1
      %s229 = scalar_select %p226, %s227, %s228
      %p232 = pneg %p226
      %p233 = scmp.eq.s32.totalorder %s23, 3
      %p234 = por %p232, %p233
      %p235 = scmp.ne.s32.totalorder %s227, %s230
      %p236 = scmp.eq.s32.totalorder %s23, 0
      %p237 = por %p235, %p236
      %p238 = scmp.ne.s32.totalorder %s227, %s230
      %p239 = scmp.eq.s32.totalorder %s28, 3
      %p240 = por %p238, %p239
      %p241 = scmp.ne.s32.totalorder %s230, %s231
      %p242 = scmp.eq.s32.totalorder %s28, 0
      %p243 = por %p241, %p242
      %p244 = scmp.ne.s32.totalorder %s230, %s231
      %p245 = scmp.eq.s32.totalorder %s29, 3
      %p246 = por %p244, %p245
      %p248 = scmp.ne.s32.totalorder %s231, %s247
      %p249 = scmp.eq.s32.totalorder %s29, 0
      %p250 = por %p248, %p249
      %s251 = ssub.s32 %s31, %s38
      %p252 = scmp.eq.s32.totalorder %s251, 0
      %s254 = sadd.s32 %s253, 1
      %s255 = scalar_select %p252, %s253, %s254
      %p258 = pneg %p252
      %p259 = scmp.eq.s32.totalorder %s23, 3
      %p260 = por %p258, %p259
      %p261 = scmp.ne.s32.totalorder %s253, %s256
      %p262 = scmp.eq.s32.totalorder %s23, 0
      %p263 = por %p261, %p262
      %p264 = scmp.ne.s32.totalorder %s253, %s256
      %p265 = scmp.eq.s32.totalorder %s28, 3
      %p266 = por %p264, %p265
      %p267 = scmp.ne.s32.totalorder %s256, %s257
      %p268 = scmp.eq.s32.totalorder %s28, 0
      %p269 = por %p267, %p268
      %p270 = scmp.ne.s32.totalorder %s256, %s257
      %p271 = scmp.eq.s32.totalorder %s29, 3
      %p272 = por %p270, %p271
      %p274 = scmp.ne.s32.totalorder %s257, %s273
      %p275 = scmp.eq.s32.totalorder %s29, 0
      %p276 = por %p274, %p275
      %s277 = ssub.s32 %s31, %s38
      %p278 = scmp.eq.s32.totalorder %s277, 0
      %s280 = sadd.s32 %s279, 1
      %s281 = scalar_select %p278, %s279, %s280
      %p284 = pneg %p278
      %p285 = scmp.eq.s32.totalorder %s23, 3
      %p286 = por %p284, %p285
      %p287 = scmp.ne.s32.totalorder %s279, %s282
      %p288 = scmp.eq.s32.totalorder %s23, 0
      %p289 = por %p287, %p288
      %p290 = scmp.ne.s32.totalorder %s279, %s282
      %p291 = scmp.eq.s32.totalorder %s28, 3
      %p292 = por %p290, %p291
      %p293 = scmp.ne.s32.totalorder %s282, %s283
      %p294 = scmp.eq.s32.totalorder %s28, 0
      %p295 = por %p293, %p294
      %p296 = scmp.ne.s32.totalorder %s282, %s283
      %p297 = scmp.eq.s32.totalorder %s29, 3
      %p298 = por %p296, %p297
      %p300 = scmp.ne.s32.totalorder %s283, %s299
      %p301 = scmp.eq.s32.totalorder %s29, 0
      %p302 = por %p300, %p301
      %s303 = ssub.s32 %s31, %s38
      %p304 = scmp.eq.s32.totalorder %s303, 0
      %s306 = sadd.s32 %s305, 1
      %s307 = scalar_select %p304, %s305, %s306
      %p310 = pneg %p304
      %p311 = scmp.eq.s32.totalorder %s23, 3
      %p312 = por %p310, %p311
      %p313 = scmp.ne.s32.totalorder %s305, %s308
      %p314 = scmp.eq.s32.totalorder %s23, 0
      %p315 = por %p313, %p314
      %p316 = scmp.ne.s32.totalorder %s305, %s308
      %p317 = scmp.eq.s32.totalorder %s28, 3
      %p318 = por %p316, %p317
      %p319 = scmp.ne.s32.totalorder %s308, %s309
      %p320 = scmp.eq.s32.totalorder %s28, 0
      %p321 = por %p319, %p320
      %p322 = scmp.ne.s32.totalorder %s308, %s309
      %p323 = scmp.eq.s32.totalorder %s29, 3
      %p324 = por %p322, %p323
      %p326 = scmp.ne.s32.totalorder %s309, %s325
      %p327 = scmp.eq.s32.totalorder %s29, 0
      %p328 = por %p326, %p327
      %s329 = ssub.s32 %s31, %s38
      %p330 = scmp.eq.s32.totalorder %s329, 0
      %s332 = sadd.s32 %s331, 1
      %s333 = scalar_select %p330, %s331, %s332
      %p336 = pneg %p330
      %p337 = scmp.eq.s32.totalorder %s23, 3
      %p338 = por %p336, %p337
      %p339 = scmp.ne.s32.totalorder %s331, %s334
      %p340 = scmp.eq.s32.totalorder %s23, 0
      %p341 = por %p339, %p340
      %p342 = scmp.ne.s32.totalorder %s331, %s334
      %p343 = scmp.eq.s32.totalorder %s28, 3
      %p344 = por %p342, %p343
      %p345 = scmp.ne.s32.totalorder %s334, %s335
      %p346 = scmp.eq.s32.totalorder %s28, 0
      %p347 = por %p345, %p346
      %p348 = scmp.ne.s32.totalorder %s334, %s335
      %p349 = scmp.eq.s32.totalorder %s29, 3
      %p350 = por %p348, %p349
      %p352 = scmp.ne.s32.totalorder %s335, %s351
      %p353 = scmp.eq.s32.totalorder %s29, 0
      %p354 = por %p352, %p353
      %s355 = ssub.s32 %s31, %s38
      %p356 = scmp.eq.s32.totalorder %s355, 0
      %s358 = sadd.s32 %s357, 1
      %s359 = scalar_select %p356, %s357, %s358
      %p362 = pneg %p356
      %p363 = scmp.eq.s32.totalorder %s23, 3
      %p364 = por %p362, %p363
      %p365 = scmp.ne.s32.totalorder %s357, %s360
      %p366 = scmp.eq.s32.totalorder %s23, 0
      %p367 = por %p365, %p366
      %p368 = scmp.ne.s32.totalorder %s357, %s360
      %p369 = scmp.eq.s32.totalorder %s28, 3
      %p370 = por %p368, %p369
      %p371 = scmp.ne.s32.totalorder %s360, %s361
      %p372 = scmp.eq.s32.totalorder %s28, 0
      %p373 = por %p371, %p372
      %p374 = scmp.ne.s32.totalorder %s360, %s361
      %p375 = scmp.eq.s32.totalorder %s29, 3
      %p376 = por %p374, %p375
      %p378 = scmp.ne.s32.totalorder %s361, %s377
      %p379 = scmp.eq.s32.totalorder %s29, 0
      %p380 = por %p378, %p379
      %s382 = sadd.s32 %s381, 1
      %p385 = scmp.eq.s32.totalorder %s23, 3
      %p386 = scmp.ne.s32.totalorder %s381, %s383
      %p387 = scmp.eq.s32.totalorder %s23, 0
      %p388 = por %p386, %p387
      %p389 = scmp.ne.s32.totalorder %s381, %s383
      %p390 = scmp.eq.s32.totalorder %s28, 3
      %p391 = por %p389, %p390
      %p392 = scmp.ne.s32.totalorder %s383, %s384
      %p393 = scmp.eq.s32.totalorder %s28, 0
      %p394 = por %p392, %p393
      %p395 = scmp.ne.s32.totalorder %s383, %s384
      %p396 = scmp.eq.s32.totalorder %s29, 3
      %p397 = por %p395, %p396
      %p399 = scmp.ne.s32.totalorder %s384, %s398
      %p400 = scmp.eq.s32.totalorder %s29, 0
      %p401 = por %p399, %p400
      %s403 = sadd.s32 %s402, 1
      %p406 = scmp.eq.s32.totalorder %s23, 3
      %p407 = scmp.ne.s32.totalorder %s402, %s404
      %p408 = scmp.eq.s32.totalorder %s23, 0
      %p409 = por %p407, %p408
      %p410 = scmp.ne.s32.totalorder %s402, %s404
      %p411 = scmp.eq.s32.totalorder %s28, 3
      %p412 = por %p410, %p411
      %p413 = scmp.ne.s32.totalorder %s404, %s405
      %p414 = scmp.eq.s32.totalorder %s28, 0
      %p415 = por %p413, %p414
      %p416 = scmp.ne.s32.totalorder %s404, %s405
      %p417 = scmp.eq.s32.totalorder %s29, 3
      %p418 = por %p416, %p417
      %p420 = scmp.ne.s32.totalorder %s405, %s419
      %p421 = scmp.eq.s32.totalorder %s29, 0
      %p422 = por %p420, %p421
      %s423 = ssub.s32 %s30, %s42
      %p424 = scmp.eq.s32.totalorder %s423, 0
      %s426 = sadd.s32 %s425, 1
      %s427 = scalar_select %p424, %s425, %s426
      %p430 = pneg %p424
      %p431 = scmp.eq.s32.totalorder %s23, 3
      %p432 = por %p430, %p431
      %p433 = scmp.ne.s32.totalorder %s425, %s428
      %p434 = scmp.eq.s32.totalorder %s23, 0
      %p435 = por %p433, %p434
      %p436 = scmp.ne.s32.totalorder %s425, %s428
      %p437 = scmp.eq.s32.totalorder %s28, 3
      %p438 = por %p436, %p437
      %p439 = scmp.ne.s32.totalorder %s428, %s429
      %p440 = scmp.eq.s32.totalorder %s28, 0
      %p441 = por %p439, %p440
      %p442 = scmp.ne.s32.totalorder %s428, %s429
      %p443 = scmp.eq.s32.totalorder %s29, 3
      %p444 = por %p442, %p443
      %p446 = scmp.ne.s32.totalorder %s429, %s445
      %p447 = scmp.eq.s32.totalorder %s29, 0
      %p448 = por %p446, %p447
      %p449 = scmp.le.s32.totalorder 1, %s23
      %p450 = scmp.lt.s32.totalorder %s23, 5
      %p451 = pnand %p449, %p450
      %p452 = pneg %p451
      // Predicated region
      $region9: #{ecgclip_forward.4} parent=5 // pred_check
        _
      $region10: #{ecgclip_forward.4} parent=5 // pred_check_branch
        %454 = sbr.rel (%p451) target = $region12
      $region11: #{ecgclip_forward.4} parent=5 // pred_region
        %s455 = ssub.s32 %s23, 1
        // Predicated region
        $region13: #{ecgclip_forward.4} parent=11 // pred_check
          %p456 = pneg %p394
        $region14: #{ecgclip_forward.4} parent=11 // pred_check_branch
          %458 = sbr.rel (%p456) target = $region16
        $region15: #{ecgclip_forward.4} parent=11 // pred_region
          %460 = vsyncadd [#allocation6], 0
          %s462 = sshll.u32 %s13, 4
          %s463 = int_to_ptr.hbm [resolvable:$true] %s462
          %s464 = sshll.u32 [#allocation5], 4
          %s465 = int_to_ptr.vmem [resolvable:$true] %s464
          %467 = dma.hbm_to_vmem [thread:$0]  %s463, 16, %s465, [#allocation6]
        $region16: #{ecgclip_forward.4} parent=11 // pred_fallthru
          _
        // Predicated region
        $region17: #{ecgclip_forward.4} parent=11 // pred_check
          %p468 = pneg %p415
        $region18: #{ecgclip_forward.4} parent=11 // pred_check_branch
          %470 = sbr.rel (%p468) target = $region20
        $region19: #{ecgclip_forward.4} parent=11 // pred_region
          %472 = vsyncadd [#allocation8], 0
          %s474 = sshll.u32 %s14, 4
          %s475 = int_to_ptr.hbm [resolvable:$true] %s474
          %s476 = sshll.u32 [#allocation7], 4
          %s477 = int_to_ptr.vmem [resolvable:$true] %s476
          %479 = dma.hbm_to_vmem [thread:$0]  %s475, 16, %s477, [#allocation8]
        $region20: #{ecgclip_forward.4} parent=11 // pred_fallthru
          _
      $region12: #{ecgclip_forward.4} parent=5 // pred_fallthru
        _
      %p480 = scmp.lt.s32.totalorder %s23, 4
      // Predicated region
      $region21: #{ecgclip_forward.4} parent=5 // pred_check
        %p481 = pneg %p480
      $region22: #{ecgclip_forward.4} parent=5 // pred_check_branch
        %483 = sbr.rel (%p481) target = $region24
      $region23: #{ecgclip_forward.4} parent=5 // pred_region
        // Predicated region
        $region25: #{ecgclip_forward.4} parent=23 // pred_check
          %p484 = pneg %p55
        $region26: #{ecgclip_forward.4} parent=23 // pred_check_branch
          %486 = sbr.rel (%p484) target = $region28
        $region27: #{ecgclip_forward.4} parent=23 // pred_region
          %p487 = scmp.lt.s32.totalorder %s30, 1
          %s488 = scalar_select %p487, %s30, 1
          %s489 = smul.addr %s488, 8
          %s490 = scalar_lea.vmem %s0, %s489
        $region28: #{ecgclip_forward.4} parent=23 // pred_fallthru
          _
        // Predicated region
        $region29: #{ecgclip_forward.4} parent=23 // pred_check
          %p491 = pneg %p81
        $region30: #{ecgclip_forward.4} parent=23 // pred_check_branch
          %493 = sbr.rel (%p491) target = $region32
        $region31: #{ecgclip_forward.4} parent=23 // pred_region
          %p494 = scmp.lt.s32.totalorder %s31, 1
          %s495 = scalar_select %p494, %s31, 1
          %s496 = scalar_lea.vmem %s1, %s495
        $region32: #{ecgclip_forward.4} parent=23 // pred_fallthru
          _
        // Predicated region
        $region33: #{ecgclip_forward.4} parent=23 // pred_check
          %p497 = pneg %p107
        $region34: #{ecgclip_forward.4} parent=23 // pred_check_branch
          %499 = sbr.rel (%p497) target = $region36
        $region35: #{ecgclip_forward.4} parent=23 // pred_region
          %p500 = scmp.lt.s32.totalorder %s31, 1
          %s501 = scalar_select %p500, %s31, 1
          %s502 = scalar_lea.vmem %s2, %s501
        $region36: #{ecgclip_forward.4} parent=23 // pred_fallthru
          _
        // Predicated region
        $region37: #{ecgclip_forward.4} parent=23 // pred_check
          %p503 = pneg %p133
        $region38: #{ecgclip_forward.4} parent=23 // pred_check_branch
          %505 = sbr.rel (%p503) target = $region40
        $region39: #{ecgclip_forward.4} parent=23 // pred_region
          %p506 = scmp.lt.s32.totalorder %s31, 1
          %s507 = scalar_select %p506, %s31, 1
          %s508 = smul.addr %s507, 4
          %s509 = smul.addr %s508, 4
          %s510 = scalar_lea.vmem %s3, %s509
        $region40: #{ecgclip_forward.4} parent=23 // pred_fallthru
          _
        // Predicated region
        $region41: #{ecgclip_forward.4} parent=23 // pred_check
          %p511 = pneg %p159
        $region42: #{ecgclip_forward.4} parent=23 // pred_check_branch
          %513 = sbr.rel (%p511) target = $region44
        $region43: #{ecgclip_forward.4} parent=23 // pred_region
          %p514 = scmp.lt.s32.totalorder %s31, 1
          %s515 = scalar_select %p514, %s31, 1
          %s516 = scalar_lea.vmem %s4, %s515
        $region44: #{ecgclip_forward.4} parent=23 // pred_fallthru
          _
        // Predicated region
        $region45: #{ecgclip_forward.4} parent=23 // pred_check
          %p517 = pneg %p185
        $region46: #{ecgclip_forward.4} parent=23 // pred_check_branch
          %519 = sbr.rel (%p517) target = $region48
        $region47: #{ecgclip_forward.4} parent=23 // pred_region
          %p520 = scmp.lt.s32.totalorder %s31, 1
          %s521 = scalar_select %p520, %s31, 1
          %s522 = smul.addr %s521, 4
          %s523 = smul.addr %s522, 4
          %s524 = scalar_lea.vmem %s5, %s523
        $region48: #{ecgclip_forward.4} parent=23 // pred_fallthru
          _
        // Predicated region
        $region49: #{ecgclip_forward.4} parent=23 // pred_check
          %p525 = pneg %p211
        $region50: #{ecgclip_forward.4} parent=23 // pred_check_branch
          %527 = sbr.rel (%p525) target = $region52
        $region51: #{ecgclip_forward.4} parent=23 // pred_region
          %p528 = scmp.lt.s32.totalorder %s31, 1
          %s529 = scalar_select %p528, %s31, 1
          %s530 = scalar_lea.vmem %s6, %s529
        $region52: #{ecgclip_forward.4} parent=23 // pred_fallthru
          _
        // Predicated region
        $region53: #{ecgclip_forward.4} parent=23 // pred_check
          %p531 = pneg %p237
        $region54: #{ecgclip_forward.4} parent=23 // pred_check_branch
          %533 = sbr.rel (%p531) target = $region56
        $region55: #{ecgclip_forward.4} parent=23 // pred_region
          %p534 = scmp.lt.s32.totalorder %s31, 1
          %s535 = scalar_select %p534, %s31, 1
          %s536 = scalar_lea.vmem %s7, %s535
        $region56: #{ecgclip_forward.4} parent=23 // pred_fallthru
          _
        // Predicated region
        $region57: #{ecgclip_forward.4} parent=23 // pred_check
          %p537 = pneg %p263
        $region58: #{ecgclip_forward.4} parent=23 // pred_check_branch
          %539 = sbr.rel (%p537) target = $region60
        $region59: #{ecgclip_forward.4} parent=23 // pred_region
          %p540 = scmp.lt.s32.totalorder %s31, 1
          %s541 = scalar_select %p540, %s31, 1
          %s542 = scalar_lea.vmem %s8, %s541
        $region60: #{ecgclip_forward.4} parent=23 // pred_fallthru
          _
        // Predicated region
        $region61: #{ecgclip_forward.4} parent=23 // pred_check
          %p543 = pneg %p289
        $region62: #{ecgclip_forward.4} parent=23 // pred_check_branch
          %545 = sbr.rel (%p543) target = $region64
        $region63: #{ecgclip_forward.4} parent=23 // pred_region
          %p546 = scmp.lt.s32.totalorder %s31, 1
          %s547 = scalar_select %p546, %s31, 1
          %s548 = smul.addr %s547, 4
          %s549 = smul.addr %s548, 4
          %s550 = scalar_lea.vmem %s9, %s549
        $region64: #{ecgclip_forward.4} parent=23 // pred_fallthru
          _
        // Predicated region
        $region65: #{ecgclip_forward.4} parent=23 // pred_check
          %p551 = pneg %p315
        $region66: #{ecgclip_forward.4} parent=23 // pred_check_branch
          %553 = sbr.rel (%p551) target = $region68
        $region67: #{ecgclip_forward.4} parent=23 // pred_region
          %p554 = scmp.lt.s32.totalorder %s31, 1
          %s555 = scalar_select %p554, %s31, 1
          %s556 = scalar_lea.vmem %s10, %s555
        $region68: #{ecgclip_forward.4} parent=23 // pred_fallthru
          _
        // Predicated region
        $region69: #{ecgclip_forward.4} parent=23 // pred_check
          %p557 = pneg %p341
        $region70: #{ecgclip_forward.4} parent=23 // pred_check_branch
          %559 = sbr.rel (%p557) target = $region72
        $region71: #{ecgclip_forward.4} parent=23 // pred_region
          %p560 = scmp.lt.s32.totalorder %s31, 1
          %s561 = scalar_select %p560, %s31, 1
          %s562 = smul.addr %s561, 8
          %s563 = smul.addr %s562, 4
          %s564 = scalar_lea.vmem %s11, %s563
        $region72: #{ecgclip_forward.4} parent=23 // pred_fallthru
          _
        // Predicated region
        $region73: #{ecgclip_forward.4} parent=23 // pred_check
          %p565 = pneg %p367
        $region74: #{ecgclip_forward.4} parent=23 // pred_check_branch
          %567 = sbr.rel (%p565) target = $region76
        $region75: #{ecgclip_forward.4} parent=23 // pred_region
          %p568 = scmp.lt.s32.totalorder %s31, 1
          %s569 = scalar_select %p568, %s31, 1
          %s570 = scalar_lea.vmem %s12, %s569
        $region76: #{ecgclip_forward.4} parent=23 // pred_fallthru
          _
      $region24: #{ecgclip_forward.4} parent=5 // pred_fallthru
        _
      %p571 = scmp.le.s32.totalorder 1, %s23
      %p572 = scmp.lt.s32.totalorder %s23, 5
      %p573 = pnand %p571, %p572
      %p574 = pneg %p573
      // Predicated region
      $region77: #{ecgclip_forward.4} parent=5 // pred_check
        _
      $region78: #{ecgclip_forward.4} parent=5 // pred_check_branch
        %576 = sbr.rel (%p573) target = $region80
      $region79: #{ecgclip_forward.4} parent=5 // pred_region
        %s577 = ssub.s32 %s23, 1
        // Predicated region
        $region81: #{ecgclip_forward.4} parent=79 // pred_check
          %p578 = pneg %p394
        $region82: #{ecgclip_forward.4} parent=79 // pred_check_branch
          %580 = sbr.rel (%p578) target = $region84
        $region83: #{ecgclip_forward.4} parent=79 // pred_region
          %582 = dma.done [#allocation6], 16
        $region84: #{ecgclip_forward.4} parent=79 // pred_fallthru
          _
        // Predicated region
        $region85: #{ecgclip_forward.4} parent=79 // pred_check
          %p583 = pneg %p415
        $region86: #{ecgclip_forward.4} parent=79 // pred_check_branch
          %585 = sbr.rel (%p583) target = $region88
        $region87: #{ecgclip_forward.4} parent=79 // pred_region
          %587 = dma.done [#allocation8], 16
        $region88: #{ecgclip_forward.4} parent=79 // pred_fallthru
          _
        %p588 = scmp.lt.s32.totalorder %s32, 1
        %s589 = scalar_select %p588, %s32, 1
        %s590 = smul.addr %s589, 8
        %s591 = scalar_lea.vmem %s0, %s590
        %p592 = pneg %p61
        %p593 = pneg %p58
        %p594 = scmp.lt.s32.totalorder %s33, 1
        %s595 = scalar_select %p594, %s33, 1
        %s596 = scalar_lea.vmem %s1, %s595
        %p597 = pneg %p87
        %p598 = pneg %p84
        %p599 = scmp.lt.s32.totalorder %s33, 1
        %s600 = scalar_select %p599, %s33, 1
        %s601 = scalar_lea.vmem %s2, %s600
        %p602 = pneg %p113
        %p603 = pneg %p110
        %p604 = scmp.lt.s32.totalorder %s33, 1
        %s605 = scalar_select %p604, %s33, 1
        %s606 = smul.addr %s605, 4
        %s607 = smul.addr %s606, 4
        %s608 = scalar_lea.vmem %s3, %s607
        %p609 = pneg %p139
        %p610 = pneg %p136
        %p611 = scmp.lt.s32.totalorder %s33, 1
        %s612 = scalar_select %p611, %s33, 1
        %s613 = scalar_lea.vmem %s4, %s612
        %p614 = pneg %p165
        %p615 = pneg %p162
        %p616 = scmp.lt.s32.totalorder %s33, 1
        %s617 = scalar_select %p616, %s33, 1
        %s618 = smul.addr %s617, 4
        %s619 = smul.addr %s618, 4
        %s620 = scalar_lea.vmem %s5, %s619
        %p621 = pneg %p191
        %p622 = pneg %p188
        %p623 = scmp.lt.s32.totalorder %s33, 1
        %s624 = scalar_select %p623, %s33, 1
        %s625 = scalar_lea.vmem %s6, %s624
        %p626 = pneg %p217
        %p627 = pneg %p214
        %p628 = scmp.lt.s32.totalorder %s33, 1
        %s629 = scalar_select %p628, %s33, 1
        %s630 = scalar_lea.vmem %s7, %s629
        %p631 = pneg %p243
        %p632 = pneg %p240
        %p633 = scmp.lt.s32.totalorder %s33, 1
        %s634 = scalar_select %p633, %s33, 1
        %s635 = scalar_lea.vmem %s8, %s634
        %p636 = pneg %p269
        %p637 = pneg %p266
        %p638 = scmp.lt.s32.totalorder %s33, 1
        %s639 = scalar_select %p638, %s33, 1
        %s640 = smul.addr %s639, 4
        %s641 = smul.addr %s640, 4
        %s642 = scalar_lea.vmem %s9, %s641
        %p643 = pneg %p295
        %p644 = pneg %p292
        %p645 = scmp.lt.s32.totalorder %s33, 1
        %s646 = scalar_select %p645, %s33, 1
        %s647 = scalar_lea.vmem %s10, %s646
        %p648 = pneg %p321
        %p649 = pneg %p318
        %p650 = scmp.lt.s32.totalorder %s33, 1
        %s651 = scalar_select %p650, %s33, 1
        %s652 = smul.addr %s651, 8
        %s653 = smul.addr %s652, 4
        %s654 = scalar_lea.vmem %s11, %s653
        %p655 = pneg %p347
        %p656 = pneg %p344
        %p657 = scmp.lt.s32.totalorder %s33, 1
        %s658 = scalar_select %p657, %s33, 1
        %s659 = scalar_lea.vmem %s12, %s658
        %p660 = pneg %p373
        %p661 = pneg %p370
        %p662 = pneg %p394
        %p663 = pneg %p391
        %p664 = pneg %p415
        %p665 = pneg %p412
        %p666 = pneg %p441
        %p667 = pneg %p438
        %p668 = scmp.lt.s32.totalorder %s32, 1
        %s669 = scalar_select %p668, %s32, 1
        %s670 = scalar_lea.vmem %s15, %s669
        %p671 = scmp.lt.s32.totalorder %s32, 1
        %s672 = scalar_select %p671, %s32, 1
        %s673 = smul.addr %s672, 8
        %s674 = scalar_lea.vmem %s0, %s673
        %p675 = scmp.lt.s32.totalorder %s33, 1
        %s676 = scalar_select %p675, %s33, 1
        %s677 = scalar_lea.vmem %s1, %s676
        %p678 = scmp.lt.s32.totalorder %s33, 1
        %s679 = scalar_select %p678, %s33, 1
        %s680 = scalar_lea.vmem %s2, %s679
        %p681 = scmp.lt.s32.totalorder %s33, 1
        %s682 = scalar_select %p681, %s33, 1
        %s683 = smul.addr %s682, 4
        %s684 = smul.addr %s683, 4
        %s685 = scalar_lea.vmem %s3, %s684
        %p686 = scmp.lt.s32.totalorder %s33, 1
        %s687 = scalar_select %p686, %s33, 1
        %s688 = scalar_lea.vmem %s4, %s687
        %p689 = scmp.lt.s32.totalorder %s33, 1
        %s690 = scalar_select %p689, %s33, 1
        %s691 = smul.addr %s690, 4
        %s692 = smul.addr %s691, 4
        %s693 = scalar_lea.vmem %s5, %s692
        %p694 = scmp.lt.s32.totalorder %s33, 1
        %s695 = scalar_select %p694, %s33, 1
        %s696 = scalar_lea.vmem %s6, %s695
        %p697 = scmp.lt.s32.totalorder %s33, 1
        %s698 = scalar_select %p697, %s33, 1
        %s699 = scalar_lea.vmem %s7, %s698
        %p700 = scmp.lt.s32.totalorder %s33, 1
        %s701 = scalar_select %p700, %s33, 1
        %s702 = scalar_lea.vmem %s8, %s701
        %p703 = scmp.lt.s32.totalorder %s33, 1
        %s704 = scalar_select %p703, %s33, 1
        %s705 = smul.addr %s704, 4
        %s706 = smul.addr %s705, 4
        %s707 = scalar_lea.vmem %s9, %s706
        %p708 = scmp.lt.s32.totalorder %s33, 1
        %s709 = scalar_select %p708, %s33, 1
        %s710 = scalar_lea.vmem %s10, %s709
        %p711 = scmp.lt.s32.totalorder %s33, 1
        %s712 = scalar_select %p711, %s33, 1
        %s713 = smul.addr %s712, 8
        %s714 = smul.addr %s713, 4
        %s715 = scalar_lea.vmem %s11, %s714
        %p716 = scmp.lt.s32.totalorder %s33, 1
        %s717 = scalar_select %p716, %s33, 1
        %s718 = scalar_lea.vmem %s12, %s717
        %p719 = scmp.lt.s32.totalorder %s32, 1
        %s720 = scalar_select %p719, %s32, 1
        %s721 = scalar_lea.vmem %s15, %s720
        %p723 = scmp.eq.s32.totalorder %s33, 0
        // Predicated region
        $region89: #{ecgclip_forward.4} parent=79 // pred_check
          %p724 = pneg %p723
        $region90: #{ecgclip_forward.4} parent=79 // pred_check_branch
          %726 = sbr.rel (%p724) target = $region92
        $region91: #{ecgclip_forward.4} parent=79 // pred_region
          %v727 = vld [vmem:[%s674] sm:$0xff]
          %vm728 = vcmask 261120
          %729 = vst.msk [vmem:[#allocation2] sm:$0xff] %vm728, %v727
        $region92: #{ecgclip_forward.4} parent=79 // pred_fallthru
          _
        %v730 = vld [vmem:[#allocation2] sm:$0xff]
        %v731 = vld [vmem:[%s677] sm:$0x1]
        %v732 = vld [vmem:[%s680] sm:$0x1]
        %vm733 = vcmask 261120
        %v734 = vsel %vm733, %v730, 0.0
        %735 = vadd.xlane.f32.xlu0 %v734
        %v736 = vpop.xlane.xlu0 %735
        %v737 = vrcp.pop 32.0
        %v738 = vmul.f32 32.0, %v737
        %v739 = vsub.f32 1.0, %v738
        %v740 = vmul.f32 %v737, %v739
        %v741 = vadd.f32 %v737, %v740
        %vm742 = vweird.f32 %v737
        %v743 = vsel %vm742, %v737, %v741
        %v744 = vmul.f32 %v736, %v743
        %v745 = vsub.f32 %v730, %v744
        %v746 = vmul.f32 %v745, %v745
        %v747 = vsel %vm733, %v746, 0.0
        %748 = vadd.xlane.f32.xlu0 %v747
        %v749 = vpop.xlane.xlu0 %748
        %v750 = vmul.f32 %v749, %v743
        %v751 = vadd.f32 %v750, 1e-05
        %v752 = vrsqrt.pop %v751
        %v753 = vmul.f32 %v752, %v751
        %v754 = vmul.f32 %v753, %v752
        %v755 = vmul.f32 0.5, %v754
        %v756 = vsub.f32 1.5, %v755
        %v757 = vmul.f32 %v752, %v756
        %vm758 = vweird.f32 %v751
        %vm759 = vweird.f32 %v752
        %vm760 = vmor %vm758, %vm759
        %v761 = vsel %vm760, %v752, %v757
        %v762 = vmul.f32 %v745, %v761
        %v764 = vperm.slane %v731, 0
        %v766 = vmul.f32 %v762, %v764
        %v768 = vperm.slane %v732, 0
        %v770 = vadd.f32 %v766, %v768
        %v771 = vld [vmem:[%s685] sm:$0xf]
        %v772 = vld [vmem:[%s685 + $0x4] sm:$0xf]
        %v773 = vld [vmem:[%s685 + $0x8] sm:$0xf]
        %v774 = vld [vmem:[%s685 + $0xc] sm:$0xf]
        %v775 = vpack.c.bf16 %v770, %v770
        %v776 = vld [vmem:[%s688] sm:$0x1]
        %v778 = vperm.slane %v776, 0
        %v784 = vunpack.c.l.b16 %v771
        %v785 = vunpack.c.l.b16 %v772
        %v786 = vunpack.c.l.b16 %v773
        %v787 = vunpack.c.l.b16 %v774
        %v788 = vpack.c.b16 %v785, %v784
        %v789 = vpack.c.b16 %v787, %v786
        %v793 = vsel %vm733, %v775, 0
        %795 = vmatpush.bf16.msra.mxu0 0
        %796 = vmatpush.bf16.msra.mxu0 0
        %797 = vmatpush.bf16.msra.mxu0 0
        %798 = vmatpush.bf16.msra.mxu0 0
        %799 = vmatpush.bf16.msra.mxu0 0
        %800 = vmatpush.bf16.msra.mxu0 0
        %801 = vmatpush.bf16.msra.mxu0 %v789
        %802 = vmatpush.bf16.msra.mxu0 %v788
        %803 = vmatmul.bf16.gmra.mxu0 %v793
        %v804 = vpop.f32.mrf.mxu0
        %v805 = vadd.f32 %v778, %v804
        %v806 = vpop.f32.mrf.mxu0
        %807 = vdwg.mxu0
        %v808 = vpack.c.bf16 %v805, %v805
        %vm809 = vcmask 781312
        %810 = vst.msk [vmem:[#allocation3] sm:$0xf] %vm809, %v808
        %v811 = vld [vmem:[#allocation3] sm:$0xf]
        %v813 = vunpack.c.l.b16 %v811
        %v814 = vpack.c.b16 %v813, %v813
        %815 = vrot.lane.b32.xlu0 %v814, 96
        %v816 = vpop.permute.xlu0 %815
        %vm817 = vcmask 64512
        %v819 = vsel %vm817, %v811, 0
        %v822 = vsel %vm817, %v816, 0
        %824 = vmatpush.bf16.xpose.msra.mxu0 0
        %825 = vmatpush.bf16.xpose.msra.mxu0 0
        %826 = vmatpush.bf16.xpose.msra.mxu0 0
        %827 = vmatpush.bf16.xpose.msra.mxu0 0
        %828 = vmatpush.bf16.xpose.msra.mxu0 0
        %829 = vmatpush.bf16.xpose.msra.mxu0 0
        %830 = vmatpush.bf16.xpose.msra.mxu0 0
        %831 = vmatpush.bf16.xpose.msra.mxu0 %v822
        %832 = vmatmul.bf16.gmra.mxu0 %v819
        %v833 = vpop.f32.mrf.mxu0
        %v834 = vadd.f32 0.0, %v833
        %v835 = vpop.f32.mrf.mxu0
        %836 = vdwg.mxu0
        %v837 = vmul.f32 %v834, 0.35355338
        %v838 = vsel %vm817, %v837, -inf
        %839 = vmax.xlane.f32.xlu0 %v838
        %v840 = vpop.xlane.xlu0 %839
        %v841 = vsub.f32 %v837, %v840
        %v842 = vmul.f32 %v841, 1.442695
        %v843 = vpow.pop %v842
        %v844 = vsel %vm817, %v843, 0.0
        %845 = vadd.xlane.f32.xlu0 %v844
        %v846 = vpop.xlane.xlu0 %845
        %v847 = vpack.c.bf16 %v843, %v843
        %848 = vrot.lane.b32.xlu0 %v814, 64
        %v849 = vpop.permute.xlu0 %848
        %v851 = vsel %vm817, %v847, 0
        %vm853 = vcmask 1043456
        %v855 = vsel %vm853, %v849, 0
        %857 = vmatpush.bf16.msra.mxu0 0
        %858 = vmatpush.bf16.msra.mxu0 0
        %859 = vmatpush.bf16.msra.mxu0 0
        %860 = vmatpush.bf16.msra.mxu0 0
        %861 = vmatpush.bf16.msra.mxu0 0
        %862 = vmatpush.bf16.msra.mxu0 0
        %863 = vmatpush.bf16.msra.mxu0 0
        %864 = vmatpush.bf16.msra.mxu0 %v855
        %865 = vmatmul.bf16.gmra.mxu0 %v851
        %v866 = vpop.f32.mrf.mxu0
        %v867 = vadd.f32 0.0, %v866
        %v868 = vpop.f32.mrf.mxu0
        %869 = vdwg.mxu0
        %v870 = vrcp.pop %v846
        %v871 = vmul.f32 %v867, %v870
        %v872 = vpack.c.bf16 %v871, %v871
        %873 = vrot.lane.b32.xlu0 %v814, 120
        %v874 = vpop.permute.xlu0 %873
        %875 = vrot.lane.b32.xlu0 %v814, 88
        %v876 = vpop.permute.xlu0 %875
        %v878 = vsel %vm817, %v874, 0
        %v881 = vsel %vm817, %v876, 0
        %883 = vmatpush.bf16.xpose.msra.mxu0 0
        %884 = vmatpush.bf16.xpose.msra.mxu0 0
        %885 = vmatpush.bf16.xpose.msra.mxu0 0
        %886 = vmatpush.bf16.xpose.msra.mxu0 0
        %887 = vmatpush.bf16.xpose.msra.mxu0 0
        %888 = vmatpush.bf16.xpose.msra.mxu0 0
        %889 = vmatpush.bf16.xpose.msra.mxu0 0
        %890 = vmatpush.bf16.xpose.msra.mxu0 %v881
        %891 = vmatmul.bf16.gmra.mxu0 %v878
        %v892 = vpop.f32.mrf.mxu0
        %v893 = vadd.f32 0.0, %v892
        %v894 = vpop.f32.mrf.mxu0
        %895 = vdwg.mxu0
        %v896 = vmul.f32 %v893, 0.35355338
        %v897 = vsel %vm817, %v896, -inf
        %898 = vmax.xlane.f32.xlu0 %v897
        %v899 = vpop.xlane.xlu0 %898
        %v900 = vsub.f32 %v896, %v899
        %v901 = vmul.f32 %v900, 1.442695
        %v902 = vpow.pop %v901
        %v903 = vsel %vm817, %v902, 0.0
        %904 = vadd.xlane.f32.xlu0 %v903
        %v905 = vpop.xlane.xlu0 %904
        %v906 = vpack.c.bf16 %v902, %v902
        %907 = vrot.lane.b32.xlu0 %v814, 56
        %v908 = vpop.permute.xlu0 %907
        %v910 = vsel %vm817, %v906, 0
        %v913 = vsel %vm853, %v908, 0
        %915 = vmatpush.bf16.msra.mxu0 0
        %916 = vmatpush.bf16.msra.mxu0 0
        %917 = vmatpush.bf16.msra.mxu0 0
        %918 = vmatpush.bf16.msra.mxu0 0
        %919 = vmatpush.bf16.msra.mxu0 0
        %920 = vmatpush.bf16.msra.mxu0 0
        %921 = vmatpush.bf16.msra.mxu0 0
        %922 = vmatpush.bf16.msra.mxu0 %v913
        %923 = vmatmul.bf16.gmra.mxu0 %v910
        %v924 = vpop.f32.mrf.mxu0
        %v925 = vadd.f32 0.0, %v924
        %v926 = vpop.f32.mrf.mxu0
        %927 = vdwg.mxu0
        %v928 = vrcp.pop %v905
        %v929 = vmul.f32 %v925, %v928
        %v930 = vpack.c.bf16 %v929, %v929
        %931 = vrot.lane.b32.xlu0 %v814, 112
        %v932 = vpop.permute.xlu0 %931
        %933 = vrot.lane.b32.xlu0 %v814, 80
        %v934 = vpop.permute.xlu0 %933
        %v936 = vsel %vm817, %v932, 0
        %v939 = vsel %vm817, %v934, 0
        %941 = vmatpush.bf16.xpose.msra.mxu0 0
        %942 = vmatpush.bf16.xpose.msra.mxu0 0
        %943 = vmatpush.bf16.xpose.msra.mxu0 0
        %944 = vmatpush.bf16.xpose.msra.mxu0 0
        %945 = vmatpush.bf16.xpose.msra.mxu0 0
        %946 = vmatpush.bf16.xpose.msra.mxu0 0
        %947 = vmatpush.bf16.xpose.msra.mxu0 0
        %948 = vmatpush.bf16.xpose.msra.mxu0 %v939
        %949 = vmatmul.bf16.gmra.mxu0 %v936
        %v950 = vpop.f32.mrf.mxu0
        %v951 = vadd.f32 0.0, %v950
        %v952 = vpop.f32.mrf.mxu0
        %953 = vdwg.mxu0
        %v954 = vmul.f32 %v951, 0.35355338
        %v955 = vsel %vm817, %v954, -inf
        %956 = vmax.xlane.f32.xlu0 %v955
        %v957 = vpop.xlane.xlu0 %956
        %v958 = vsub.f32 %v954, %v957
        %v959 = vmul.f32 %v958, 1.442695
        %v960 = vpow.pop %v959
        %v961 = vsel %vm817, %v960, 0.0
        %962 = vadd.xlane.f32.xlu0 %v961
        %v963 = vpop.xlane.xlu0 %962
        %v964 = vpack.c.bf16 %v960, %v960
        %965 = vrot.lane.b32.xlu0 %v814, 48
        %v966 = vpop.permute.xlu0 %965
        %v968 = vsel %vm817, %v964, 0
        %v971 = vsel %vm853, %v966, 0
        %973 = vmatpush.bf16.msra.mxu0 0
        %974 = vmatpush.bf16.msra.mxu0 0
        %975 = vmatpush.bf16.msra.mxu0 0
        %976 = vmatpush.bf16.msra.mxu0 0
        %977 = vmatpush.bf16.msra.mxu0 0
        %978 = vmatpush.bf16.msra.mxu0 0
        %979 = vmatpush.bf16.msra.mxu0 0
        %980 = vmatpush.bf16.msra.mxu0 %v971
        %981 = vmatmul.bf16.gmra.mxu0 %v968
        %v982 = vpop.f32.mrf.mxu0
        %v983 = vadd.f32 0.0, %v982
        %v984 = vpop.f32.mrf.mxu0
        %985 = vdwg.mxu0
        %v986 = vrcp.pop %v963
        %v987 = vmul.f32 %v983, %v986
        %v988 = vpack.c.bf16 %v987, %v987
        %989 = vrot.lane.b32.xlu0 %v814, 104
        %v990 = vpop.permute.xlu0 %989
        %991 = vrot.lane.b32.xlu0 %v814, 72
        %v992 = vpop.permute.xlu0 %991
        %v994 = vsel %vm817, %v990, 0
        %v997 = vsel %vm817, %v992, 0
        %999 = vmatpush.bf16.xpose.msra.mxu0 0
        %1000 = vmatpush.bf16.xpose.msra.mxu0 0
        %1001 = vmatpush.bf16.xpose.msra.mxu0 0
        %1002 = vmatpush.bf16.xpose.msra.mxu0 0
        %1003 = vmatpush.bf16.xpose.msra.mxu0 0
        %1004 = vmatpush.bf16.xpose.msra.mxu0 0
        %1005 = vmatpush.bf16.xpose.msra.mxu0 0
        %1006 = vmatpush.bf16.xpose.msra.mxu0 %v997
        %1007 = vmatmul.bf16.gmra.mxu0 %v994
        %v1008 = vpop.f32.mrf.mxu0
        %v1009 = vadd.f32 0.0, %v1008
        %v1010 = vpop.f32.mrf.mxu0
        %1011 = vdwg.mxu0
        %v1012 = vmul.f32 %v1009, 0.35355338
        %v1013 = vsel %vm817, %v1012, -inf
        %1014 = vmax.xlane.f32.xlu0 %v1013
        %v1015 = vpop.xlane.xlu0 %1014
        %v1016 = vsub.f32 %v1012, %v1015
        %v1017 = vmul.f32 %v1016, 1.442695
        %v1018 = vpow.pop %v1017
        %v1019 = vsel %vm817, %v1018, 0.0
        %1020 = vadd.xlane.f32.xlu0 %v1019
        %v1021 = vpop.xlane.xlu0 %1020
        %v1022 = vpack.c.bf16 %v1018, %v1018
        %1023 = vrot.lane.b32.xlu0 %v814, 40
        %v1024 = vpop.permute.xlu0 %1023
        %v1026 = vsel %vm817, %v1022, 0
        %v1029 = vsel %vm853, %v1024, 0
        %1031 = vmatpush.bf16.msra.mxu0 0
        %1032 = vmatpush.bf16.msra.mxu0 0
        %1033 = vmatpush.bf16.msra.mxu0 0
        %1034 = vmatpush.bf16.msra.mxu0 0
        %1035 = vmatpush.bf16.msra.mxu0 0
        %1036 = vmatpush.bf16.msra.mxu0 0
        %1037 = vmatpush.bf16.msra.mxu0 0
        %1038 = vmatpush.bf16.msra.mxu0 %v1029
        %1039 = vmatmul.bf16.gmra.mxu0 %v1026
        %v1040 = vpop.f32.mrf.mxu0
        %v1041 = vadd.f32 0.0, %v1040
        %v1042 = vpop.f32.mrf.mxu0
        %1043 = vdwg.mxu0
        %v1044 = vrcp.pop %v1021
        %v1045 = vmul.f32 %v1041, %v1044
        %v1046 = vpack.c.bf16 %v1045, %v1045
        %v1048 = vunpack.c.l.b16 %v930
        %v1049 = vpack.c.b16 %v1048, %v1048
        %1050 = vrot.lane.b32.xlu0 %v1049, 8
        %v1051 = vpop.permute.xlu0 %1050
        %v1053 = vunpack.c.l.b16 %v988
        %v1054 = vpack.c.b16 %v1053, %v1053
        %1055 = vrot.lane.b32.xlu0 %v1054, 16
        %v1056 = vpop.permute.xlu0 %1055
        %v1058 = vunpack.c.l.b16 %v1046
        %v1059 = vpack.c.b16 %v1058, %v1058
        %1060 = vrot.lane.b32.xlu0 %v1059, 24
        %v1061 = vpop.permute.xlu0 %1060
        %v1064 = vsel %vm817, %v872, %v1051
        %vm1065 = vcmask 130048
        %v1067 = vsel %vm1065, %v1064, %v1056
        %vm1068 = vcmask 195584
        %v1070 = vsel %vm1068, %v1067, %v1061
        %vm1072 = vcmask 257024
        %1073 = vst.msk [vmem:[#allocation4] sm:$0xf] %vm1072, %v1070
        %v1074 = vld [vmem:[#allocation4] sm:$0xf]
        %v1075 = vld [vmem:[%s693] sm:$0xf]
        %v1076 = vld [vmem:[%s693 + $0x4] sm:$0xf]
        %v1077 = vld [vmem:[%s693 + $0x8] sm:$0xf]
        %v1078 = vld [vmem:[%s693 + $0xc] sm:$0xf]
        %v1079 = vld [vmem:[%s696] sm:$0x1]
        %v1081 = vperm.slane %v1079, 0
        %v1087 = vunpack.c.l.b16 %v1075
        %v1088 = vunpack.c.l.b16 %v1076
        %v1089 = vunpack.c.l.b16 %v1077
        %v1090 = vunpack.c.l.b16 %v1078
        %v1091 = vpack.c.b16 %v1088, %v1087
        %v1092 = vpack.c.b16 %v1090, %v1089
        %v1096 = vsel %vm733, %v1074, 0
        %1098 = vmatpush.bf16.msra.mxu0 0
        %1099 = vmatpush.bf16.msra.mxu0 0
        %1100 = vmatpush.bf16.msra.mxu0 0
        %1101 = vmatpush.bf16.msra.mxu0 0
        %1102 = vmatpush.bf16.msra.mxu0 0
        %1103 = vmatpush.bf16.msra.mxu0 0
        %1104 = vmatpush.bf16.msra.mxu0 %v1092
        %1105 = vmatpush.bf16.msra.mxu0 %v1091
        %1106 = vmatmul.bf16.gmra.mxu0 %v1096
        %v1107 = vpop.f32.mrf.mxu0
        %v1108 = vadd.f32 %v1081, %v1107
        %v1109 = vpop.f32.mrf.mxu0
        %1110 = vdwg.mxu0
        %v1111 = vadd.f32 %v730, %v1108
        %v1112 = vld [vmem:[%s699] sm:$0x1]
        %v1113 = vld [vmem:[%s702] sm:$0x1]
        %v1114 = vsel %vm733, %v1111, 0.0
        %1115 = vadd.xlane.f32.xlu0 %v1114
        %v1116 = vpop.xlane.xlu0 %1115
        %v1117 = vmul.f32 %v1116, %v743
        %v1118 = vsub.f32 %v1111, %v1117
        %v1119 = vmul.f32 %v1118, %v1118
        %v1120 = vsel %vm733, %v1119, 0.0
        %1121 = vadd.xlane.f32.xlu0 %v1120
        %v1122 = vpop.xlane.xlu0 %1121
        %v1123 = vmul.f32 %v1122, %v743
        %v1124 = vadd.f32 %v1123, 1e-05
        %v1125 = vrsqrt.pop %v1124
        %v1126 = vmul.f32 %v1125, %v1124
        %v1127 = vmul.f32 %v1126, %v1125
        %v1128 = vmul.f32 0.5, %v1127
        %v1129 = vsub.f32 1.5, %v1128
        %v1130 = vmul.f32 %v1125, %v1129
        %vm1131 = vweird.f32 %v1124
        %vm1132 = vweird.f32 %v1125
        %vm1133 = vmor %vm1131, %vm1132
        %v1134 = vsel %vm1133, %v1125, %v1130
        %v1135 = vmul.f32 %v1118, %v1134
        %v1137 = vperm.slane %v1112, 0
        %v1139 = vmul.f32 %v1135, %v1137
        %v1141 = vperm.slane %v1113, 0
        %v1143 = vadd.f32 %v1139, %v1141
        %v1144 = vld [vmem:[%s707] sm:$0xf]
        %v1145 = vld [vmem:[%s707 + $0x4] sm:$0xf]
        %v1146 = vld [vmem:[%s707 + $0x8] sm:$0xf]
        %v1147 = vld [vmem:[%s707 + $0xc] sm:$0xf]
        %v1148 = vpack.c.bf16 %v1143, %v1143
        %v1149 = vld [vmem:[%s710] sm:$0x1]
        %v1151 = vperm.slane %v1149, 0
        %v1157 = vunpack.c.l.b16 %v1144
        %v1158 = vunpack.c.l.b16 %v1145
        %v1159 = vunpack.c.l.b16 %v1146
        %v1160 = vunpack.c.l.b16 %v1147
        %v1161 = vpack.c.b16 %v1158, %v1157
        %v1162 = vpack.c.b16 %v1160, %v1159
        %v1166 = vsel %vm733, %v1148, 0
        %1168 = vmatpush.bf16.msra.mxu0 0
        %1169 = vmatpush.bf16.msra.mxu0 0
        %1170 = vmatpush.bf16.msra.mxu0 0
        %1171 = vmatpush.bf16.msra.mxu0 0
        %1172 = vmatpush.bf16.msra.mxu0 0
        %1173 = vmatpush.bf16.msra.mxu0 0
        %1174 = vmatpush.bf16.msra.mxu0 %v1162
        %1175 = vmatpush.bf16.msra.mxu0 %v1161
        %1176 = vmatmul.bf16.gmra.mxu0 %v1166
        %v1177 = vpop.f32.mrf.mxu0
        %v1178 = vadd.f32 %v1151, %v1177
        %v1179 = vpop.f32.mrf.mxu0
        %1180 = vdwg.mxu0
        %v1181 = vmul.f32 %v1178, 0.5
        %v1182 = vmul.f32 %v1178, 0.70710677
        %v1183 = vmul.f32 %v1182, %v1182
        %v1184 = vmin.f32 16.0, %v1183
        %v1185 = vmul.f32 %v1184, 2.1237322e-06
        %v1186 = vadd.f32 %v1185, 0.00028619796
        %v1187 = vmul.f32 %v1184, %v1186
        %v1188 = vadd.f32 %v1187, 0.0036580483
        %v1189 = vmul.f32 %v1184, %v1188
        %v1190 = vadd.f32 %v1189, 0.05243302
        %v1191 = vmul.f32 %v1184, %v1190
        %v1192 = vadd.f32 %v1191, 0.18741608
        %v1193 = vmul.f32 %v1184, %v1192
        %v1194 = vadd.f32 %v1193, 1.1283791
        %v1195 = vmul.f32 %v1182, %v1194
        %v1196 = vmul.f32 %v1184, 3.8918573e-05
        %v1197 = vadd.f32 %v1196, 0.001143296
        %v1198 = vmul.f32 %v1184, %v1197
        %v1199 = vadd.f32 %v1198, 0.014752088
        %v1200 = vmul.f32 %v1184, %v1199
        %v1201 = vadd.f32 %v1200, 0.112945676
        %v1202 = vmul.f32 %v1184, %v1201
        %v1203 = vadd.f32 %v1202, 0.4994258
        %v1204 = vmul.f32 %v1184, %v1203
        %v1205 = vadd.f32 %v1204, 1.0
        %v1206 = vrcp.pop %v1205
        %v1207 = vmul.f32 %v1205, %v1206
        %v1208 = vsub.f32 1.0, %v1207
        %v1209 = vmul.f32 %v1206, %v1208
        %v1210 = vadd.f32 %v1206, %v1209
        %vm1211 = vweird.f32 %v1205
        %vm1212 = vweird.f32 %v1206
        %vm1213 = vmor %vm1211, %vm1212
        %v1214 = vsel %vm1213, %v1206, %v1210
        %v1215 = vand.u32 2147483647, %v1205
        %vm1216 = vcmp.eq.f32.partialorder %v1215, 8.507059e+37
        %v1217 = vand.u32 %v1205, 2147483648
        %v1218 = vor.u32 1.1754944e-38, %v1217
        %v1219 = vsel %vm1216, %v1218, %v1214
        %v1220 = vmul.f32 %v1195, %v1219
        %v1221 = vmin.f32 %v1220, 1.0
        %v1222 = vmax.f32 %v1221, -1.0
        %v1223 = vadd.f32 %v1222, 1.0
        %v1224 = vmul.f32 %v1181, %v1223
        %v1225 = vld [vmem:[%s715] sm:$0xf]
        %v1226 = vld [vmem:[%s715 + $0x4] sm:$0xf]
        %v1227 = vld [vmem:[%s715 + $0x8] sm:$0xf]
        %v1228 = vld [vmem:[%s715 + $0xc] sm:$0xf]
        %v1229 = vld [vmem:[%s715 + $0x10] sm:$0xf]
        %v1230 = vld [vmem:[%s715 + $0x14] sm:$0xf]
        %v1231 = vld [vmem:[%s715 + $0x18] sm:$0xf]
        %v1232 = vld [vmem:[%s715 + $0x1c] sm:$0xf]
        %v1233 = vpack.c.bf16 %v1224, %v1224
        %v1234 = vld [vmem:[%s718] sm:$0x1]
        %v1236 = vperm.slane %v1234, 0
        %v1246 = vunpack.c.l.b16 %v1225
        %v1247 = vunpack.c.l.b16 %v1226
        %v1248 = vunpack.c.l.b16 %v1227
        %v1249 = vunpack.c.l.b16 %v1228
        %v1250 = vunpack.c.l.b16 %v1229
        %v1251 = vunpack.c.l.b16 %v1230
        %v1252 = vunpack.c.l.b16 %v1231
        %v1253 = vunpack.c.l.b16 %v1232
        %v1254 = vpack.c.b16 %v1247, %v1246
        %v1255 = vpack.c.b16 %v1249, %v1248
        %v1256 = vpack.c.b16 %v1251, %v1250
        %v1257 = vpack.c.b16 %v1253, %v1252
        %vm1262 = vcmask 523264
        %v1264 = vsel %vm1262, %v1233, 0
        %1266 = vmatpush.bf16.msra.mxu0 0
        %1267 = vmatpush.bf16.msra.mxu0 0
        %1268 = vmatpush.bf16.msra.mxu0 0
        %1269 = vmatpush.bf16.msra.mxu0 0
        %1270 = vmatpush.bf16.msra.mxu0 %v1257
        %1271 = vmatpush.bf16.msra.mxu0 %v1256
        %1272 = vmatpush.bf16.msra.mxu0 %v1255
        %1273 = vmatpush.bf16.msra.mxu0 %v1254
        %1274 = vmatmul.bf16.gmra.mxu0 %v1264
        %v1275 = vpop.f32.mrf.mxu0
        %v1276 = vadd.f32 %v1236, %v1275
        %v1277 = vpop.f32.mrf.mxu0
        %1278 = vdwg.mxu0
        %v1279 = vadd.f32 %v1111, %v1276
        %1280 = vst.msk [vmem:[#allocation2] sm:$0xff] %vm733, %v1279
        %p1281 = scmp.eq.s32.totalorder %s33, 1
        // Predicated region
        $region93: #{ecgclip_forward.4} parent=79 // pred_check
          %p1282 = pneg %p1281
        $region94: #{ecgclip_forward.4} parent=79 // pred_check_branch
          %1284 = sbr.rel (%p1282) target = $region96
        $region95: #{ecgclip_forward.4} parent=79 // pred_region
          %v1285 = vld [vmem:[#allocation5] sm:$0x1]
          %v1286 = vld [vmem:[#allocation7] sm:$0x1]
          %v1287 = vsel %vm733, %v1279, 0.0
          %1288 = vadd.xlane.f32.xlu0 %v1287
          %v1289 = vpop.xlane.xlu0 %1288
          %v1290 = vmul.f32 %v1289, %v743
          %v1291 = vsub.f32 %v1279, %v1290
          %v1292 = vmul.f32 %v1291, %v1291
          %v1293 = vsel %vm733, %v1292, 0.0
          %1294 = vadd.xlane.f32.xlu0 %v1293
          %v1295 = vpop.xlane.xlu0 %1294
          %v1296 = vmul.f32 %v1295, %v743
          %v1297 = vadd.f32 %v1296, 1e-05
          %v1298 = vrsqrt.pop %v1297
          %v1299 = vmul.f32 %v1298, %v1297
          %v1300 = vmul.f32 %v1299, %v1298
          %v1301 = vmul.f32 0.5, %v1300
          %v1302 = vsub.f32 1.5, %v1301
          %v1303 = vmul.f32 %v1298, %v1302
          %vm1304 = vweird.f32 %v1297
          %vm1305 = vweird.f32 %v1298
          %vm1306 = vmor %vm1304, %vm1305
          %v1307 = vsel %vm1306, %v1298, %v1303
          %v1308 = vmul.f32 %v1291, %v1307
          %v1310 = vperm.slane %v1285, 0
          %v1312 = vmul.f32 %v1308, %v1310
          %v1314 = vperm.slane %v1286, 0
          %v1316 = vadd.f32 %v1312, %v1314
          %v1317 = vsel %vm733, %v1316, 0.0
          %v1318 = vrot.slane %v1317, 4
          %v1319 = vadd.f32 %v1317, %v1318
          %v1320 = vrot.slane %v1319, 2
          %v1321 = vadd.f32 %v1319, %v1320
          %v1322 = vrot.slane %v1321, 1
          %v1323 = vadd.f32 %v1321, %v1322
          %v1324 = vrcp.pop 8.0
          %v1325 = vmul.f32 8.0, %v1324
          %v1326 = vsub.f32 1.0, %v1325
          %v1327 = vmul.f32 %v1324, %v1326
          %v1328 = vadd.f32 %v1324, %v1327
          %vm1329 = vweird.f32 %v1324
          %v1330 = vsel %vm1329, %v1324, %v1328
          %v1331 = vmul.f32 %v1323, %v1330
          %vm1332 = vcmask 253952
          %1333 = vst.msk [vmem:[%s721] sm:$0x1] %vm1332, %v1331
        $region96: #{ecgclip_forward.4} parent=79 // pred_fallthru
          _
        %p1334 = scmp.lt.s32.totalorder %s32, 1
        %s1335 = scalar_select %p1334, %s32, 1
        %s1336 = scalar_lea.vmem %s15, %s1335
        // Predicated region
        $region97: #{ecgclip_forward.4} parent=79 // pred_check
          %p1337 = pneg %p438
        $region98: #{ecgclip_forward.4} parent=79 // pred_check_branch
          %1339 = sbr.rel (%p1337) target = $region100
        $region99: #{ecgclip_forward.4} parent=79 // pred_region
          _
        $region100: #{ecgclip_forward.4} parent=79 // pred_fallthru
          _
      $region80: #{ecgclip_forward.4} parent=5 // pred_fallthru
        _
      %p1340 = scmp.le.s32.totalorder 2, %s23
      // Predicated region
      $region101: #{ecgclip_forward.4} parent=5 // pred_check
        %p1341 = pneg %p1340
      $region102: #{ecgclip_forward.4} parent=5 // pred_check_branch
        %1343 = sbr.rel (%p1341) target = $region104
      $region103: #{ecgclip_forward.4} parent=5 // pred_region
        %s1344 = ssub.s32 %s23, 2
        // Predicated region
        $region105: #{ecgclip_forward.4} parent=103 // pred_check
          %p1345 = pneg %p444
        $region106: #{ecgclip_forward.4} parent=103 // pred_check_branch
          %1347 = sbr.rel (%p1345) target = $region108
        $region107: #{ecgclip_forward.4} parent=103 // pred_region
          %p1348 = scmp.lt.s32.totalorder %s34, 1
          %s1349 = scalar_select %p1348, %s34, 1
          %s1350 = scalar_lea.vmem %s15, %s1349
        $region108: #{ecgclip_forward.4} parent=103 // pred_fallthru
          _
      $region104: #{ecgclip_forward.4} parent=5 // pred_fallthru
        _
    $region6: #{ecgclip_forward.4} parent=1 // loop_footer
      %s27 = sadd.s32 1, %s23
    $region7: #{ecgclip_forward.4} parent=1 // loop_footer_branch
      %22 = sbr.rel target = $region3
    $region8: #{ecgclip_forward.4} parent=1 // loop_exit
      _
    %1351 = vsyncpa [#allocation6], 1
    %s1352 = scalar_lea.sflag [#allocation6], 1
    %1353 = vsyncpa %s1352, 1
    %1354 = vsyncpa [#allocation8], 1

// kernel: ecgclip_forward.3
$region0: #{ecgclip_forward.3}
  #allocation0 [shape = 'u32[]', space=smem, size = 0x4, offset = 0x4, fixed_abs, tag = 'smem constant byte address 0x4 - core index']
  #allocation1 [shape = 'u32[72,128]{1,0:T(1,128)}', space=vmem, size = 0x9000, scoped, tag = 'internal scratch']
  #allocation2 [shape = 'bf16[8,96]{1,0:T(8,128)(2,1)}', space=vmem, size = 0x800, scoped, tag = 'scratch operand']
  #allocation3 [shape = 'bf16[8,32]{1,0:T(8,128)(2,1)}', space=vmem, size = 0x800, scoped, tag = 'scratch operand']
  %s0 = inlined_call_operand.vmem [shape: f32[16,64], index: 0, kind: input, shape index: {}]
  %s1 = inlined_call_operand.vmem [shape: bf16[64,32], index: 1, kind: input, shape index: {}]
  %s2 = inlined_call_operand.hbm [shape: f32[1,32], index: 2, kind: input, shape index: {}]
  %s3 = inlined_call_operand.vmem [shape: f32[8,32], index: 3, kind: input, shape index: {}]
  %s4 = inlined_call_operand.vmem [shape: f32[2,32], index: 4, kind: input, shape index: {}]
  %s5 = inlined_call_operand.vmem [shape: bf16[32,96], index: 5, kind: input, shape index: {}]
  %s6 = inlined_call_operand.hbm [shape: f32[1,96], index: 6, kind: input, shape index: {}]
  %s7 = inlined_call_operand.vmem [shape: bf16[32,32], index: 7, kind: input, shape index: {}]
  %s8 = inlined_call_operand.hbm [shape: f32[1,32], index: 8, kind: input, shape index: {}]
  %s9 = inlined_call_operand.vmem [shape: f32[8,32], index: 9, kind: input, shape index: {}]
  %s10 = inlined_call_operand.vmem [shape: f32[16,32], index: 10, kind: output, shape index: {0}]
  %s11 = inlined_call_operand.vmem [shape: f32[2,1,32], index: 11, kind: output, shape index: {1}]
  %12 = xla_tuple %s10, %s11
  %s13 = sld [smem:[#allocation0]]
  $region93: #{ecgclip_forward.3} parent=0
    _
  %s15 = ssub.s32 1, %s13
  %s16 = scalar_select 0, %s15, %s13
  $region1: #{ecgclip_forward.3} parent=0
    #allocation4 [shape = 'u8[512]{0}', space=vmem, size = 0x400, scoped, tag = 'input window, operand 2, single buffered']
    #allocation5 [shape = 's32[2]{0}', space=sflag, size = 0x8, scoped, tag = 'scoped memory for ecgclip_forward.3']
    #allocation6 [shape = 'u8[512]{0}', space=vmem, size = 0x400, scoped, tag = 'input window, operand 6, single buffered']
    #allocation7 [shape = 's32[1]{0}', space=sflag, size = 0x4, scoped, tag = 'scoped memory for ecgclip_forward.3']
    #allocation8 [shape = 'u8[512]{0}', space=vmem, size = 0x400, scoped, tag = 'input window, operand 8, single buffered']
    %17 = vsyncpa [#allocation5], 0
    %18 = vsyncpa [#allocation7], 0
    loop: start=0, step=1, limit=4
    $region2: #{ecgclip_forward.3} parent=1 // loop_pre_header
      _
    $region3: #{ecgclip_forward.3} parent=1 // loop_header
      %s20 = sphi 0, %s24
      %p21 = scmp.ge.s32.totalorder %s20, 4
      %s30 = sphi 0, %s32
      %s33 = sphi 0, %s30
      %s34 = sphi 0, %s33
      %s50 = sphi 0, %s34
      %s54 = sphi 0, %s54
      %s56 = sphi 0, %s54
      %s57 = sphi 0, %s56
      %s71 = sphi 0, %s57
      %s75 = sphi 0, %s75
      %s77 = sphi 0, %s75
      %s78 = sphi 0, %s77
      %s92 = sphi 0, %s78
      %s96 = sphi 0, %s96
      %s98 = sphi 0, %s96
      %s99 = sphi 0, %s98
      %s113 = sphi 0, %s99
      %s117 = sphi 0, %s117
      %s119 = sphi 0, %s117
      %s120 = sphi 0, %s119
      %s134 = sphi 0, %s120
      %s138 = sphi 0, %s138
      %s140 = sphi 0, %s138
      %s141 = sphi 0, %s140
      %s155 = sphi 0, %s141
      %s159 = sphi 0, %s159
      %s161 = sphi 0, %s159
      %s162 = sphi 0, %s161
      %s176 = sphi 0, %s162
      %s180 = sphi 0, %s180
      %s182 = sphi 0, %s180
      %s183 = sphi 0, %s182
      %s197 = sphi 0, %s183
      %s201 = sphi 0, %s201
      %s203 = sphi 0, %s201
      %s204 = sphi 0, %s203
      %s218 = sphi 0, %s204
      %s222 = sphi 0, %s222
      %s224 = sphi 0, %s222
      %s225 = sphi 0, %s224
      %s239 = sphi 0, %s225
      %s245 = sphi 0, %s247
      %s248 = sphi 0, %s245
      %s249 = sphi 0, %s248
      %s265 = sphi 0, %s249
      %s271 = sphi 0, %s273
      %s274 = sphi 0, %s271
      %s275 = sphi 0, %s274
      %s291 = sphi 0, %s275
    $region4: #{ecgclip_forward.3} parent=1 // loop_header_branch
      %23 = sbr.rel (%p21) target = $region8
    $region5: #{ecgclip_forward.3} parent=1 // loop_body
      %s25 = ssub.s32 %s20, 1
      %s26 = ssub.s32 %s20, 2
      %s27 = sadd.s32 %s20, 1
      %s28 = ssub.s32 %s20, %s27
      %p29 = scmp.eq.s32.totalorder %s28, 0
      %s31 = sadd.s32 %s30, 1
      %s32 = scalar_select %p29, %s30, %s31
      %p35 = pneg %p29
      %p36 = scmp.eq.s32.totalorder %s20, 1
      %p37 = por %p35, %p36
      %p38 = scmp.ne.s32.totalorder %s30, %s33
      %p39 = scmp.eq.s32.totalorder %s20, 0
      %p40 = por %p38, %p39
      %p41 = scmp.ne.s32.totalorder %s30, %s33
      %p42 = scmp.eq.s32.totalorder %s25, 1
      %p43 = por %p41, %p42
      %p44 = scmp.ne.s32.totalorder %s33, %s34
      %p45 = scmp.eq.s32.totalorder %s25, 0
      %p46 = por %p44, %p45
      %p47 = scmp.ne.s32.totalorder %s33, %s34
      %p48 = scmp.eq.s32.totalorder %s26, 1
      %p49 = por %p47, %p48
      %p51 = scmp.ne.s32.totalorder %s34, %s50
      %p52 = scmp.eq.s32.totalorder %s26, 0
      %p53 = por %p51, %p52
      %s55 = sadd.s32 %s54, 1
      %p58 = scmp.eq.s32.totalorder %s20, 1
      %p59 = scmp.ne.s32.totalorder %s54, %s56
      %p60 = scmp.eq.s32.totalorder %s20, 0
      %p61 = por %p59, %p60
      %p62 = scmp.ne.s32.totalorder %s54, %s56
      %p63 = scmp.eq.s32.totalorder %s25, 1
      %p64 = por %p62, %p63
      %p65 = scmp.ne.s32.totalorder %s56, %s57
      %p66 = scmp.eq.s32.totalorder %s25, 0
      %p67 = por %p65, %p66
      %p68 = scmp.ne.s32.totalorder %s56, %s57
      %p69 = scmp.eq.s32.totalorder %s26, 1
      %p70 = por %p68, %p69
      %p72 = scmp.ne.s32.totalorder %s57, %s71
      %p73 = scmp.eq.s32.totalorder %s26, 0
      %p74 = por %p72, %p73
      %s76 = sadd.s32 %s75, 1
      %p79 = scmp.eq.s32.totalorder %s20, 1
      %p80 = scmp.ne.s32.totalorder %s75, %s77
      %p81 = scmp.eq.s32.totalorder %s20, 0
      %p82 = por %p80, %p81
      %p83 = scmp.ne.s32.totalorder %s75, %s77
      %p84 = scmp.eq.s32.totalorder %s25, 1
      %p85 = por %p83, %p84
      %p86 = scmp.ne.s32.totalorder %s77, %s78
      %p87 = scmp.eq.s32.totalorder %s25, 0
      %p88 = por %p86, %p87
      %p89 = scmp.ne.s32.totalorder %s77, %s78
      %p90 = scmp.eq.s32.totalorder %s26, 1
      %p91 = por %p89, %p90
      %p93 = scmp.ne.s32.totalorder %s78, %s92
      %p94 = scmp.eq.s32.totalorder %s26, 0
      %p95 = por %p93, %p94
      %s97 = sadd.s32 %s96, 1
      %p100 = scmp.eq.s32.totalorder %s20, 1
      %p101 = scmp.ne.s32.totalorder %s96, %s98
      %p102 = scmp.eq.s32.totalorder %s20, 0
      %p103 = por %p101, %p102
      %p104 = scmp.ne.s32.totalorder %s96, %s98
      %p105 = scmp.eq.s32.totalorder %s25, 1
      %p106 = por %p104, %p105
      %p107 = scmp.ne.s32.totalorder %s98, %s99
      %p108 = scmp.eq.s32.totalorder %s25, 0
      %p109 = por %p107, %p108
      %p110 = scmp.ne.s32.totalorder %s98, %s99
      %p111 = scmp.eq.s32.totalorder %s26, 1
      %p112 = por %p110, %p111
      %p114 = scmp.ne.s32.totalorder %s99, %s113
      %p115 = scmp.eq.s32.totalorder %s26, 0
      %p116 = por %p114, %p115
      %s118 = sadd.s32 %s117, 1
      %p121 = scmp.eq.s32.totalorder %s20, 1
      %p122 = scmp.ne.s32.totalorder %s117, %s119
      %p123 = scmp.eq.s32.totalorder %s20, 0
      %p124 = por %p122, %p123
      %p125 = scmp.ne.s32.totalorder %s117, %s119
      %p126 = scmp.eq.s32.totalorder %s25, 1
      %p127 = por %p125, %p126
      %p128 = scmp.ne.s32.totalorder %s119, %s120
      %p129 = scmp.eq.s32.totalorder %s25, 0
      %p130 = por %p128, %p129
      %p131 = scmp.ne.s32.totalorder %s119, %s120
      %p132 = scmp.eq.s32.totalorder %s26, 1
      %p133 = por %p131, %p132
      %p135 = scmp.ne.s32.totalorder %s120, %s134
      %p136 = scmp.eq.s32.totalorder %s26, 0
      %p137 = por %p135, %p136
      %s139 = sadd.s32 %s138, 1
      %p142 = scmp.eq.s32.totalorder %s20, 1
      %p143 = scmp.ne.s32.totalorder %s138, %s140
      %p144 = scmp.eq.s32.totalorder %s20, 0
      %p145 = por %p143, %p144
      %p146 = scmp.ne.s32.totalorder %s138, %s140
      %p147 = scmp.eq.s32.totalorder %s25, 1
      %p148 = por %p146, %p147
      %p149 = scmp.ne.s32.totalorder %s140, %s141
      %p150 = scmp.eq.s32.totalorder %s25, 0
      %p151 = por %p149, %p150
      %p152 = scmp.ne.s32.totalorder %s140, %s141
      %p153 = scmp.eq.s32.totalorder %s26, 1
      %p154 = por %p152, %p153
      %p156 = scmp.ne.s32.totalorder %s141, %s155
      %p157 = scmp.eq.s32.totalorder %s26, 0
      %p158 = por %p156, %p157
      %s160 = sadd.s32 %s159, 1
      %p163 = scmp.eq.s32.totalorder %s20, 1
      %p164 = scmp.ne.s32.totalorder %s159, %s161
      %p165 = scmp.eq.s32.totalorder %s20, 0
      %p166 = por %p164, %p165
      %p167 = scmp.ne.s32.totalorder %s159, %s161
      %p168 = scmp.eq.s32.totalorder %s25, 1
      %p169 = por %p167, %p168
      %p170 = scmp.ne.s32.totalorder %s161, %s162
      %p171 = scmp.eq.s32.totalorder %s25, 0
      %p172 = por %p170, %p171
      %p173 = scmp.ne.s32.totalorder %s161, %s162
      %p174 = scmp.eq.s32.totalorder %s26, 1
      %p175 = por %p173, %p174
      %p177 = scmp.ne.s32.totalorder %s162, %s176
      %p178 = scmp.eq.s32.totalorder %s26, 0
      %p179 = por %p177, %p178
      %s181 = sadd.s32 %s180, 1
      %p184 = scmp.eq.s32.totalorder %s20, 1
      %p185 = scmp.ne.s32.totalorder %s180, %s182
      %p186 = scmp.eq.s32.totalorder %s20, 0
      %p187 = por %p185, %p186
      %p188 = scmp.ne.s32.totalorder %s180, %s182
      %p189 = scmp.eq.s32.totalorder %s25, 1
      %p190 = por %p188, %p189
      %p191 = scmp.ne.s32.totalorder %s182, %s183
      %p192 = scmp.eq.s32.totalorder %s25, 0
      %p193 = por %p191, %p192
      %p194 = scmp.ne.s32.totalorder %s182, %s183
      %p195 = scmp.eq.s32.totalorder %s26, 1
      %p196 = por %p194, %p195
      %p198 = scmp.ne.s32.totalorder %s183, %s197
      %p199 = scmp.eq.s32.totalorder %s26, 0
      %p200 = por %p198, %p199
      %s202 = sadd.s32 %s201, 1
      %p205 = scmp.eq.s32.totalorder %s20, 1
      %p206 = scmp.ne.s32.totalorder %s201, %s203
      %p207 = scmp.eq.s32.totalorder %s20, 0
      %p208 = por %p206, %p207
      %p209 = scmp.ne.s32.totalorder %s201, %s203
      %p210 = scmp.eq.s32.totalorder %s25, 1
      %p211 = por %p209, %p210
      %p212 = scmp.ne.s32.totalorder %s203, %s204
      %p213 = scmp.eq.s32.totalorder %s25, 0
      %p214 = por %p212, %p213
      %p215 = scmp.ne.s32.totalorder %s203, %s204
      %p216 = scmp.eq.s32.totalorder %s26, 1
      %p217 = por %p215, %p216
      %p219 = scmp.ne.s32.totalorder %s204, %s218
      %p220 = scmp.eq.s32.totalorder %s26, 0
      %p221 = por %p219, %p220
      %s223 = sadd.s32 %s222, 1
      %p226 = scmp.eq.s32.totalorder %s20, 1
      %p227 = scmp.ne.s32.totalorder %s222, %s224
      %p228 = scmp.eq.s32.totalorder %s20, 0
      %p229 = por %p227, %p228
      %p230 = scmp.ne.s32.totalorder %s222, %s224
      %p231 = scmp.eq.s32.totalorder %s25, 1
      %p232 = por %p230, %p231
      %p233 = scmp.ne.s32.totalorder %s224, %s225
      %p234 = scmp.eq.s32.totalorder %s25, 0
      %p235 = por %p233, %p234
      %p236 = scmp.ne.s32.totalorder %s224, %s225
      %p237 = scmp.eq.s32.totalorder %s26, 1
      %p238 = por %p236, %p237
      %p240 = scmp.ne.s32.totalorder %s225, %s239
      %p241 = scmp.eq.s32.totalorder %s26, 0
      %p242 = por %p240, %p241
      %s243 = ssub.s32 %s20, %s27
      %p244 = scmp.eq.s32.totalorder %s243, 0
      %s246 = sadd.s32 %s245, 1
      %s247 = scalar_select %p244, %s245, %s246
      %p250 = pneg %p244
      %p251 = scmp.eq.s32.totalorder %s20, 1
      %p252 = por %p250, %p251
      %p253 = scmp.ne.s32.totalorder %s245, %s248
      %p254 = scmp.eq.s32.totalorder %s20, 0
      %p255 = por %p253, %p254
      %p256 = scmp.ne.s32.totalorder %s245, %s248
      %p257 = scmp.eq.s32.totalorder %s25, 1
      %p258 = por %p256, %p257
      %p259 = scmp.ne.s32.totalorder %s248, %s249
      %p260 = scmp.eq.s32.totalorder %s25, 0
      %p261 = por %p259, %p260
      %p262 = scmp.ne.s32.totalorder %s248, %s249
      %p263 = scmp.eq.s32.totalorder %s26, 1
      %p264 = por %p262, %p263
      %p266 = scmp.ne.s32.totalorder %s249, %s265
      %p267 = scmp.eq.s32.totalorder %s26, 0
      %p268 = por %p266, %p267
      %s269 = ssub.s32 %s20, %s27
      %p270 = scmp.eq.s32.totalorder %s269, 0
      %s272 = sadd.s32 %s271, 1
      %s273 = scalar_select %p270, %s271, %s272
      %p276 = pneg %p270
      %p277 = scmp.eq.s32.totalorder %s20, 1
      %p278 = por %p276, %p277
      %p279 = scmp.ne.s32.totalorder %s271, %s274
      %p280 = scmp.eq.s32.totalorder %s20, 0
      %p281 = por %p279, %p280
      %p282 = scmp.ne.s32.totalorder %s271, %s274
      %p283 = scmp.eq.s32.totalorder %s25, 1
      %p284 = por %p282, %p283
      %p285 = scmp.ne.s32.totalorder %s274, %s275
      %p286 = scmp.eq.s32.totalorder %s25, 0
      %p287 = por %p285, %p286
      %p288 = scmp.ne.s32.totalorder %s274, %s275
      %p289 = scmp.eq.s32.totalorder %s26, 1
      %p290 = por %p288, %p289
      %p292 = scmp.ne.s32.totalorder %s275, %s291
      %p293 = scmp.eq.s32.totalorder %s26, 0
      %p294 = por %p292, %p293
      %p295 = scmp.le.s32.totalorder 1, %s20
      %p296 = scmp.lt.s32.totalorder %s20, 3
      %p297 = pnand %p295, %p296
      %p298 = pneg %p297
      // Predicated region
      $region9: #{ecgclip_forward.3} parent=5 // pred_check
        _
      $region10: #{ecgclip_forward.3} parent=5 // pred_check_branch
        %300 = sbr.rel (%p297) target = $region12
      $region11: #{ecgclip_forward.3} parent=5 // pred_region
        %s301 = ssub.s32 %s20, 1
        // Predicated region
        $region13: #{ecgclip_forward.3} parent=11 // pred_check
          %p302 = pneg %p67
        $region14: #{ecgclip_forward.3} parent=11 // pred_check_branch
          %304 = sbr.rel (%p302) target = $region16
        $region15: #{ecgclip_forward.3} parent=11 // pred_region
          _
        $region16: #{ecgclip_forward.3} parent=11 // pred_fallthru
          _
        // Predicated region
        $region17: #{ecgclip_forward.3} parent=11 // pred_check
          %p305 = pneg %p88
        $region18: #{ecgclip_forward.3} parent=11 // pred_check_branch
          %307 = sbr.rel (%p305) target = $region20
        $region19: #{ecgclip_forward.3} parent=11 // pred_region
          %309 = vsyncadd [#allocation5], 0
          %s311 = sshll.u32 %s2, 4
          %s312 = int_to_ptr.hbm [resolvable:$true] %s311
          %s313 = sshll.u32 [#allocation4], 4
          %s314 = int_to_ptr.vmem [resolvable:$true] %s313
          %316 = dma.hbm_to_vmem [thread:$0]  %s312, 16, %s314, [#allocation5]
        $region20: #{ecgclip_forward.3} parent=11 // pred_fallthru
          _
        // Predicated region
        $region21: #{ecgclip_forward.3} parent=11 // pred_check
          %p317 = pneg %p109
        $region22: #{ecgclip_forward.3} parent=11 // pred_check_branch
          %319 = sbr.rel (%p317) target = $region24
        $region23: #{ecgclip_forward.3} parent=11 // pred_region
          _
        $region24: #{ecgclip_forward.3} parent=11 // pred_fallthru
          _
        // Predicated region
        $region25: #{ecgclip_forward.3} parent=11 // pred_check
          %p320 = pneg %p130
        $region26: #{ecgclip_forward.3} parent=11 // pred_check_branch
          %322 = sbr.rel (%p320) target = $region28
        $region27: #{ecgclip_forward.3} parent=11 // pred_region
          _
        $region28: #{ecgclip_forward.3} parent=11 // pred_fallthru
          _
        // Predicated region
        $region29: #{ecgclip_forward.3} parent=11 // pred_check
          %p323 = pneg %p151
        $region30: #{ecgclip_forward.3} parent=11 // pred_check_branch
          %325 = sbr.rel (%p323) target = $region32
        $region31: #{ecgclip_forward.3} parent=11 // pred_region
          _
        $region32: #{ecgclip_forward.3} parent=11 // pred_fallthru
          _
        // Predicated region
        $region33: #{ecgclip_forward.3} parent=11 // pred_check
          %p326 = pneg %p172
        $region34: #{ecgclip_forward.3} parent=11 // pred_check_branch
          %328 = sbr.rel (%p326) target = $region36
        $region35: #{ecgclip_forward.3} parent=11 // pred_region
          %330 = vsyncadd [#allocation7], 0
          %s332 = sshll.u32 %s6, 4
          %s333 = int_to_ptr.hbm [resolvable:$true] %s332
          %s334 = sshll.u32 [#allocation6], 4
          %s335 = int_to_ptr.vmem [resolvable:$true] %s334
          %337 = dma.hbm_to_vmem [thread:$0]  %s333, 16, %s335, [#allocation7]
        $region36: #{ecgclip_forward.3} parent=11 // pred_fallthru
          _
        // Predicated region
        $region37: #{ecgclip_forward.3} parent=11 // pred_check
          %p338 = pneg %p193
        $region38: #{ecgclip_forward.3} parent=11 // pred_check_branch
          %340 = sbr.rel (%p338) target = $region40
        $region39: #{ecgclip_forward.3} parent=11 // pred_region
          _
        $region40: #{ecgclip_forward.3} parent=11 // pred_fallthru
          _
        // Predicated region
        $region41: #{ecgclip_forward.3} parent=11 // pred_check
          %p341 = pneg %p214
        $region42: #{ecgclip_forward.3} parent=11 // pred_check_branch
          %343 = sbr.rel (%p341) target = $region44
        $region43: #{ecgclip_forward.3} parent=11 // pred_region
          %345 = vsyncadd [#allocation7], 0
          %s347 = sshll.u32 %s8, 4
          %s348 = int_to_ptr.hbm [resolvable:$true] %s347
          %s349 = sshll.u32 [#allocation8], 4
          %s350 = int_to_ptr.vmem [resolvable:$true] %s349
          %352 = dma.hbm_to_vmem [thread:$0]  %s348, 16, %s350, [#allocation7]
        $region44: #{ecgclip_forward.3} parent=11 // pred_fallthru
          _
        // Predicated region
        $region45: #{ecgclip_forward.3} parent=11 // pred_check
          %p353 = pneg %p235
        $region46: #{ecgclip_forward.3} parent=11 // pred_check_branch
          %355 = sbr.rel (%p353) target = $region48
        $region47: #{ecgclip_forward.3} parent=11 // pred_region
          _
        $region48: #{ecgclip_forward.3} parent=11 // pred_fallthru
          _
      $region12: #{ecgclip_forward.3} parent=5 // pred_fallthru
        _
      %p356 = scmp.lt.s32.totalorder %s20, 2
      // Predicated region
      $region49: #{ecgclip_forward.3} parent=5 // pred_check
        %p357 = pneg %p356
      $region50: #{ecgclip_forward.3} parent=5 // pred_check_branch
        %359 = sbr.rel (%p357) target = $region52
      $region51: #{ecgclip_forward.3} parent=5 // pred_region
        // Predicated region
        $region53: #{ecgclip_forward.3} parent=51 // pred_check
          %p360 = pneg %p40
        $region54: #{ecgclip_forward.3} parent=51 // pred_check_branch
          %362 = sbr.rel (%p360) target = $region56
        $region55: #{ecgclip_forward.3} parent=51 // pred_region
          %p363 = scmp.lt.s32.totalorder %s20, 1
          %s364 = scalar_select %p363, %s20, 1
          %s365 = smul.addr %s364, 8
          %s366 = scalar_lea.vmem %s0, %s365
        $region56: #{ecgclip_forward.3} parent=51 // pred_fallthru
          _
      $region52: #{ecgclip_forward.3} parent=5 // pred_fallthru
        _
      %p367 = scmp.le.s32.totalorder 1, %s20
      %p368 = scmp.lt.s32.totalorder %s20, 3
      %p369 = pnand %p367, %p368
      %p370 = pneg %p369
      // Predicated region
      $region57: #{ecgclip_forward.3} parent=5 // pred_check
        _
      $region58: #{ecgclip_forward.3} parent=5 // pred_check_branch
        %372 = sbr.rel (%p369) target = $region60
      $region59: #{ecgclip_forward.3} parent=5 // pred_region
        %s373 = ssub.s32 %s20, 1
        // Predicated region
        $region61: #{ecgclip_forward.3} parent=59 // pred_check
          %p374 = pneg %p88
        $region62: #{ecgclip_forward.3} parent=59 // pred_check_branch
          %376 = sbr.rel (%p374) target = $region64
        $region63: #{ecgclip_forward.3} parent=59 // pred_region
          %378 = dma.done [#allocation5], 16
        $region64: #{ecgclip_forward.3} parent=59 // pred_fallthru
          _
        // Predicated region
        $region65: #{ecgclip_forward.3} parent=59 // pred_check
          %p379 = pneg %p172
        $region66: #{ecgclip_forward.3} parent=59 // pred_check_branch
          %381 = sbr.rel (%p379) target = $region68
        $region67: #{ecgclip_forward.3} parent=59 // pred_region
          %383 = dma.done [#allocation7], 16
        $region68: #{ecgclip_forward.3} parent=59 // pred_fallthru
          _
        // Predicated region
        $region69: #{ecgclip_forward.3} parent=59 // pred_check
          %p384 = pneg %p214
        $region70: #{ecgclip_forward.3} parent=59 // pred_check_branch
          %386 = sbr.rel (%p384) target = $region72
        $region71: #{ecgclip_forward.3} parent=59 // pred_region
          %388 = dma.done [#allocation7], 16
        $region72: #{ecgclip_forward.3} parent=59 // pred_fallthru
          _
        %p389 = scmp.lt.s32.totalorder %s25, 1
        %s390 = scalar_select %p389, %s25, 1
        %s391 = smul.addr %s390, 8
        %s392 = scalar_lea.vmem %s0, %s391
        %p393 = pneg %p46
        %p394 = pneg %p43
        %p395 = pneg %p67
        %p396 = pneg %p64
        %p397 = pneg %p88
        %p398 = pneg %p85
        %p399 = pneg %p109
        %p400 = pneg %p106
        %p401 = pneg %p130
        %p402 = pneg %p127
        %p403 = pneg %p151
        %p404 = pneg %p148
        %p405 = pneg %p172
        %p406 = pneg %p169
        %p407 = pneg %p193
        %p408 = pneg %p190
        %p409 = pneg %p214
        %p410 = pneg %p211
        %p411 = pneg %p235
        %p412 = pneg %p232
        %p413 = pneg %p261
        %p414 = pneg %p258
        %p415 = scmp.lt.s32.totalorder %s25, 1
        %s416 = scalar_select %p415, %s25, 1
        %s417 = smul.addr %s416, 8
        %s418 = scalar_lea.vmem %s10, %s417
        %p419 = pneg %p287
        %p420 = pneg %p284
        %p421 = scmp.lt.s32.totalorder %s25, 1
        %s422 = scalar_select %p421, %s25, 1
        %s423 = scalar_lea.vmem %s11, %s422
        %p424 = scmp.lt.s32.totalorder %s25, 1
        %s425 = scalar_select %p424, %s25, 1
        %s426 = smul.addr %s425, 8
        %s427 = scalar_lea.vmem %s0, %s426
        %p428 = scmp.lt.s32.totalorder %s25, 1
        %s429 = scalar_select %p428, %s25, 1
        %s430 = smul.addr %s429, 8
        %s431 = scalar_lea.vmem %s10, %s430
        %p432 = scmp.lt.s32.totalorder %s25, 1
        %s433 = scalar_select %p432, %s25, 1
        %s434 = scalar_lea.vmem %s11, %s433
        %v436 = vld [vmem:[%s427] sm:$0xff]
        %v437 = vld [vmem:[%s1] sm:$0xf]
        %v438 = vld [vmem:[%s1 + $0x4] sm:$0xf]
        %v439 = vld [vmem:[%s1 + $0x8] sm:$0xf]
        %v440 = vld [vmem:[%s1 + $0xc] sm:$0xf]
        %v441 = vld [vmem:[%s1 + $0x10] sm:$0xf]
        %v442 = vld [vmem:[%s1 + $0x14] sm:$0xf]
        %v443 = vld [vmem:[%s1 + $0x18] sm:$0xf]
        %v444 = vld [vmem:[%s1 + $0x1c] sm:$0xf]
        %v445 = vpack.c.bf16 %v436, %v436
        %v446 = vld [vmem:[#allocation4] sm:$0x1]
        %v448 = vperm.slane %v446, 0
        %v458 = vunpack.c.l.b16 %v437
        %v459 = vunpack.c.l.b16 %v438
        %v460 = vunpack.c.l.b16 %v439
        %v461 = vunpack.c.l.b16 %v440
        %v462 = vunpack.c.l.b16 %v441
        %v463 = vunpack.c.l.b16 %v442
        %v464 = vunpack.c.l.b16 %v443
        %v465 = vunpack.c.l.b16 %v444
        %v466 = vpack.c.b16 %v459, %v458
        %v467 = vpack.c.b16 %v461, %v460
        %v468 = vpack.c.b16 %v463, %v462
        %v469 = vpack.c.b16 %v465, %v464
        %vm474 = vcmask 523264
        %v476 = vsel %vm474, %v445, 0
        %478 = vmatpush.bf16.msra.mxu0 0
        %479 = vmatpush.bf16.msra.mxu0 0
        %480 = vmatpush.bf16.msra.mxu0 0
        %481 = vmatpush.bf16.msra.mxu0 0
        %482 = vmatpush.bf16.msra.mxu0 %v469
        %483 = vmatpush.bf16.msra.mxu0 %v468
        %484 = vmatpush.bf16.msra.mxu0 %v467
        %485 = vmatpush.bf16.msra.mxu0 %v466
        %486 = vmatmul.bf16.gmra.mxu0 %v476
        %v487 = vpop.f32.mrf.mxu0
        %v488 = vadd.f32 %v448, %v487
        %v489 = vpop.f32.mrf.mxu0
        %490 = vdwg.mxu0
        %v491 = vld [vmem:[%s3] sm:$0xff]
        %v492 = vadd.f32 %v488, %v491
        %v493 = vld [vmem:[%s5] sm:$0xf]
        %v494 = vld [vmem:[%s5 + $0x4] sm:$0xf]
        %v495 = vld [vmem:[%s5 + $0x8] sm:$0xf]
        %v496 = vld [vmem:[%s5 + $0xc] sm:$0xf]
        %v497 = vpack.c.bf16 %v492, %v492
        %v498 = vld [vmem:[#allocation6] sm:$0x1]
        %v500 = vperm.slane %v498, 0
        %v506 = vunpack.c.l.b16 %v493
        %v507 = vunpack.c.l.b16 %v494
        %v508 = vunpack.c.l.b16 %v495
        %v509 = vunpack.c.l.b16 %v496
        %v510 = vpack.c.b16 %v507, %v506
        %v511 = vpack.c.b16 %v509, %v508
        %vm514 = vcmask 261120
        %v516 = vsel %vm514, %v497, 0
        %518 = vmatpush.bf16.msra.mxu0 0
        %519 = vmatpush.bf16.msra.mxu0 0
        %520 = vmatpush.bf16.msra.mxu0 0
        %521 = vmatpush.bf16.msra.mxu0 0
        %522 = vmatpush.bf16.msra.mxu0 0
        %523 = vmatpush.bf16.msra.mxu0 0
        %524 = vmatpush.bf16.msra.mxu0 %v511
        %525 = vmatpush.bf16.msra.mxu0 %v510
        %526 = vmatmul.bf16.gmra.mxu0 %v516
        %v527 = vpop.f32.mrf.mxu0
        %v528 = vadd.f32 %v500, %v527
        %v529 = vpop.f32.mrf.mxu0
        %530 = vdwg.mxu0
        %v531 = vpack.c.bf16 %v528, %v528
        %vm532 = vcmask 781312
        %533 = vst.msk [vmem:[#allocation2] sm:$0xf] %vm532, %v531
        %v534 = vld [vmem:[%s4] sm:$0x3]
        %v535 = vld [vmem:[%s5] sm:$0xf]
        %v536 = vld [vmem:[%s5 + $0x4] sm:$0xf]
        %v537 = vld [vmem:[%s5 + $0x8] sm:$0xf]
        %v538 = vld [vmem:[%s5 + $0xc] sm:$0xf]
        %v539 = vpack.c.bf16 %v534, %v534
        %v540 = vld [vmem:[#allocation6] sm:$0x1]
        %v542 = vperm.slane %v540, 0
        %v548 = vunpack.c.l.b16 %v535
        %v549 = vunpack.c.l.b16 %v536
        %v550 = vunpack.c.l.b16 %v537
        %v551 = vunpack.c.l.b16 %v538
        %v552 = vpack.c.b16 %v549, %v548
        %v553 = vpack.c.b16 %v551, %v550
        %v557 = vsel %vm514, %v539, 0
        %559 = vmatpush.bf16.msra.mxu0 0
        %560 = vmatpush.bf16.msra.mxu0 0
        %561 = vmatpush.bf16.msra.mxu0 0
        %562 = vmatpush.bf16.msra.mxu0 0
        %563 = vmatpush.bf16.msra.mxu0 0
        %564 = vmatpush.bf16.msra.mxu0 0
        %565 = vmatpush.bf16.msra.mxu0 %v553
        %566 = vmatpush.bf16.msra.mxu0 %v552
        %567 = vmatmul.bf16.gmra.mxu0 %v557
        %v568 = vpop.f32.mrf.mxu0
        %v569 = vadd.f32 %v542, %v568
        %v570 = vpop.f32.mrf.mxu0
        %571 = vdwg.mxu0
        %v572 = vpack.c.bf16 %v569, %v569
        %v573 = vld [vmem:[#allocation2] sm:$0xf]
        %v575 = vunpack.c.l.b16 %v573
        %v576 = vpack.c.b16 %v575, %v575
        %577 = vrot.lane.b32.xlu0 %v576, 96
        %v578 = vpop.permute.xlu0 %577
        %vm579 = vcmask 64512
        %v581 = vsel %vm579, %v573, 0
        %v584 = vsel %vm579, %v578, 0
        %586 = vmatpush.bf16.xpose.msra.mxu0 0
        %587 = vmatpush.bf16.xpose.msra.mxu0 0
        %588 = vmatpush.bf16.xpose.msra.mxu0 0
        %589 = vmatpush.bf16.xpose.msra.mxu0 0
        %590 = vmatpush.bf16.xpose.msra.mxu0 0
        %591 = vmatpush.bf16.xpose.msra.mxu0 0
        %592 = vmatpush.bf16.xpose.msra.mxu0 0
        %593 = vmatpush.bf16.xpose.msra.mxu0 %v584
        %594 = vmatmul.bf16.gmra.mxu0 %v581
        %v595 = vpop.f32.mrf.mxu0
        %v596 = vadd.f32 0.0, %v595
        %v597 = vpop.f32.mrf.mxu0
        %598 = vdwg.mxu0
        %v599 = vmul.f32 %v596, 0.35355338
        %v600 = vsel %vm579, %v599, -inf
        %601 = vmax.xlane.f32.xlu0 %v600
        %v602 = vpop.xlane.xlu0 %601
        %v603 = vunpack.c.l.bf16 %v573
        %v604 = vunpack.c.l.bf16 %v572
        %v605 = vperm.slane %v604, 0
        %607 = vrot.lane.b32.xlu0 %v605, 96
        %v608 = vpop.permute.xlu0 %607
        %v610 = vmul.f32 %v603, %v608
        %v611 = vsel %vm579, %v610, 0.0
        %612 = vadd.xlane.f32.xlu0 %v611
        %v613 = vpop.xlane.xlu0 %612
        %v614 = vmul.f32 %v613, 0.35355338
        %v615 = vmax.f32 %v602, %v614
        %v616 = vperm.slane %v604, 1
        %618 = vrot.lane.b32.xlu0 %v616, 96
        %v619 = vpop.permute.xlu0 %618
        %v621 = vmul.f32 %v603, %v619
        %v622 = vsel %vm579, %v621, 0.0
        %623 = vadd.xlane.f32.xlu0 %v622
        %v624 = vpop.xlane.xlu0 %623
        %v625 = vmul.f32 %v624, 0.35355338
        %v626 = vmax.f32 %v615, %v625
        %v627 = vsub.f32 %v599, %v626
        %v628 = vmul.f32 %v627, 1.442695
        %v629 = vpow.pop %v628
        %v630 = vsel %vm579, %v629, 0.0
        %631 = vadd.xlane.f32.xlu0 %v630
        %v632 = vpop.xlane.xlu0 %631
        %v633 = vpack.c.bf16 %v629, %v629
        %v634 = vsub.f32 %v614, %v626
        %v635 = vmul.f32 %v634, 1.442695
        %v636 = vpow.pop %v635
        %v637 = vadd.f32 %v632, %v636
        %v638 = vmul.f32 %v636, %v605
        %639 = vrot.lane.b32.xlu0 %v576, 64
        %v640 = vpop.permute.xlu0 %639
        %642 = vrot.lane.b32.xlu0 %v638, 64
        %v643 = vpop.permute.xlu0 %642
        %v646 = vsel %vm579, %v633, 0
        %vm648 = vcmask 1043456
        %v650 = vsel %vm648, %v640, 0
        %652 = vmatpush.bf16.msra.mxu0 0
        %653 = vmatpush.bf16.msra.mxu0 0
        %654 = vmatpush.bf16.msra.mxu0 0
        %655 = vmatpush.bf16.msra.mxu0 0
        %656 = vmatpush.bf16.msra.mxu0 0
        %657 = vmatpush.bf16.msra.mxu0 0
        %658 = vmatpush.bf16.msra.mxu0 0
        %659 = vmatpush.bf16.msra.mxu0 %v650
        %660 = vmatmul.bf16.gmra.mxu0 %v646
        %v661 = vpop.f32.mrf.mxu0
        %v662 = vadd.f32 %v643, %v661
        %v663 = vpop.f32.mrf.mxu0
        %664 = vdwg.mxu0
        %v665 = vsub.f32 %v625, %v626
        %v666 = vmul.f32 %v665, 1.442695
        %v667 = vpow.pop %v666
        %v668 = vadd.f32 %v637, %v667
        %v669 = vmul.f32 %v667, %v616
        %671 = vrot.lane.b32.xlu0 %v669, 64
        %v672 = vpop.permute.xlu0 %671
        %v674 = vadd.f32 %v662, %v672
        %v675 = vrcp.pop %v668
        %v676 = vmul.f32 %v674, %v675
        %v677 = vpack.c.bf16 %v676, %v676
        %678 = vrot.lane.b32.xlu0 %v576, 120
        %v679 = vpop.permute.xlu0 %678
        %680 = vrot.lane.b32.xlu0 %v576, 88
        %v681 = vpop.permute.xlu0 %680
        %v683 = vsel %vm579, %v679, 0
        %v686 = vsel %vm579, %v681, 0
        %688 = vmatpush.bf16.xpose.msra.mxu0 0
        %689 = vmatpush.bf16.xpose.msra.mxu0 0
        %690 = vmatpush.bf16.xpose.msra.mxu0 0
        %691 = vmatpush.bf16.xpose.msra.mxu0 0
        %692 = vmatpush.bf16.xpose.msra.mxu0 0
        %693 = vmatpush.bf16.xpose.msra.mxu0 0
        %694 = vmatpush.bf16.xpose.msra.mxu0 0
        %695 = vmatpush.bf16.xpose.msra.mxu0 %v686
        %696 = vmatmul.bf16.gmra.mxu0 %v683
        %v697 = vpop.f32.mrf.mxu0
        %v698 = vadd.f32 0.0, %v697
        %v699 = vpop.f32.mrf.mxu0
        %700 = vdwg.mxu0
        %v701 = vmul.f32 %v698, 0.35355338
        %v702 = vsel %vm579, %v701, -inf
        %703 = vmax.xlane.f32.xlu0 %v702
        %v704 = vpop.xlane.xlu0 %703
        %706 = vrot.lane.b32.xlu0 %v610, 120
        %v707 = vpop.permute.xlu0 %706
        %v709 = vsel %vm579, %v707, 0.0
        %710 = vadd.xlane.f32.xlu0 %v709
        %v711 = vpop.xlane.xlu0 %710
        %v712 = vmul.f32 %v711, 0.35355338
        %v713 = vmax.f32 %v704, %v712
        %715 = vrot.lane.b32.xlu0 %v621, 120
        %v716 = vpop.permute.xlu0 %715
        %v718 = vsel %vm579, %v716, 0.0
        %719 = vadd.xlane.f32.xlu0 %v718
        %v720 = vpop.xlane.xlu0 %719
        %v721 = vmul.f32 %v720, 0.35355338
        %v722 = vmax.f32 %v713, %v721
        %v723 = vsub.f32 %v701, %v722
        %v724 = vmul.f32 %v723, 1.442695
        %v725 = vpow.pop %v724
        %v726 = vsel %vm579, %v725, 0.0
        %727 = vadd.xlane.f32.xlu0 %v726
        %v728 = vpop.xlane.xlu0 %727
        %v729 = vpack.c.bf16 %v725, %v725
        %v730 = vsub.f32 %v712, %v722
        %v731 = vmul.f32 %v730, 1.442695
        %v732 = vpow.pop %v731
        %v733 = vadd.f32 %v728, %v732
        %v734 = vmul.f32 %v732, %v605
        %735 = vrot.lane.b32.xlu0 %v576, 56
        %v736 = vpop.permute.xlu0 %735
        %738 = vrot.lane.b32.xlu0 %v734, 56
        %v739 = vpop.permute.xlu0 %738
        %v742 = vsel %vm579, %v729, 0
        %v745 = vsel %vm648, %v736, 0
        %747 = vmatpush.bf16.msra.mxu0 0
        %748 = vmatpush.bf16.msra.mxu0 0
        %749 = vmatpush.bf16.msra.mxu0 0
        %750 = vmatpush.bf16.msra.mxu0 0
        %751 = vmatpush.bf16.msra.mxu0 0
        %752 = vmatpush.bf16.msra.mxu0 0
        %753 = vmatpush.bf16.msra.mxu0 0
        %754 = vmatpush.bf16.msra.mxu0 %v745
        %755 = vmatmul.bf16.gmra.mxu0 %v742
        %v756 = vpop.f32.mrf.mxu0
        %v757 = vadd.f32 %v739, %v756
        %v758 = vpop.f32.mrf.mxu0
        %759 = vdwg.mxu0
        %v760 = vsub.f32 %v721, %v722
        %v761 = vmul.f32 %v760, 1.442695
        %v762 = vpow.pop %v761
        %v763 = vadd.f32 %v733, %v762
        %v764 = vmul.f32 %v762, %v616
        %766 = vrot.lane.b32.xlu0 %v764, 56
        %v767 = vpop.permute.xlu0 %766
        %v769 = vadd.f32 %v757, %v767
        %v770 = vrcp.pop %v763
        %v771 = vmul.f32 %v769, %v770
        %v772 = vpack.c.bf16 %v771, %v771
        %773 = vrot.lane.b32.xlu0 %v576, 112
        %v774 = vpop.permute.xlu0 %773
        %775 = vrot.lane.b32.xlu0 %v576, 80
        %v776 = vpop.permute.xlu0 %775
        %v778 = vsel %vm579, %v774, 0
        %v781 = vsel %vm579, %v776, 0
        %783 = vmatpush.bf16.xpose.msra.mxu0 0
        %784 = vmatpush.bf16.xpose.msra.mxu0 0
        %785 = vmatpush.bf16.xpose.msra.mxu0 0
        %786 = vmatpush.bf16.xpose.msra.mxu0 0
        %787 = vmatpush.bf16.xpose.msra.mxu0 0
        %788 = vmatpush.bf16.xpose.msra.mxu0 0
        %789 = vmatpush.bf16.xpose.msra.mxu0 0
        %790 = vmatpush.bf16.xpose.msra.mxu0 %v781
        %791 = vmatmul.bf16.gmra.mxu0 %v778
        %v792 = vpop.f32.mrf.mxu0
        %v793 = vadd.f32 0.0, %v792
        %v794 = vpop.f32.mrf.mxu0
        %795 = vdwg.mxu0
        %v796 = vmul.f32 %v793, 0.35355338
        %v797 = vsel %vm579, %v796, -inf
        %798 = vmax.xlane.f32.xlu0 %v797
        %v799 = vpop.xlane.xlu0 %798
        %800 = vrot.lane.b32.xlu0 %v610, 112
        %v801 = vpop.permute.xlu0 %800
        %v803 = vsel %vm579, %v801, 0.0
        %804 = vadd.xlane.f32.xlu0 %v803
        %v805 = vpop.xlane.xlu0 %804
        %v806 = vmul.f32 %v805, 0.35355338
        %v807 = vmax.f32 %v799, %v806
        %808 = vrot.lane.b32.xlu0 %v621, 112
        %v809 = vpop.permute.xlu0 %808
        %v811 = vsel %vm579, %v809, 0.0
        %812 = vadd.xlane.f32.xlu0 %v811
        %v813 = vpop.xlane.xlu0 %812
        %v814 = vmul.f32 %v813, 0.35355338
        %v815 = vmax.f32 %v807, %v814
        %v816 = vsub.f32 %v796, %v815
        %v817 = vmul.f32 %v816, 1.442695
        %v818 = vpow.pop %v817
        %v819 = vsel %vm579, %v818, 0.0
        %820 = vadd.xlane.f32.xlu0 %v819
        %v821 = vpop.xlane.xlu0 %820
        %v822 = vpack.c.bf16 %v818, %v818
        %v823 = vsub.f32 %v806, %v815
        %v824 = vmul.f32 %v823, 1.442695
        %v825 = vpow.pop %v824
        %v826 = vadd.f32 %v821, %v825
        %v827 = vmul.f32 %v825, %v605
        %828 = vrot.lane.b32.xlu0 %v576, 48
        %v829 = vpop.permute.xlu0 %828
        %831 = vrot.lane.b32.xlu0 %v827, 48
        %v832 = vpop.permute.xlu0 %831
        %v835 = vsel %vm579, %v822, 0
        %v838 = vsel %vm648, %v829, 0
        %840 = vmatpush.bf16.msra.mxu0 0
        %841 = vmatpush.bf16.msra.mxu0 0
        %842 = vmatpush.bf16.msra.mxu0 0
        %843 = vmatpush.bf16.msra.mxu0 0
        %844 = vmatpush.bf16.msra.mxu0 0
        %845 = vmatpush.bf16.msra.mxu0 0
        %846 = vmatpush.bf16.msra.mxu0 0
        %847 = vmatpush.bf16.msra.mxu0 %v838
        %848 = vmatmul.bf16.gmra.mxu0 %v835
        %v849 = vpop.f32.mrf.mxu0
        %v850 = vadd.f32 %v832, %v849
        %v851 = vpop.f32.mrf.mxu0
        %852 = vdwg.mxu0
        %v853 = vsub.f32 %v814, %v815
        %v854 = vmul.f32 %v853, 1.442695
        %v855 = vpow.pop %v854
        %v856 = vadd.f32 %v826, %v855
        %v857 = vmul.f32 %v855, %v616
        %859 = vrot.lane.b32.xlu0 %v857, 48
        %v860 = vpop.permute.xlu0 %859
        %v862 = vadd.f32 %v850, %v860
        %v863 = vrcp.pop %v856
        %v864 = vmul.f32 %v862, %v863
        %v865 = vpack.c.bf16 %v864, %v864
        %866 = vrot.lane.b32.xlu0 %v576, 104
        %v867 = vpop.permute.xlu0 %866
        %868 = vrot.lane.b32.xlu0 %v576, 72
        %v869 = vpop.permute.xlu0 %868
        %v871 = vsel %vm579, %v867, 0
        %v874 = vsel %vm579, %v869, 0
        %876 = vmatpush.bf16.xpose.msra.mxu0 0
        %877 = vmatpush.bf16.xpose.msra.mxu0 0
        %878 = vmatpush.bf16.xpose.msra.mxu0 0
        %879 = vmatpush.bf16.xpose.msra.mxu0 0
        %880 = vmatpush.bf16.xpose.msra.mxu0 0
        %881 = vmatpush.bf16.xpose.msra.mxu0 0
        %882 = vmatpush.bf16.xpose.msra.mxu0 0
        %883 = vmatpush.bf16.xpose.msra.mxu0 %v874
        %884 = vmatmul.bf16.gmra.mxu0 %v871
        %v885 = vpop.f32.mrf.mxu0
        %v886 = vadd.f32 0.0, %v885
        %v887 = vpop.f32.mrf.mxu0
        %888 = vdwg.mxu0
        %v889 = vmul.f32 %v886, 0.35355338
        %v890 = vsel %vm579, %v889, -inf
        %891 = vmax.xlane.f32.xlu0 %v890
        %v892 = vpop.xlane.xlu0 %891
        %893 = vrot.lane.b32.xlu0 %v610, 104
        %v894 = vpop.permute.xlu0 %893
        %v896 = vsel %vm579, %v894, 0.0
        %897 = vadd.xlane.f32.xlu0 %v896
        %v898 = vpop.xlane.xlu0 %897
        %v899 = vmul.f32 %v898, 0.35355338
        %v900 = vmax.f32 %v892, %v899
        %901 = vrot.lane.b32.xlu0 %v621, 104
        %v902 = vpop.permute.xlu0 %901
        %v904 = vsel %vm579, %v902, 0.0
        %905 = vadd.xlane.f32.xlu0 %v904
        %v906 = vpop.xlane.xlu0 %905
        %v907 = vmul.f32 %v906, 0.35355338
        %v908 = vmax.f32 %v900, %v907
        %v909 = vsub.f32 %v889, %v908
        %v910 = vmul.f32 %v909, 1.442695
        %v911 = vpow.pop %v910
        %v912 = vsel %vm579, %v911, 0.0
        %913 = vadd.xlane.f32.xlu0 %v912
        %v914 = vpop.xlane.xlu0 %913
        %v915 = vpack.c.bf16 %v911, %v911
        %v916 = vsub.f32 %v899, %v908
        %v917 = vmul.f32 %v916, 1.442695
        %v918 = vpow.pop %v917
        %v919 = vadd.f32 %v914, %v918
        %v920 = vmul.f32 %v918, %v605
        %921 = vrot.lane.b32.xlu0 %v576, 40
        %v922 = vpop.permute.xlu0 %921
        %924 = vrot.lane.b32.xlu0 %v920, 40
        %v925 = vpop.permute.xlu0 %924
        %v928 = vsel %vm579, %v915, 0
        %v931 = vsel %vm648, %v922, 0
        %933 = vmatpush.bf16.msra.mxu0 0
        %934 = vmatpush.bf16.msra.mxu0 0
        %935 = vmatpush.bf16.msra.mxu0 0
        %936 = vmatpush.bf16.msra.mxu0 0
        %937 = vmatpush.bf16.msra.mxu0 0
        %938 = vmatpush.bf16.msra.mxu0 0
        %939 = vmatpush.bf16.msra.mxu0 0
        %940 = vmatpush.bf16.msra.mxu0 %v931
        %941 = vmatmul.bf16.gmra.mxu0 %v928
        %v942 = vpop.f32.mrf.mxu0
        %v943 = vadd.f32 %v925, %v942
        %v944 = vpop.f32.mrf.mxu0
        %945 = vdwg.mxu0
        %v946 = vsub.f32 %v907, %v908
        %v947 = vmul.f32 %v946, 1.442695
        %v948 = vpow.pop %v947
        %v949 = vadd.f32 %v919, %v948
        %v950 = vmul.f32 %v948, %v616
        %952 = vrot.lane.b32.xlu0 %v950, 40
        %v953 = vpop.permute.xlu0 %952
        %v955 = vadd.f32 %v943, %v953
        %v956 = vrcp.pop %v949
        %v957 = vmul.f32 %v955, %v956
        %v958 = vpack.c.bf16 %v957, %v957
        %v960 = vunpack.c.l.b16 %v772
        %v961 = vpack.c.b16 %v960, %v960
        %962 = vrot.lane.b32.xlu0 %v961, 8
        %v963 = vpop.permute.xlu0 %962
        %v965 = vunpack.c.l.b16 %v865
        %v966 = vpack.c.b16 %v965, %v965
        %967 = vrot.lane.b32.xlu0 %v966, 16
        %v968 = vpop.permute.xlu0 %967
        %v970 = vunpack.c.l.b16 %v958
        %v971 = vpack.c.b16 %v970, %v970
        %972 = vrot.lane.b32.xlu0 %v971, 24
        %v973 = vpop.permute.xlu0 %972
        %v976 = vsel %vm579, %v677, %v963
        %vm977 = vcmask 130048
        %v979 = vsel %vm977, %v976, %v968
        %vm980 = vcmask 195584
        %v982 = vsel %vm980, %v979, %v973
        %vm984 = vcmask 257024
        %985 = vst.msk [vmem:[#allocation3] sm:$0xf] %vm984, %v982
        %v986 = vld [vmem:[#allocation3] sm:$0xf]
        %v987 = vld [vmem:[%s7] sm:$0xf]
        %v988 = vld [vmem:[%s7 + $0x4] sm:$0xf]
        %v989 = vld [vmem:[%s7 + $0x8] sm:$0xf]
        %v990 = vld [vmem:[%s7 + $0xc] sm:$0xf]
        %v991 = vld [vmem:[#allocation8] sm:$0x1]
        %v993 = vperm.slane %v991, 0
        %v999 = vunpack.c.l.b16 %v987
        %v1000 = vunpack.c.l.b16 %v988
        %v1001 = vunpack.c.l.b16 %v989
        %v1002 = vunpack.c.l.b16 %v990
        %v1003 = vpack.c.b16 %v1000, %v999
        %v1004 = vpack.c.b16 %v1002, %v1001
        %v1008 = vsel %vm514, %v986, 0
        %1010 = vmatpush.bf16.msra.mxu0 0
        %1011 = vmatpush.bf16.msra.mxu0 0
        %1012 = vmatpush.bf16.msra.mxu0 0
        %1013 = vmatpush.bf16.msra.mxu0 0
        %1014 = vmatpush.bf16.msra.mxu0 0
        %1015 = vmatpush.bf16.msra.mxu0 0
        %1016 = vmatpush.bf16.msra.mxu0 %v1004
        %1017 = vmatpush.bf16.msra.mxu0 %v1003
        %1018 = vmatmul.bf16.gmra.mxu0 %v1008
        %v1019 = vpop.f32.mrf.mxu0
        %v1020 = vadd.f32 %v993, %v1019
        %v1021 = vpop.f32.mrf.mxu0
        %1022 = vdwg.mxu0
        %v1023 = vld [vmem:[%s9] sm:$0xff]
        %v1024 = vadd.f32 %v1020, %v1023
        %1025 = vst.msk [vmem:[%s431] sm:$0xff] %vm514, %v1024
        %v1026 = vsel %vm514, %v1020, 0.0
        %v1027 = vrot.slane %v1026, 4
        %v1028 = vadd.f32 %v1026, %v1027
        %v1029 = vrot.slane %v1028, 2
        %v1030 = vadd.f32 %v1028, %v1029
        %v1031 = vrot.slane %v1030, 1
        %v1032 = vadd.f32 %v1030, %v1031
        %v1033 = vrcp.pop 8.0
        %v1034 = vmul.f32 8.0, %v1033
        %v1035 = vsub.f32 1.0, %v1034
        %v1036 = vmul.f32 %v1033, %v1035
        %v1037 = vadd.f32 %v1033, %v1036
        %vm1038 = vweird.f32 %v1033
        %v1039 = vsel %vm1038, %v1033, %v1037
        %v1040 = vmul.f32 %v1032, %v1039
        %vm1041 = vcmask 253952
        %1042 = vst.msk [vmem:[%s434] sm:$0x1] %vm1041, %v1040
        %p1043 = scmp.lt.s32.totalorder %s25, 1
        %s1044 = scalar_select %p1043, %s25, 1
        %s1045 = smul.addr %s1044, 8
        %s1046 = scalar_lea.vmem %s10, %s1045
        %p1047 = scmp.lt.s32.totalorder %s25, 1
        %s1048 = scalar_select %p1047, %s25, 1
        %s1049 = scalar_lea.vmem %s11, %s1048
        // Predicated region
        $region73: #{ecgclip_forward.3} parent=59 // pred_check
          %p1050 = pneg %p258
        $region74: #{ecgclip_forward.3} parent=59 // pred_check_branch
          %1052 = sbr.rel (%p1050) target = $region76
        $region75: #{ecgclip_forward.3} parent=59 // pred_region
          _
        $region76: #{ecgclip_forward.3} parent=59 // pred_fallthru
          _
        // Predicated region
        $region77: #{ecgclip_forward.3} parent=59 // pred_check
          %p1053 = pneg %p284
        $region78: #{ecgclip_forward.3} parent=59 // pred_check_branch
          %1055 = sbr.rel (%p1053) target = $region80
        $region79: #{ecgclip_forward.3} parent=59 // pred_region
          _
        $region80: #{ecgclip_forward.3} parent=59 // pred_fallthru
          _
      $region60: #{ecgclip_forward.3} parent=5 // pred_fallthru
        _
      %p1056 = scmp.le.s32.totalorder 2, %s20
      // Predicated region
      $region81: #{ecgclip_forward.3} parent=5 // pred_check
        %p1057 = pneg %p1056
      $region82: #{ecgclip_forward.3} parent=5 // pred_check_branch
        %1059 = sbr.rel (%p1057) target = $region84
      $region83: #{ecgclip_forward.3} parent=5 // pred_region
        %s1060 = ssub.s32 %s20, 2
        // Predicated region
        $region85: #{ecgclip_forward.3} parent=83 // pred_check
          %p1061 = pneg %p264
        $region86: #{ecgclip_forward.3} parent=83 // pred_check_branch
          %1063 = sbr.rel (%p1061) target = $region88
        $region87: #{ecgclip_forward.3} parent=83 // pred_region
          %p1064 = scmp.lt.s32.totalorder %s26, 1
          %s1065 = scalar_select %p1064, %s26, 1
          %s1066 = smul.addr %s1065, 8
          %s1067 = scalar_lea.vmem %s10, %s1066
        $region88: #{ecgclip_forward.3} parent=83 // pred_fallthru
          _
        // Predicated region
        $region89: #{ecgclip_forward.3} parent=83 // pred_check
          %p1068 = pneg %p290
        $region90: #{ecgclip_forward.3} parent=83 // pred_check_branch
          %1070 = sbr.rel (%p1068) target = $region92
        $region91: #{ecgclip_forward.3} parent=83 // pred_region
          %p1071 = scmp.lt.s32.totalorder %s26, 1
          %s1072 = scalar_select %p1071, %s26, 1
          %s1073 = scalar_lea.vmem %s11, %s1072
        $region92: #{ecgclip_forward.3} parent=83 // pred_fallthru
          _
      $region84: #{ecgclip_forward.3} parent=5 // pred_fallthru
        _
    $region6: #{ecgclip_forward.3} parent=1 // loop_footer
      %s24 = sadd.s32 1, %s20
    $region7: #{ecgclip_forward.3} parent=1 // loop_footer_branch
      %19 = sbr.rel target = $region3
    $region8: #{ecgclip_forward.3} parent=1 // loop_exit
      _
    %1074 = vsyncpa [#allocation5], 1
    %s1075 = scalar_lea.sflag [#allocation5], 1
    %1076 = vsyncpa %s1075, 1
    %1077 = vsyncpa [#allocation7], 1

</llo_original>
